<compile_context>
chip_gen: v7x
topology: tpu7x:2x2x1
jax: 0.10.0
libtpu: 0.0.40
codegen_flags: <defaults>
</compile_context>

<pallas_src>
import functools

import jax
import jax.numpy as jnp
from jax import lax
from jax.experimental import pallas as pl
from jax.experimental.pallas import tpu as pltpu


# ----------------------------------------------------------------------------
# small helpers
# ----------------------------------------------------------------------------
def _softplus(x):
    # matches torch.nn.Softplus(beta=1, threshold=20)
    xs = jnp.minimum(x, 20.0)
    return jnp.where(x > 20.0, x, jnp.log(1.0 + jnp.exp(xs)))


def _silu(x):
    # x * sigmoid(x); reciprocal goes to the EUP slot (approx vrcp).
    return x * pl.reciprocal(1.0 + jnp.exp(-x), approx=True)


# ----------------------------------------------------------------------------
# host-side precomputed one-hot expansion matrices (bf16, exact 0/1)
#   lane layout: lane index k = n*ED + e   (state-major)
#   tile_E  [e , n*ED+e ] = 1   -> tiles a (.., ED) tensor N times along lanes
#   expand_N[n , n*ED+e ] = 1   -> replicates a (.., N) tensor ED times per state
#   gather_E[n*ED+e, e  ] = 1   -> sums over the state index n
# ----------------------------------------------------------------------------
def make_onehot_mats(d_state, dim_inner, dtype=jnp.bfloat16):
    N, ED = d_state, dim_inner
    NE = N * ED
    k = jnp.arange(NE)
    tile_E = (k[None, :] % ED == jnp.arange(ED)[:, None]).astype(dtype)    # (ED, NE)
    expand_N = (k[None, :] // ED == jnp.arange(N)[:, None]).astype(dtype)  # (N , NE)
    gather_E = (k[:, None] % ED == jnp.arange(ED)[None, :]).astype(dtype)  # (NE, ED)
    return tile_E, expand_N, gather_E


# ----------------------------------------------------------------------------
# VisionEncoderMambaBlock kernel
#   LayerNorm + shared proj + 2 x (conv1x1 + softplus + SSM), combined with z.
#   x_ref / o_ref are (Bblk*S, D) row blocks (rows are batch-major: b*S + s).
# ----------------------------------------------------------------------------
def _mamba_block_kernel(
    x_ref, lng_ref, lnb_ref, wp_ref, bp_ref,
    wf_ref, bf_ref, wb_ref, bb_ref,
    wdel_ref, wB_ref, wC_ref, wdt_ref, bdt_ref,
    aflat_ref, dpar_ref,
    tileE_ref, expN_ref, gathE_ref,
    o_ref,
    *, seq_len,
):
    xs = x_ref[...]                                    # (BS, D) f32
    BS = xs.shape[0]

    # ---- LayerNorm (eps=1e-5, biased variance) ----
    mu = jnp.mean(xs, axis=-1, keepdims=True)
    xm = xs - mu
    var = jnp.mean(xm * xm, axis=-1, keepdims=True)
    xn = xm * lax.rsqrt(var + 1e-5) * lng_ref[...] + lnb_ref[...]

    # ---- shared projection (z1 and x in the torch code are identical) ----
    xp = (jnp.dot(xn.astype(jnp.bfloat16), wp_ref[...],
                  preferred_element_type=jnp.float32) + bp_ref[...])
    z = _silu(xp)                                      # SiLU gate
    xp16 = xp.astype(jnp.bfloat16)

    # A = -exp(A_log), flattened so that A_flat[0, n*ED + e] = A[e, n]
    A_flat = -jnp.exp(aflat_ref[...])                  # (1, NE) f32

    # Per-row sequence index (row = b*S + s) and segment masks for the scan,
    # hoisted so both directions reuse them.
    s_idx = lax.broadcasted_iota(jnp.int32, (BS, 1), 0) % seq_len
    seg_stages = []
    shift = 1
    while shift < seq_len:
        seg_stages.append((shift, (s_idx >= shift).astype(jnp.float32)))
        shift *= 2

    def run_direction(wc_ref, bc_ref):
        # conv1d(kernel_size=1) over channels == pointwise linear, + softplus
        xc = _softplus(jnp.dot(xp16, wc_ref[...],
                               preferred_element_type=jnp.float32) + bc_ref[...])
        xc16 = xc.astype(jnp.bfloat16)                 # (BS, ED)  (ED == D here)

        # SSM input projections (deltaBC split into three matmuls) + dt_proj
        delta_r = jnp.dot(xc16, wdel_ref[...], preferred_element_type=jnp.float32)
        Bm = jnp.dot(xc16, wB_ref[...], preferred_element_type=jnp.float32)   # (BS, N)
        Cm = jnp.dot(xc16, wC_ref[...], preferred_element_type=jnp.float32)   # (BS, N)
        delta = _softplus(
            jnp.dot(delta_r.astype(jnp.bfloat16), wdt_ref[...],
                    preferred_element_type=jnp.float32) + bdt_ref[...])       # (BS, ED)

        # Expand to the flattened (state x channel) lane layout, width NE.
        delta_t = jnp.dot(delta.astype(jnp.bfloat16), tileE_ref[...],
                          preferred_element_type=jnp.float32)                 # (BS, NE)
        dx_t = jnp.dot((delta * xc).astype(jnp.bfloat16), tileE_ref[...],
                       preferred_element_type=jnp.float32)                    # (BS, NE)
        B_rep = jnp.dot(Bm.astype(jnp.bfloat16), expN_ref[...],
                        preferred_element_type=jnp.float32)                   # (BS, NE)
        C_rep = jnp.dot(Cm.astype(jnp.bfloat16), expN_ref[...],
                        preferred_element_type=jnp.float32)                   # (BS, NE)

        a = jnp.exp(delta_t * A_flat)                  # deltaA      (BS, NE)
        h = dx_t * B_rep                               # deltaB * x  (BS, NE)

        # Segmented (per-batch-element) inclusive scan of
        #   h_t = a_t * h_{t-1} + b_t ,  h_{-1} = 0
        # done entirely in registers: log2(S) Hillis-Steele stages of sublane
        # roll (XLU) + mul/add (VPU).  Rows with s < shift keep the identity
        # element so segments (batches) never mix.
        for shift, m in seg_stages:
            a_sh = pltpu.roll(a, shift=shift, axis=0) * m + (1.0 - m)
            h_sh = pltpu.roll(h, shift=shift, axis=0) * m
            h = h + a * h_sh
            a = a * a_sh

        # y[s, e] = sum_n h[s, n*ED+e] * C[s, n]  +  D[e] * x[s, e]
        y = jnp.dot((h * C_rep).astype(jnp.bfloat16), gathE_ref[...],
                    preferred_element_type=jnp.float32)
        return y + dpar_ref[...] * xc

    y1 = run_direction(wf_ref, bf_ref)     # forward_conv1d branch
    y2 = run_direction(wb_ref, bb_ref)     # backward_conv1d branch

    o_ref[...] = (y1 + y2) * z + xs        # x1*z + x2*z + skip


def mamba_block(tokens, p, onehots, *, dt_rank, d_state, dim_inner,
                max_block_b=8):
    B, S, D = tokens.shape
    NE = d_state * dim_inner
    tile_E, expand_N, gather_E = onehots

    # Batch-block: several batch elements per grid step so the scan fills
    # sublanes and per-grid-step overhead is amortized.
    Bblk = min(max_block_b, B)
    B_pad = ((B + Bblk - 1) // Bblk) * Bblk
    if B_pad != B:
        tokens = jnp.pad(tokens, ((0, B_pad - B), (0, 0), (0, 0)))
    nb = B_pad // Bblk
    rows = Bblk * S
    x2d = tokens.reshape(B_pad * S, D)

    def const(shape):
        nd = len(shape)
        return pl.BlockSpec(shape, lambda b, _n=nd: (0,) * _n)

    bf16 = lambda a: a.astype(jnp.bfloat16)
    kernel = functools.partial(_mamba_block_kernel, seq_len=S)

    out2d = pl.pallas_call(
        kernel,
        out_shape=jax.ShapeDtypeStruct((B_pad * S, D), jnp.float32),
        grid_spec=pltpu.PrefetchScalarGridSpec(
            num_scalar_prefetch=0,
            grid=(nb,),
            in_specs=[
                pl.BlockSpec((rows, D), lambda b: (b, 0)),      # token rows
                const((1, D)), const((1, D)),                   # layernorm gamma/beta
                const((D, D)), const((1, D)),                   # proj
                const((D, D)), const((1, D)),                   # forward_conv1d (k=1)
                const((D, D)), const((1, D)),                   # backward_conv1d (k=1)
                const((D, dt_rank)),                            # deltaBC -> delta part
                const((D, d_state)),                            # deltaBC -> B part
                const((D, d_state)),                            # deltaBC -> C part
                const((dt_rank, dim_inner)), const((1, dim_inner)),  # dt_proj
                const((1, NE)),                                 # A_log (flattened)
                const((1, dim_inner)),                          # D parameter
                const((dim_inner, NE)),                         # tile_E   (bf16)
                const((d_state, NE)),                           # expand_N (bf16)
                const((NE, dim_inner)),                         # gather_E (bf16)
            ],
            out_specs=pl.BlockSpec((rows, D), lambda b: (b, 0)),
        ),
        compiler_params=pltpu.CompilerParams(
            dimension_semantics=("parallel",),
            vmem_limit_bytes=48 * 1024 * 1024,
        ),
    )(
        x2d,
        p["ln_g"], p["ln_b"],
        bf16(p["wp"]), p["bp"],
        bf16(p["wf"]), p["bf"],
        bf16(p["wb"]), p["bb"],
        bf16(p["w_delta"]), bf16(p["w_B"]), bf16(p["w_C"]),
        bf16(p["w_dt"]), p["b_dt"],
        p["a_flat"], p["d_par"],
        tile_E, expand_N, gather_E,
    )
    return out2d.reshape(B_pad, S, D)[:B]


# ----------------------------------------------------------------------------
# parameter init (deterministic, synthetic — matches the module's shapes)
# ----------------------------------------------------------------------------
def init_vim_params(key, *, dim, dt_rank, dim_inner, d_state, depth, patch_dim):
    scale = 0.05
    keys = jax.random.split(key, depth + 1)
    kpe = jax.random.split(keys[0], 2)
    params = {
        "patch_w": jax.random.normal(kpe[0], (patch_dim, dim), jnp.float32) * scale,
        "patch_b": jax.random.normal(kpe[1], (1, dim), jnp.float32) * scale,
        "blocks": [],
    }
    # A_log = log(arange(1, N+1)) repeated over dim_inner rows -> (ED, N) in torch.
    # Stored flattened/transposed: a_flat[0, n*ED + e] = log(n+1).
    a_flat = jnp.log(
        jnp.repeat(jnp.arange(1, d_state + 1, dtype=jnp.float32), dim_inner)
    ).reshape(1, d_state * dim_inner)

    for i in range(depth):
        kb = jax.random.split(keys[1 + i], 11)
        blk = {
            "ln_g": jnp.ones((1, dim), jnp.float32),
            "ln_b": jnp.zeros((1, dim), jnp.float32),
            "wp": jax.random.normal(kb[0], (dim, dim), jnp.float32) * scale,
            "bp": jax.random.normal(kb[1], (1, dim), jnp.float32) * scale,
            "wf": jax.random.normal(kb[2], (dim, dim), jnp.float32) * scale,
            "bf": jax.random.normal(kb[3], (1, dim), jnp.float32) * scale,
            "wb": jax.random.normal(kb[4], (dim, dim), jnp.float32) * scale,
            "bb": jax.random.normal(kb[5], (1, dim), jnp.float32) * scale,
            "w_delta": jax.random.normal(kb[6], (dim, dt_rank), jnp.float32) * scale,
            "w_B": jax.random.normal(kb[7], (dim, d_state), jnp.float32) * scale,
            "w_C": jax.random.normal(kb[8], (dim, d_state), jnp.float32) * scale,
            "w_dt": jax.random.normal(kb[9], (dt_rank, dim_inner), jnp.float32) * scale,
            "b_dt": jax.random.normal(kb[10], (1, dim_inner), jnp.float32) * scale,
            "a_flat": a_flat,
            "d_par": jnp.ones((1, dim_inner), jnp.float32),
        }
        params["blocks"].append(blk)
    return params


# ----------------------------------------------------------------------------
# full Vim forward (Pallas) + patch embedding glue
# ----------------------------------------------------------------------------
def _patch_embed(params, x, patch_size):
    b, c, H, W = x.shape
    ph = pw = patch_size
    h, w = H // ph, W // pw
    # Rearrange 'b c (h p1) (w p2) -> b (h w) (p1 p2 c)'  (glue, plain JAX)
    xr = x.reshape(b, c, h, ph, w, pw)
    xr = jnp.transpose(xr, (0, 2, 4, 3, 5, 1))          # b, h, w, p1, p2, c
    xr = xr.reshape(b, h * w, ph * pw * c)
    # Patch embedding: a single tiny GEMM — left to XLA.
    return jnp.einsum("bsp,pd->bsd", xr, params["patch_w"]) + params["patch_b"]


def vim_forward(params, x, pos_embed, pose_token_embed, *,
                patch_size, dt_rank, d_state, dim_inner):
    # pos_embed / pose_token_embed are accepted but unused, exactly as in the
    # reference Vim.forward.
    del pos_embed, pose_token_embed
    tokens = _patch_embed(params, x, patch_size)
    onehots = make_onehot_mats(d_state, dim_inner)
    # TODO(synk): nn.Dropout is constructed in Vim.__init__ but never applied in
    # forward, so it is intentionally omitted here.
    for blk in params["blocks"]:
        tokens = mamba_block(tokens, blk, onehots, dt_rank=dt_rank,
                             d_state=d_state, dim_inner=dim_inner)
    return tokens


# ----------------------------------------------------------------------------
# pure-JAX f32 reference (mirrors the PyTorch forward) for self-checking
# ----------------------------------------------------------------------------
def _ref_layernorm(x, g, b, eps=1e-5):
    mu = jnp.mean(x, axis=-1, keepdims=True)
    var = jnp.mean((x - mu) ** 2, axis=-1, keepdims=True)
    return (x - mu) / jnp.sqrt(var + eps) * g + b


def mamba_block_reference(tokens, p, *, dt_rank, d_state, dim_inner):
    B, S, D = tokens.shape
    skip = tokens
    xn = _ref_layernorm(tokens, p["ln_g"][0], p["ln_b"][0])
    xp = xn @ p["wp"] + p["bp"][0]               # proj (z1 and x identical)
    z = xp * jax.nn.sigmoid(xp)                  # SiLU gate

    # a_flat[0, n*ED + e] = A_log[e, n]  ->  A (ED, N)
    A = -jnp.exp(p["a_flat"].reshape(d_state, dim_inner).T)
    Dpar = p["d_par"][0]

    def direction(wc, bc):
        xc = _softplus(xp @ wc + bc[0])          # conv1d(k=1) + softplus
        delta = _softplus((xc @ p["w_delta"]) @ p["w_dt"] + p["b_dt"][0])
        Bm = xc @ p["w_B"]
        Cm = xc @ p["w_C"]
        deltaA = jnp.exp(delta[..., None] * A[None, None])      # (B,S,ED,N)
        BX = (delta * xc)[..., None] * Bm[..., None, :]         # (B,S,ED,N)

        def step(h, inp):
            dA, bx = inp
            h = dA * h + bx
            return h, h

        h0 = jnp.zeros((B, dim_inner, d_state), jnp.float32)
        _, hs = lax.scan(step, h0,
                         (jnp.moveaxis(deltaA, 1, 0), jnp.moveaxis(BX, 1, 0)))
        hs = jnp.moveaxis(hs, 0, 1)                              # (B,S,ED,N)
        y = jnp.einsum("bsen,bsn->bse", hs, Cm) + Dpar * xc
        return y

    y1 = direction(p["wf"], p["bf"])
    y2 = direction(p["wb"], p["bb"])
    return (y1 + y2) * z + skip


def vim_reference(params, x, *, patch_size, dt_rank, d_state, dim_inner):
    tokens = _patch_embed(params, x, patch_size)
    for blk in params["blocks"]:
        tokens = mamba_block_reference(tokens, blk, dt_rank=dt_rank,
                                       d_state=d_state, dim_inner=dim_inner)
    return tokens


# ----------------------------------------------------------------------------
# main
# ----------------------------------------------------------------------------
if __name__ == "__main__":
    cfg = dict(dim=32, dt_rank=8, dim_inner=32, d_state=16, depth=2,
               image_size=16, patch_size=4, channels=4)

    key = jax.random.PRNGKey(0)
    kx, kp, kt, kw = jax.random.split(key, 4)

    B = 2
    x = jax.random.normal(
        kx, (B, cfg["channels"], cfg["image_size"], cfg["image_size"]), jnp.float32)
    num_patches = (cfg["image_size"] // cfg["patch_size"]) ** 2
    pos_embed = jax.random.normal(kp, (1, num_patches, cfg["dim"]), jnp.float32)
    pose_token_embed = jax.random.normal(kt, (1, cfg["dim"]), jnp.float32)

    patch_dim = cfg["channels"] * cfg["patch_size"] ** 2
    params = init_vim_params(
        kw, dim=cfg["dim"], dt_rank=cfg["dt_rank"], dim_inner=cfg["dim_inner"],
        d_state=cfg["d_state"], depth=cfg["depth"], patch_dim=patch_dim)

    out = vim_forward(
        params, x, pos_embed, pose_token_embed,
        patch_size=cfg["patch_size"], dt_rank=cfg["dt_rank"],
        d_state=cfg["d_state"], dim_inner=cfg["dim_inner"])
    out = jax.block_until_ready(out)

    ref = vim_reference(
        params, x,
        patch_size=cfg["patch_size"], dt_rank=cfg["dt_rank"],
        d_state=cfg["d_state"], dim_inner=cfg["dim_inner"])
    ref = jax.block_until_ready(ref)

    assert out.shape == (B, num_patches, cfg["dim"]), out.shape
    assert bool(jnp.all(jnp.isfinite(out)))
    max_err = float(jnp.max(jnp.abs(out - ref)))
    # Loose tolerance: the kernel runs MXU matmuls in bf16 (f32 accumulate),
    # the reference is full f32.
    assert max_err < 5e-2, f"kernel deviates from f32 reference: max_err={max_err}"
    print("KERNEL_OK")
</pallas_src>

<mosaic_0001>
module attributes {stable_mosaic.version = 11 : i64} {
  func.func @_mamba_block_kernel(%arg0: i32, %arg1: memref<32x32xf32, #tpu.memory_space<vmem>>, %arg2: memref<1x32xf32, #tpu.memory_space<vmem>>, %arg3: memref<1x32xf32, #tpu.memory_space<vmem>>, %arg4: memref<32x32xbf16, #tpu.memory_space<vmem>>, %arg5: memref<1x32xf32, #tpu.memory_space<vmem>>, %arg6: memref<32x32xbf16, #tpu.memory_space<vmem>>, %arg7: memref<1x32xf32, #tpu.memory_space<vmem>>, %arg8: memref<32x32xbf16, #tpu.memory_space<vmem>>, %arg9: memref<1x32xf32, #tpu.memory_space<vmem>>, %arg10: memref<32x8xbf16, #tpu.memory_space<vmem>>, %arg11: memref<32x16xbf16, #tpu.memory_space<vmem>>, %arg12: memref<32x16xbf16, #tpu.memory_space<vmem>>, %arg13: memref<8x32xbf16, #tpu.memory_space<vmem>>, %arg14: memref<1x32xf32, #tpu.memory_space<vmem>>, %arg15: memref<1x512xf32, #tpu.memory_space<vmem>>, %arg16: memref<1x32xf32, #tpu.memory_space<vmem>>, %arg17: memref<32x512xbf16, #tpu.memory_space<vmem>>, %arg18: memref<16x512xbf16, #tpu.memory_space<vmem>>, %arg19: memref<512x32xbf16, #tpu.memory_space<vmem>>, %arg20: memref<32x32xf32, #tpu.memory_space<vmem>>) attributes {dimension_semantics = [#tpu.dimension_semantics<parallel>], iteration_bounds = array<i64: 1>, scalar_prefetch = 0 : i64, scratch_operands = 0 : i64, tpu.core_type = #tpu.core_type<tc>, window_params = [{transform_indices = @transform_0, window_bounds = array<i64: 32, 32>}, {pipeline_mode = #tpu.pipeline_mode<synchronous>, transform_indices = @transform_1, window_bounds = array<i64: 1, 32>}, {pipeline_mode = #tpu.pipeline_mode<synchronous>, transform_indices = @transform_2, window_bounds = array<i64: 1, 32>}, {pipeline_mode = #tpu.pipeline_mode<synchronous>, transform_indices = @transform_3, window_bounds = array<i64: 32, 32>}, {pipeline_mode = #tpu.pipeline_mode<synchronous>, transform_indices = @transform_4, window_bounds = array<i64: 1, 32>}, {pipeline_mode = #tpu.pipeline_mode<synchronous>, transform_indices = @transform_5, window_bounds = array<i64: 32, 32>}, {pipeline_mode = #tpu.pipeline_mode<synchronous>, transform_indices = @transform_6, window_bounds = array<i64: 1, 32>}, {pipeline_mode = #tpu.pipeline_mode<synchronous>, transform_indices = @transform_7, window_bounds = array<i64: 32, 32>}, {pipeline_mode = #tpu.pipeline_mode<synchronous>, transform_indices = @transform_8, window_bounds = array<i64: 1, 32>}, {pipeline_mode = #tpu.pipeline_mode<synchronous>, transform_indices = @transform_9, window_bounds = array<i64: 32, 8>}, {pipeline_mode = #tpu.pipeline_mode<synchronous>, transform_indices = @transform_10, window_bounds = array<i64: 32, 16>}, {pipeline_mode = #tpu.pipeline_mode<synchronous>, transform_indices = @transform_11, window_bounds = array<i64: 32, 16>}, {pipeline_mode = #tpu.pipeline_mode<synchronous>, transform_indices = @transform_12, window_bounds = array<i64: 8, 32>}, {pipeline_mode = #tpu.pipeline_mode<synchronous>, transform_indices = @transform_13, window_bounds = array<i64: 1, 32>}, {pipeline_mode = #tpu.pipeline_mode<synchronous>, transform_indices = @transform_14, window_bounds = array<i64: 1, 512>}, {pipeline_mode = #tpu.pipeline_mode<synchronous>, transform_indices = @transform_15, window_bounds = array<i64: 1, 32>}, {pipeline_mode = #tpu.pipeline_mode<synchronous>, transform_indices = @transform_16, window_bounds = array<i64: 32, 512>}, {pipeline_mode = #tpu.pipeline_mode<synchronous>, transform_indices = @transform_17, window_bounds = array<i64: 16, 512>}, {pipeline_mode = #tpu.pipeline_mode<synchronous>, transform_indices = @transform_18, window_bounds = array<i64: 512, 32>}, {transform_indices = @transform_19, window_bounds = array<i64: 32, 32>}]} {
    %c0 = arith.constant 0 : index
    %c0_0 = arith.constant 0 : index
    %0 = vector.load %arg1[%c0, %c0_0] : memref<32x32xf32, #tpu.memory_space<vmem>>, vector<32x32xf32>
    %cst = arith.constant dense<0.000000e+00> : vector<32xf32>
    %1 = vector.multi_reduction <add>, %0, %cst [1] : vector<32x32xf32> to vector<32xf32>
    %2 = vector.shape_cast %1 : vector<32xf32> to vector<32x1xf32>
    %cst_1 = arith.constant 3.200000e+01 : f32
    %3 = vector.broadcast %cst_1 : f32 to vector<32x1xf32>
    %4 = arith.divf %2, %3 : vector<32x1xf32>
    %5 = vector.broadcast %4 : vector<32x1xf32> to vector<32x32xf32>
    %6 = arith.subf %0, %5 : vector<32x32xf32>
    %7 = arith.mulf %6, %6 : vector<32x32xf32>
    %cst_2 = arith.constant dense<0.000000e+00> : vector<32xf32>
    %8 = vector.multi_reduction <add>, %7, %cst_2 [1] : vector<32x32xf32> to vector<32xf32>
    %9 = vector.shape_cast %8 : vector<32xf32> to vector<32x1xf32>
    %cst_3 = arith.constant 3.200000e+01 : f32
    %10 = vector.broadcast %cst_3 : f32 to vector<32x1xf32>
    %11 = arith.divf %9, %10 : vector<32x1xf32>
    %cst_4 = arith.constant 9.99999974E-6 : f32
    %12 = vector.broadcast %cst_4 : f32 to vector<32x1xf32>
    %13 = arith.addf %11, %12 : vector<32x1xf32>
    %14 = math.rsqrt %13 : vector<32x1xf32>
    %15 = vector.broadcast %14 : vector<32x1xf32> to vector<32x32xf32>
    %16 = arith.mulf %6, %15 : vector<32x32xf32>
    %c0_5 = arith.constant 0 : index
    %c0_6 = arith.constant 0 : index
    %17 = vector.load %arg2[%c0_5, %c0_6] : memref<1x32xf32, #tpu.memory_space<vmem>>, vector<1x32xf32>
    %18 = vector.broadcast %17 : vector<1x32xf32> to vector<32x32xf32>
    %19 = arith.mulf %16, %18 : vector<32x32xf32>
    %c0_7 = arith.constant 0 : index
    %c0_8 = arith.constant 0 : index
    %20 = vector.load %arg3[%c0_7, %c0_8] : memref<1x32xf32, #tpu.memory_space<vmem>>, vector<1x32xf32>
    %21 = vector.broadcast %20 : vector<1x32xf32> to vector<32x32xf32>
    %22 = arith.addf %19, %21 : vector<32x32xf32>
    %23 = arith.truncf %22 : vector<32x32xf32> to vector<32x32xbf16>
    %c0_9 = arith.constant 0 : index
    %c0_10 = arith.constant 0 : index
    %24 = vector.load %arg4[%c0_9, %c0_10] : memref<32x32xbf16, #tpu.memory_space<vmem>>, vector<32x32xbf16>
    %cst_11 = arith.constant dense<0.000000e+00> : vector<32x32xf32>
    %25 = tpu.matmul %23, %24, %cst_11 {dimension_numbers = #tpu.dot_dimension_numbers<[1], [0], [0], [1], [0, 0, 1, 1], [], []>} : vector<32x32xbf16>, vector<32x32xbf16>, vector<32x32xf32> -> vector<32x32xf32>
    %c0_12 = arith.constant 0 : index
    %c0_13 = arith.constant 0 : index
    %26 = vector.load %arg5[%c0_12, %c0_13] : memref<1x32xf32, #tpu.memory_space<vmem>>, vector<1x32xf32>
    %27 = vector.broadcast %26 : vector<1x32xf32> to vector<32x32xf32>
    %28 = arith.addf %25, %27 : vector<32x32xf32>
    %cst_14 = arith.constant 0.000000e+00 : f32
    %29 = vector.broadcast %cst_14 : f32 to vector<32x32xf32>
    %30 = arith.subf %29, %28 : vector<32x32xf32>
    %31 = math.exp %30 : vector<32x32xf32>
    %cst_15 = arith.constant 1.000000e+00 : f32
    %32 = vector.broadcast %cst_15 : f32 to vector<32x32xf32>
    %33 = arith.addf %32, %31 : vector<32x32xf32>
    %34 = tpu.reciprocal %33 {approx = true} : vector<32x32xf32> -> vector<32x32xf32>
    %35 = arith.mulf %28, %34 : vector<32x32xf32>
    %36 = arith.truncf %28 : vector<32x32xf32> to vector<32x32xbf16>
    %c0_16 = arith.constant 0 : index
    %c0_17 = arith.constant 0 : index
    %37 = vector.load %arg15[%c0_16, %c0_17] : memref<1x512xf32, #tpu.memory_space<vmem>>, vector<1x512xf32>
    %38 = math.exp %37 : vector<1x512xf32>
    %cst_18 = arith.constant 0.000000e+00 : f32
    %39 = vector.broadcast %cst_18 : f32 to vector<1x512xf32>
    %40 = arith.subf %39, %38 : vector<1x512xf32>
    %41 = tpu.iota {dimensions = array<i32: 0>} : vector<32x1xi32>
    %c16_i32 = arith.constant 16 : i32
    %c0_i32 = arith.constant 0 : i32
    %42 = arith.cmpi eq, %c16_i32, %c0_i32 : i32
    %c1_i32 = arith.constant 1 : i32
    %43 = arith.select %42, %c1_i32, %c16_i32 : i32
    %44 = vector.broadcast %43 : i32 to vector<32x1xi32>
    %45 = arith.remsi %41, %44 : vector<32x1xi32>
    %c0_i32_19 = arith.constant 0 : i32
    %46 = vector.broadcast %c0_i32_19 : i32 to vector<32x1xi32>
    %47 = arith.cmpi ne, %45, %46 : vector<32x1xi32>
    %c0_i32_20 = arith.constant 0 : i32
    %48 = vector.broadcast %c0_i32_20 : i32 to vector<32x1xi32>
    %49 = arith.cmpi slt, %45, %48 : vector<32x1xi32>
    %c0_i32_21 = arith.constant 0 : i32
    %50 = arith.cmpi slt, %43, %c0_i32_21 : i32
    %51 = vector.broadcast %50 : i1 to vector<32x1xi1>
    %52 = vector.broadcast %51 : vector<32x1xi1> to vector<32x1xi1>
    %53 = arith.xori %49, %52 : vector<32x1xi1>
    %54 = arith.andi %53, %47 : vector<32x1xi1>
    %55 = vector.broadcast %43 : i32 to vector<32x1xi32>
    %56 = arith.addi %45, %55 : vector<32x1xi32>
    %57 = arith.select %54, %56, %45 : vector<32x1xi1>, vector<32x1xi32>
    %c1_i32_22 = arith.constant 1 : i32
    %58 = vector.broadcast %c1_i32_22 : i32 to vector<32x1xi32>
    %59 = arith.cmpi sge, %57, %58 : vector<32x1xi32>
    %60 = arith.extui %59 : vector<32x1xi1> to vector<32x1xi32>
    %61 = arith.sitofp %60 : vector<32x1xi32> to vector<32x1xf32>
    %c2_i32 = arith.constant 2 : i32
    %62 = vector.broadcast %c2_i32 : i32 to vector<32x1xi32>
    %63 = arith.cmpi sge, %57, %62 : vector<32x1xi32>
    %64 = arith.extui %63 : vector<32x1xi1> to vector<32x1xi32>
    %65 = arith.sitofp %64 : vector<32x1xi32> to vector<32x1xf32>
    %c4_i32 = arith.constant 4 : i32
    %66 = vector.broadcast %c4_i32 : i32 to vector<32x1xi32>
    %67 = arith.cmpi sge, %57, %66 : vector<32x1xi32>
    %68 = arith.extui %67 : vector<32x1xi1> to vector<32x1xi32>
    %69 = arith.sitofp %68 : vector<32x1xi32> to vector<32x1xf32>
    %c8_i32 = arith.constant 8 : i32
    %70 = vector.broadcast %c8_i32 : i32 to vector<32x1xi32>
    %71 = arith.cmpi sge, %57, %70 : vector<32x1xi32>
    %72 = arith.extui %71 : vector<32x1xi1> to vector<32x1xi32>
    %73 = arith.sitofp %72 : vector<32x1xi32> to vector<32x1xf32>
    %c0_23 = arith.constant 0 : index
    %c0_24 = arith.constant 0 : index
    %74 = vector.load %arg6[%c0_23, %c0_24] : memref<32x32xbf16, #tpu.memory_space<vmem>>, vector<32x32xbf16>
    %cst_25 = arith.constant dense<0.000000e+00> : vector<32x32xf32>
    %75 = tpu.matmul %36, %74, %cst_25 {dimension_numbers = #tpu.dot_dimension_numbers<[1], [0], [0], [1], [0, 0, 1, 1], [], []>} : vector<32x32xbf16>, vector<32x32xbf16>, vector<32x32xf32> -> vector<32x32xf32>
    %c0_26 = arith.constant 0 : index
    %c0_27 = arith.constant 0 : index
    %76 = vector.load %arg7[%c0_26, %c0_27] : memref<1x32xf32, #tpu.memory_space<vmem>>, vector<1x32xf32>
    %77 = vector.broadcast %76 : vector<1x32xf32> to vector<32x32xf32>
    %78 = arith.addf %75, %77 : vector<32x32xf32>
    %cst_28 = arith.constant 2.000000e+01 : f32
    %79 = vector.broadcast %cst_28 : f32 to vector<32x32xf32>
    %80 = arith.minimumf %78, %79 : vector<32x32xf32>
    %cst_29 = arith.constant 2.000000e+01 : f32
    %81 = vector.broadcast %cst_29 : f32 to vector<32x32xf32>
    %82 = arith.cmpf ogt, %78, %81 : vector<32x32xf32>
    %83 = math.exp %80 : vector<32x32xf32>
    %cst_30 = arith.constant 1.000000e+00 : f32
    %84 = vector.broadcast %cst_30 : f32 to vector<32x32xf32>
    %85 = arith.addf %84, %83 : vector<32x32xf32>
    %86 = math.log %85 : vector<32x32xf32>
    %87 = arith.select %82, %78, %86 : vector<32x32xi1>, vector<32x32xf32>
    %88 = arith.truncf %87 : vector<32x32xf32> to vector<32x32xbf16>
    %c0_31 = arith.constant 0 : index
    %c0_32 = arith.constant 0 : index
    %89 = vector.load %arg10[%c0_31, %c0_32] : memref<32x8xbf16, #tpu.memory_space<vmem>>, vector<32x8xbf16>
    %cst_33 = arith.constant dense<0.000000e+00> : vector<32x8xf32>
    %90 = tpu.matmul %88, %89, %cst_33 {dimension_numbers = #tpu.dot_dimension_numbers<[1], [0], [0], [1], [0, 0, 1, 1], [], []>} : vector<32x32xbf16>, vector<32x8xbf16>, vector<32x8xf32> -> vector<32x8xf32>
    %c0_34 = arith.constant 0 : index
    %c0_35 = arith.constant 0 : index
    %91 = vector.load %arg11[%c0_34, %c0_35] : memref<32x16xbf16, #tpu.memory_space<vmem>>, vector<32x16xbf16>
    %cst_36 = arith.constant dense<0.000000e+00> : vector<32x16xf32>
    %92 = tpu.matmul %88, %91, %cst_36 {dimension_numbers = #tpu.dot_dimension_numbers<[1], [0], [0], [1], [0, 0, 1, 1], [], []>} : vector<32x32xbf16>, vector<32x16xbf16>, vector<32x16xf32> -> vector<32x16xf32>
    %c0_37 = arith.constant 0 : index
    %c0_38 = arith.constant 0 : index
    %93 = vector.load %arg12[%c0_37, %c0_38] : memref<32x16xbf16, #tpu.memory_space<vmem>>, vector<32x16xbf16>
    %cst_39 = arith.constant dense<0.000000e+00> : vector<32x16xf32>
    %94 = tpu.matmul %88, %93, %cst_39 {dimension_numbers = #tpu.dot_dimension_numbers<[1], [0], [0], [1], [0, 0, 1, 1], [], []>} : vector<32x32xbf16>, vector<32x16xbf16>, vector<32x16xf32> -> vector<32x16xf32>
    %95 = arith.truncf %90 : vector<32x8xf32> to vector<32x8xbf16>
    %c0_40 = arith.constant 0 : index
    %c0_41 = arith.constant 0 : index
    %96 = vector.load %arg13[%c0_40, %c0_41] : memref<8x32xbf16, #tpu.memory_space<vmem>>, vector<8x32xbf16>
    %cst_42 = arith.constant dense<0.000000e+00> : vector<32x32xf32>
    %97 = tpu.matmul %95, %96, %cst_42 {dimension_numbers = #tpu.dot_dimension_numbers<[1], [0], [0], [1], [0, 0, 1, 1], [], []>} : vector<32x8xbf16>, vector<8x32xbf16>, vector<32x32xf32> -> vector<32x32xf32>
    %c0_43 = arith.constant 0 : index
    %c0_44 = arith.constant 0 : index
    %98 = vector.load %arg14[%c0_43, %c0_44] : memref<1x32xf32, #tpu.memory_space<vmem>>, vector<1x32xf32>
    %99 = vector.broadcast %98 : vector<1x32xf32> to vector<32x32xf32>
    %100 = arith.addf %97, %99 : vector<32x32xf32>
    %cst_45 = arith.constant 2.000000e+01 : f32
    %101 = vector.broadcast %cst_45 : f32 to vector<32x32xf32>
    %102 = arith.minimumf %100, %101 : vector<32x32xf32>
    %cst_46 = arith.constant 2.000000e+01 : f32
    %103 = vector.broadcast %cst_46 : f32 to vector<32x32xf32>
    %104 = arith.cmpf ogt, %100, %103 : vector<32x32xf32>
    %105 = math.exp %102 : vector<32x32xf32>
    %cst_47 = arith.constant 1.000000e+00 : f32
    %106 = vector.broadcast %cst_47 : f32 to vector<32x32xf32>
    %107 = arith.addf %106, %105 : vector<32x32xf32>
    %108 = math.log %107 : vector<32x32xf32>
    %109 = arith.select %104, %100, %108 : vector<32x32xi1>, vector<32x32xf32>
    %110 = arith.truncf %109 : vector<32x32xf32> to vector<32x32xbf16>
    %c0_48 = arith.constant 0 : index
    %c0_49 = arith.constant 0 : index
    %111 = vector.load %arg17[%c0_48, %c0_49] : memref<32x512xbf16, #tpu.memory_space<vmem>>, vector<32x512xbf16>
    %cst_50 = arith.constant dense<0.000000e+00> : vector<32x512xf32>
    %112 = tpu.matmul %110, %111, %cst_50 {dimension_numbers = #tpu.dot_dimension_numbers<[1], [0], [0], [1], [0, 0, 1, 1], [], []>} : vector<32x32xbf16>, vector<32x512xbf16>, vector<32x512xf32> -> vector<32x512xf32>
    %113 = arith.mulf %109, %87 : vector<32x32xf32>
    %114 = arith.truncf %113 : vector<32x32xf32> to vector<32x32xbf16>
    %c0_51 = arith.constant 0 : index
    %c0_52 = arith.constant 0 : index
    %115 = vector.load %arg17[%c0_51, %c0_52] : memref<32x512xbf16, #tpu.memory_space<vmem>>, vector<32x512xbf16>
    %cst_53 = arith.constant dense<0.000000e+00> : vector<32x512xf32>
    %116 = tpu.matmul %114, %115, %cst_53 {dimension_numbers = #tpu.dot_dimension_numbers<[1], [0], [0], [1], [0, 0, 1, 1], [], []>} : vector<32x32xbf16>, vector<32x512xbf16>, vector<32x512xf32> -> vector<32x512xf32>
    %117 = arith.truncf %92 : vector<32x16xf32> to vector<32x16xbf16>
    %c0_54 = arith.constant 0 : index
    %c0_55 = arith.constant 0 : index
    %118 = vector.load %arg18[%c0_54, %c0_55] : memref<16x512xbf16, #tpu.memory_space<vmem>>, vector<16x512xbf16>
    %cst_56 = arith.constant dense<0.000000e+00> : vector<32x512xf32>
    %119 = tpu.matmul %117, %118, %cst_56 {dimension_numbers = #tpu.dot_dimension_numbers<[1], [0], [0], [1], [0, 0, 1, 1], [], []>} : vector<32x16xbf16>, vector<16x512xbf16>, vector<32x512xf32> -> vector<32x512xf32>
    %120 = arith.truncf %94 : vector<32x16xf32> to vector<32x16xbf16>
    %c0_57 = arith.constant 0 : index
    %c0_58 = arith.constant 0 : index
    %121 = vector.load %arg18[%c0_57, %c0_58] : memref<16x512xbf16, #tpu.memory_space<vmem>>, vector<16x512xbf16>
    %cst_59 = arith.constant dense<0.000000e+00> : vector<32x512xf32>
    %122 = tpu.matmul %120, %121, %cst_59 {dimension_numbers = #tpu.dot_dimension_numbers<[1], [0], [0], [1], [0, 0, 1, 1], [], []>} : vector<32x16xbf16>, vector<16x512xbf16>, vector<32x512xf32> -> vector<32x512xf32>
    %123 = vector.broadcast %40 : vector<1x512xf32> to vector<32x512xf32>
    %124 = arith.mulf %112, %123 : vector<32x512xf32>
    %125 = math.exp %124 : vector<32x512xf32>
    %126 = arith.mulf %116, %119 : vector<32x512xf32>
    %c1_i32_60 = arith.constant 1 : i32
    %127 = tpu.dynamic_rotate %125 by %c1_i32_60 dim 0 : vector<32x512xf32>, i32 -> vector<32x512xf32>
    %128 = vector.broadcast %61 : vector<32x1xf32> to vector<32x512xf32>
    %129 = arith.mulf %127, %128 : vector<32x512xf32>
    %cst_61 = arith.constant 1.000000e+00 : f32
    %130 = vector.broadcast %cst_61 : f32 to vector<32x1xf32>
    %131 = arith.subf %130, %61 : vector<32x1xf32>
    %132 = vector.broadcast %131 : vector<32x1xf32> to vector<32x512xf32>
    %133 = arith.addf %129, %132 : vector<32x512xf32>
    %c1_i32_62 = arith.constant 1 : i32
    %134 = tpu.dynamic_rotate %126 by %c1_i32_62 dim 0 : vector<32x512xf32>, i32 -> vector<32x512xf32>
    %135 = vector.broadcast %61 : vector<32x1xf32> to vector<32x512xf32>
    %136 = arith.mulf %134, %135 : vector<32x512xf32>
    %137 = arith.mulf %125, %136 : vector<32x512xf32>
    %138 = arith.addf %126, %137 : vector<32x512xf32>
    %139 = arith.mulf %125, %133 : vector<32x512xf32>
    %c2_i32_63 = arith.constant 2 : i32
    %140 = tpu.dynamic_rotate %139 by %c2_i32_63 dim 0 : vector<32x512xf32>, i32 -> vector<32x512xf32>
    %141 = vector.broadcast %65 : vector<32x1xf32> to vector<32x512xf32>
    %142 = arith.mulf %140, %141 : vector<32x512xf32>
    %cst_64 = arith.constant 1.000000e+00 : f32
    %143 = vector.broadcast %cst_64 : f32 to vector<32x1xf32>
    %144 = arith.subf %143, %65 : vector<32x1xf32>
    %145 = vector.broadcast %144 : vector<32x1xf32> to vector<32x512xf32>
    %146 = arith.addf %142, %145 : vector<32x512xf32>
    %c2_i32_65 = arith.constant 2 : i32
    %147 = tpu.dynamic_rotate %138 by %c2_i32_65 dim 0 : vector<32x512xf32>, i32 -> vector<32x512xf32>
    %148 = vector.broadcast %65 : vector<32x1xf32> to vector<32x512xf32>
    %149 = arith.mulf %147, %148 : vector<32x512xf32>
    %150 = arith.mulf %139, %149 : vector<32x512xf32>
    %151 = arith.addf %138, %150 : vector<32x512xf32>
    %152 = arith.mulf %139, %146 : vector<32x512xf32>
    %c4_i32_66 = arith.constant 4 : i32
    %153 = tpu.dynamic_rotate %152 by %c4_i32_66 dim 0 : vector<32x512xf32>, i32 -> vector<32x512xf32>
    %154 = vector.broadcast %69 : vector<32x1xf32> to vector<32x512xf32>
    %155 = arith.mulf %153, %154 : vector<32x512xf32>
    %cst_67 = arith.constant 1.000000e+00 : f32
    %156 = vector.broadcast %cst_67 : f32 to vector<32x1xf32>
    %157 = arith.subf %156, %69 : vector<32x1xf32>
    %158 = vector.broadcast %157 : vector<32x1xf32> to vector<32x512xf32>
    %159 = arith.addf %155, %158 : vector<32x512xf32>
    %c4_i32_68 = arith.constant 4 : i32
    %160 = tpu.dynamic_rotate %151 by %c4_i32_68 dim 0 : vector<32x512xf32>, i32 -> vector<32x512xf32>
    %161 = vector.broadcast %69 : vector<32x1xf32> to vector<32x512xf32>
    %162 = arith.mulf %160, %161 : vector<32x512xf32>
    %163 = arith.mulf %152, %162 : vector<32x512xf32>
    %164 = arith.addf %151, %163 : vector<32x512xf32>
    %165 = arith.mulf %152, %159 : vector<32x512xf32>
    %c8_i32_69 = arith.constant 8 : i32
    %166 = tpu.dynamic_rotate %164 by %c8_i32_69 dim 0 : vector<32x512xf32>, i32 -> vector<32x512xf32>
    %167 = vector.broadcast %73 : vector<32x1xf32> to vector<32x512xf32>
    %168 = arith.mulf %166, %167 : vector<32x512xf32>
    %169 = arith.mulf %165, %168 : vector<32x512xf32>
    %170 = arith.addf %164, %169 : vector<32x512xf32>
    %171 = arith.mulf %170, %122 : vector<32x512xf32>
    %172 = arith.truncf %171 : vector<32x512xf32> to vector<32x512xbf16>
    %c0_70 = arith.constant 0 : index
    %c0_71 = arith.constant 0 : index
    %173 = vector.load %arg19[%c0_70, %c0_71] : memref<512x32xbf16, #tpu.memory_space<vmem>>, vector<512x32xbf16>
    %cst_72 = arith.constant dense<0.000000e+00> : vector<32x32xf32>
    %174 = tpu.matmul %172, %173, %cst_72 {dimension_numbers = #tpu.dot_dimension_numbers<[1], [0], [0], [1], [0, 0, 1, 1], [], []>} : vector<32x512xbf16>, vector<512x32xbf16>, vector<32x32xf32> -> vector<32x32xf32>
    %c0_73 = arith.constant 0 : index
    %c0_74 = arith.constant 0 : index
    %175 = vector.load %arg16[%c0_73, %c0_74] : memref<1x32xf32, #tpu.memory_space<vmem>>, vector<1x32xf32>
    %176 = vector.broadcast %175 : vector<1x32xf32> to vector<32x32xf32>
    %177 = arith.mulf %176, %87 : vector<32x32xf32>
    %178 = arith.addf %174, %177 : vector<32x32xf32>
    %c0_75 = arith.constant 0 : index
    %c0_76 = arith.constant 0 : index
    %179 = vector.load %arg8[%c0_75, %c0_76] : memref<32x32xbf16, #tpu.memory_space<vmem>>, vector<32x32xbf16>
    %cst_77 = arith.constant dense<0.000000e+00> : vector<32x32xf32>
    %180 = tpu.matmul %36, %179, %cst_77 {dimension_numbers = #tpu.dot_dimension_numbers<[1], [0], [0], [1], [0, 0, 1, 1], [], []>} : vector<32x32xbf16>, vector<32x32xbf16>, vector<32x32xf32> -> vector<32x32xf32>
    %c0_78 = arith.constant 0 : index
    %c0_79 = arith.constant 0 : index
    %181 = vector.load %arg9[%c0_78, %c0_79] : memref<1x32xf32, #tpu.memory_space<vmem>>, vector<1x32xf32>
    %182 = vector.broadcast %181 : vector<1x32xf32> to vector<32x32xf32>
    %183 = arith.addf %180, %182 : vector<32x32xf32>
    %cst_80 = arith.constant 2.000000e+01 : f32
    %184 = vector.broadcast %cst_80 : f32 to vector<32x32xf32>
    %185 = arith.minimumf %183, %184 : vector<32x32xf32>
    %cst_81 = arith.constant 2.000000e+01 : f32
    %186 = vector.broadcast %cst_81 : f32 to vector<32x32xf32>
    %187 = arith.cmpf ogt, %183, %186 : vector<32x32xf32>
    %188 = math.exp %185 : vector<32x32xf32>
    %cst_82 = arith.constant 1.000000e+00 : f32
    %189 = vector.broadcast %cst_82 : f32 to vector<32x32xf32>
    %190 = arith.addf %189, %188 : vector<32x32xf32>
    %191 = math.log %190 : vector<32x32xf32>
    %192 = arith.select %187, %183, %191 : vector<32x32xi1>, vector<32x32xf32>
    %193 = arith.truncf %192 : vector<32x32xf32> to vector<32x32xbf16>
    %c0_83 = arith.constant 0 : index
    %c0_84 = arith.constant 0 : index
    %194 = vector.load %arg10[%c0_83, %c0_84] : memref<32x8xbf16, #tpu.memory_space<vmem>>, vector<32x8xbf16>
    %cst_85 = arith.constant dense<0.000000e+00> : vector<32x8xf32>
    %195 = tpu.matmul %193, %194, %cst_85 {dimension_numbers = #tpu.dot_dimension_numbers<[1], [0], [0], [1], [0, 0, 1, 1], [], []>} : vector<32x32xbf16>, vector<32x8xbf16>, vector<32x8xf32> -> vector<32x8xf32>
    %c0_86 = arith.constant 0 : index
    %c0_87 = arith.constant 0 : index
    %196 = vector.load %arg11[%c0_86, %c0_87] : memref<32x16xbf16, #tpu.memory_space<vmem>>, vector<32x16xbf16>
    %cst_88 = arith.constant dense<0.000000e+00> : vector<32x16xf32>
    %197 = tpu.matmul %193, %196, %cst_88 {dimension_numbers = #tpu.dot_dimension_numbers<[1], [0], [0], [1], [0, 0, 1, 1], [], []>} : vector<32x32xbf16>, vector<32x16xbf16>, vector<32x16xf32> -> vector<32x16xf32>
    %c0_89 = arith.constant 0 : index
    %c0_90 = arith.constant 0 : index
    %198 = vector.load %arg12[%c0_89, %c0_90] : memref<32x16xbf16, #tpu.memory_space<vmem>>, vector<32x16xbf16>
    %cst_91 = arith.constant dense<0.000000e+00> : vector<32x16xf32>
    %199 = tpu.matmul %193, %198, %cst_91 {dimension_numbers = #tpu.dot_dimension_numbers<[1], [0], [0], [1], [0, 0, 1, 1], [], []>} : vector<32x32xbf16>, vector<32x16xbf16>, vector<32x16xf32> -> vector<32x16xf32>
    %200 = arith.truncf %195 : vector<32x8xf32> to vector<32x8xbf16>
    %c0_92 = arith.constant 0 : index
    %c0_93 = arith.constant 0 : index
    %201 = vector.load %arg13[%c0_92, %c0_93] : memref<8x32xbf16, #tpu.memory_space<vmem>>, vector<8x32xbf16>
    %cst_94 = arith.constant dense<0.000000e+00> : vector<32x32xf32>
    %202 = tpu.matmul %200, %201, %cst_94 {dimension_numbers = #tpu.dot_dimension_numbers<[1], [0], [0], [1], [0, 0, 1, 1], [], []>} : vector<32x8xbf16>, vector<8x32xbf16>, vector<32x32xf32> -> vector<32x32xf32>
    %c0_95 = arith.constant 0 : index
    %c0_96 = arith.constant 0 : index
    %203 = vector.load %arg14[%c0_95, %c0_96] : memref<1x32xf32, #tpu.memory_space<vmem>>, vector<1x32xf32>
    %204 = vector.broadcast %203 : vector<1x32xf32> to vector<32x32xf32>
    %205 = arith.addf %202, %204 : vector<32x32xf32>
    %cst_97 = arith.constant 2.000000e+01 : f32
    %206 = vector.broadcast %cst_97 : f32 to vector<32x32xf32>
    %207 = arith.minimumf %205, %206 : vector<32x32xf32>
    %cst_98 = arith.constant 2.000000e+01 : f32
    %208 = vector.broadcast %cst_98 : f32 to vector<32x32xf32>
    %209 = arith.cmpf ogt, %205, %208 : vector<32x32xf32>
    %210 = math.exp %207 : vector<32x32xf32>
    %cst_99 = arith.constant 1.000000e+00 : f32
    %211 = vector.broadcast %cst_99 : f32 to vector<32x32xf32>
    %212 = arith.addf %211, %210 : vector<32x32xf32>
    %213 = math.log %212 : vector<32x32xf32>
    %214 = arith.select %209, %205, %213 : vector<32x32xi1>, vector<32x32xf32>
    %215 = arith.truncf %214 : vector<32x32xf32> to vector<32x32xbf16>
    %c0_100 = arith.constant 0 : index
    %c0_101 = arith.constant 0 : index
    %216 = vector.load %arg17[%c0_100, %c0_101] : memref<32x512xbf16, #tpu.memory_space<vmem>>, vector<32x512xbf16>
    %cst_102 = arith.constant dense<0.000000e+00> : vector<32x512xf32>
    %217 = tpu.matmul %215, %216, %cst_102 {dimension_numbers = #tpu.dot_dimension_numbers<[1], [0], [0], [1], [0, 0, 1, 1], [], []>} : vector<32x32xbf16>, vector<32x512xbf16>, vector<32x512xf32> -> vector<32x512xf32>
    %218 = arith.mulf %214, %192 : vector<32x32xf32>
    %219 = arith.truncf %218 : vector<32x32xf32> to vector<32x32xbf16>
    %c0_103 = arith.constant 0 : index
    %c0_104 = arith.constant 0 : index
    %220 = vector.load %arg17[%c0_103, %c0_104] : memref<32x512xbf16, #tpu.memory_space<vmem>>, vector<32x512xbf16>
    %cst_105 = arith.constant dense<0.000000e+00> : vector<32x512xf32>
    %221 = tpu.matmul %219, %220, %cst_105 {dimension_numbers = #tpu.dot_dimension_numbers<[1], [0], [0], [1], [0, 0, 1, 1], [], []>} : vector<32x32xbf16>, vector<32x512xbf16>, vector<32x512xf32> -> vector<32x512xf32>
    %222 = arith.truncf %197 : vector<32x16xf32> to vector<32x16xbf16>
    %c0_106 = arith.constant 0 : index
    %c0_107 = arith.constant 0 : index
    %223 = vector.load %arg18[%c0_106, %c0_107] : memref<16x512xbf16, #tpu.memory_space<vmem>>, vector<16x512xbf16>
    %cst_108 = arith.constant dense<0.000000e+00> : vector<32x512xf32>
    %224 = tpu.matmul %222, %223, %cst_108 {dimension_numbers = #tpu.dot_dimension_numbers<[1], [0], [0], [1], [0, 0, 1, 1], [], []>} : vector<32x16xbf16>, vector<16x512xbf16>, vector<32x512xf32> -> vector<32x512xf32>
    %225 = arith.truncf %199 : vector<32x16xf32> to vector<32x16xbf16>
    %c0_109 = arith.constant 0 : index
    %c0_110 = arith.constant 0 : index
    %226 = vector.load %arg18[%c0_109, %c0_110] : memref<16x512xbf16, #tpu.memory_space<vmem>>, vector<16x512xbf16>
    %cst_111 = arith.constant dense<0.000000e+00> : vector<32x512xf32>
    %227 = tpu.matmul %225, %226, %cst_111 {dimension_numbers = #tpu.dot_dimension_numbers<[1], [0], [0], [1], [0, 0, 1, 1], [], []>} : vector<32x16xbf16>, vector<16x512xbf16>, vector<32x512xf32> -> vector<32x512xf32>
    %228 = vector.broadcast %40 : vector<1x512xf32> to vector<32x512xf32>
    %229 = arith.mulf %217, %228 : vector<32x512xf32>
    %230 = math.exp %229 : vector<32x512xf32>
    %231 = arith.mulf %221, %224 : vector<32x512xf32>
    %c1_i32_112 = arith.constant 1 : i32
    %232 = tpu.dynamic_rotate %230 by %c1_i32_112 dim 0 : vector<32x512xf32>, i32 -> vector<32x512xf32>
    %233 = vector.broadcast %61 : vector<32x1xf32> to vector<32x512xf32>
    %234 = arith.mulf %232, %233 : vector<32x512xf32>
    %cst_113 = arith.constant 1.000000e+00 : f32
    %235 = vector.broadcast %cst_113 : f32 to vector<32x1xf32>
    %236 = arith.subf %235, %61 : vector<32x1xf32>
    %237 = vector.broadcast %236 : vector<32x1xf32> to vector<32x512xf32>
    %238 = arith.addf %234, %237 : vector<32x512xf32>
    %c1_i32_114 = arith.constant 1 : i32
    %239 = tpu.dynamic_rotate %231 by %c1_i32_114 dim 0 : vector<32x512xf32>, i32 -> vector<32x512xf32>
    %240 = vector.broadcast %61 : vector<32x1xf32> to vector<32x512xf32>
    %241 = arith.mulf %239, %240 : vector<32x512xf32>
    %242 = arith.mulf %230, %241 : vector<32x512xf32>
    %243 = arith.addf %231, %242 : vector<32x512xf32>
    %244 = arith.mulf %230, %238 : vector<32x512xf32>
    %c2_i32_115 = arith.constant 2 : i32
    %245 = tpu.dynamic_rotate %244 by %c2_i32_115 dim 0 : vector<32x512xf32>, i32 -> vector<32x512xf32>
    %246 = vector.broadcast %65 : vector<32x1xf32> to vector<32x512xf32>
    %247 = arith.mulf %245, %246 : vector<32x512xf32>
    %cst_116 = arith.constant 1.000000e+00 : f32
    %248 = vector.broadcast %cst_116 : f32 to vector<32x1xf32>
    %249 = arith.subf %248, %65 : vector<32x1xf32>
    %250 = vector.broadcast %249 : vector<32x1xf32> to vector<32x512xf32>
    %251 = arith.addf %247, %250 : vector<32x512xf32>
    %c2_i32_117 = arith.constant 2 : i32
    %252 = tpu.dynamic_rotate %243 by %c2_i32_117 dim 0 : vector<32x512xf32>, i32 -> vector<32x512xf32>
    %253 = vector.broadcast %65 : vector<32x1xf32> to vector<32x512xf32>
    %254 = arith.mulf %252, %253 : vector<32x512xf32>
    %255 = arith.mulf %244, %254 : vector<32x512xf32>
    %256 = arith.addf %243, %255 : vector<32x512xf32>
    %257 = arith.mulf %244, %251 : vector<32x512xf32>
    %c4_i32_118 = arith.constant 4 : i32
    %258 = tpu.dynamic_rotate %257 by %c4_i32_118 dim 0 : vector<32x512xf32>, i32 -> vector<32x512xf32>
    %259 = vector.broadcast %69 : vector<32x1xf32> to vector<32x512xf32>
    %260 = arith.mulf %258, %259 : vector<32x512xf32>
    %cst_119 = arith.constant 1.000000e+00 : f32
    %261 = vector.broadcast %cst_119 : f32 to vector<32x1xf32>
    %262 = arith.subf %261, %69 : vector<32x1xf32>
    %263 = vector.broadcast %262 : vector<32x1xf32> to vector<32x512xf32>
    %264 = arith.addf %260, %263 : vector<32x512xf32>
    %c4_i32_120 = arith.constant 4 : i32
    %265 = tpu.dynamic_rotate %256 by %c4_i32_120 dim 0 : vector<32x512xf32>, i32 -> vector<32x512xf32>
    %266 = vector.broadcast %69 : vector<32x1xf32> to vector<32x512xf32>
    %267 = arith.mulf %265, %266 : vector<32x512xf32>
    %268 = arith.mulf %257, %267 : vector<32x512xf32>
    %269 = arith.addf %256, %268 : vector<32x512xf32>
    %270 = arith.mulf %257, %264 : vector<32x512xf32>
    %c8_i32_121 = arith.constant 8 : i32
    %271 = tpu.dynamic_rotate %269 by %c8_i32_121 dim 0 : vector<32x512xf32>, i32 -> vector<32x512xf32>
    %272 = vector.broadcast %73 : vector<32x1xf32> to vector<32x512xf32>
    %273 = arith.mulf %271, %272 : vector<32x512xf32>
    %274 = arith.mulf %270, %273 : vector<32x512xf32>
    %275 = arith.addf %269, %274 : vector<32x512xf32>
    %276 = arith.mulf %275, %227 : vector<32x512xf32>
    %277 = arith.truncf %276 : vector<32x512xf32> to vector<32x512xbf16>
    %c0_122 = arith.constant 0 : index
    %c0_123 = arith.constant 0 : index
    %278 = vector.load %arg19[%c0_122, %c0_123] : memref<512x32xbf16, #tpu.memory_space<vmem>>, vector<512x32xbf16>
    %cst_124 = arith.constant dense<0.000000e+00> : vector<32x32xf32>
    %279 = tpu.matmul %277, %278, %cst_124 {dimension_numbers = #tpu.dot_dimension_numbers<[1], [0], [0], [1], [0, 0, 1, 1], [], []>} : vector<32x512xbf16>, vector<512x32xbf16>, vector<32x32xf32> -> vector<32x32xf32>
    %c0_125 = arith.constant 0 : index
    %c0_126 = arith.constant 0 : index
    %280 = vector.load %arg16[%c0_125, %c0_126] : memref<1x32xf32, #tpu.memory_space<vmem>>, vector<1x32xf32>
    %281 = vector.broadcast %280 : vector<1x32xf32> to vector<32x32xf32>
    %282 = arith.mulf %281, %192 : vector<32x32xf32>
    %283 = arith.addf %279, %282 : vector<32x32xf32>
    %284 = arith.addf %178, %283 : vector<32x32xf32>
    %285 = arith.mulf %284, %35 : vector<32x32xf32>
    %286 = arith.addf %285, %0 : vector<32x32xf32>
    %c0_127 = arith.constant 0 : index
    %c0_128 = arith.constant 0 : index
    %287 = vector.load %arg20[%c0_127, %c0_128] : memref<32x32xf32, #tpu.memory_space<vmem>>, vector<32x32xf32>
    tpu.vector_store %arg20[%c0_127, %c0_128], %286 {strides = array<i32>} : memref<32x32xf32, #tpu.memory_space<vmem>>, vector<32x32xf32>,
    return
  }
  func.func @transform_0(%arg0: i32) -> (i32, i32) {
    %c0_i32 = arith.constant 0 : i32
    %c0_i32_0 = arith.constant 0 : i32
    return %arg0, %c0_i32 : i32, i32
  }
  func.func @transform_1(%arg0: i32) -> (i32, i32) {
    %c0_i32 = arith.constant 0 : i32
    %c0_i32_0 = arith.constant 0 : i32
    %c0_i32_1 = arith.constant 0 : i32
    return %c0_i32, %c0_i32_0 : i32, i32
  }
  func.func @transform_2(%arg0: i32) -> (i32, i32) {
    %c0_i32 = arith.constant 0 : i32
    %c0_i32_0 = arith.constant 0 : i32
    %c0_i32_1 = arith.constant 0 : i32
    return %c0_i32, %c0_i32_0 : i32, i32
  }
  func.func @transform_3(%arg0: i32) -> (i32, i32) {
    %c0_i32 = arith.constant 0 : i32
    %c0_i32_0 = arith.constant 0 : i32
    %c0_i32_1 = arith.constant 0 : i32
    return %c0_i32, %c0_i32_0 : i32, i32
  }
  func.func @transform_4(%arg0: i32) -> (i32, i32) {
    %c0_i32 = arith.constant 0 : i32
    %c0_i32_0 = arith.constant 0 : i32
    %c0_i32_1 = arith.constant 0 : i32
    return %c0_i32, %c0_i32_0 : i32, i32
  }
  func.func @transform_5(%arg0: i32) -> (i32, i32) {
    %c0_i32 = arith.constant 0 : i32
    %c0_i32_0 = arith.constant 0 : i32
    %c0_i32_1 = arith.constant 0 : i32
    return %c0_i32, %c0_i32_0 : i32, i32
  }
  func.func @transform_6(%arg0: i32) -> (i32, i32) {
    %c0_i32 = arith.constant 0 : i32
    %c0_i32_0 = arith.constant 0 : i32
    %c0_i32_1 = arith.constant 0 : i32
    return %c0_i32, %c0_i32_0 : i32, i32
  }
  func.func @transform_7(%arg0: i32) -> (i32, i32) {
    %c0_i32 = arith.constant 0 : i32
    %c0_i32_0 = arith.constant 0 : i32
    %c0_i32_1 = arith.constant 0 : i32
    return %c0_i32, %c0_i32_0 : i32, i32
  }
  func.func @transform_8(%arg0: i32) -> (i32, i32) {
    %c0_i32 = arith.constant 0 : i32
    %c0_i32_0 = arith.constant 0 : i32
    %c0_i32_1 = arith.constant 0 : i32
    return %c0_i32, %c0_i32_0 : i32, i32
  }
  func.func @transform_9(%arg0: i32) -> (i32, i32) {
    %c0_i32 = arith.constant 0 : i32
    %c0_i32_0 = arith.constant 0 : i32
    %c0_i32_1 = arith.constant 0 : i32
    return %c0_i32, %c0_i32_0 : i32, i32
  }
  func.func @transform_10(%arg0: i32) -> (i32, i32) {
    %c0_i32 = arith.constant 0 : i32
    %c0_i32_0 = arith.constant 0 : i32
    %c0_i32_1 = arith.constant 0 : i32
    return %c0_i32, %c0_i32_0 : i32, i32
  }
  func.func @transform_11(%arg0: i32) -> (i32, i32) {
    %c0_i32 = arith.constant 0 : i32
    %c0_i32_0 = arith.constant 0 : i32
    %c0_i32_1 = arith.constant 0 : i32
    return %c0_i32, %c0_i32_0 : i32, i32
  }
  func.func @transform_12(%arg0: i32) -> (i32, i32) {
    %c0_i32 = arith.constant 0 : i32
    %c0_i32_0 = arith.constant 0 : i32
    %c0_i32_1 = arith.constant 0 : i32
    return %c0_i32, %c0_i32_0 : i32, i32
  }
  func.func @transform_13(%arg0: i32) -> (i32, i32) {
    %c0_i32 = arith.constant 0 : i32
    %c0_i32_0 = arith.constant 0 : i32
    %c0_i32_1 = arith.constant 0 : i32
    return %c0_i32, %c0_i32_0 : i32, i32
  }
  func.func @transform_14(%arg0: i32) -> (i32, i32) {
    %c0_i32 = arith.constant 0 : i32
    %c0_i32_0 = arith.constant 0 : i32
    %c0_i32_1 = arith.constant 0 : i32
    return %c0_i32, %c0_i32_0 : i32, i32
  }
  func.func @transform_15(%arg0: i32) -> (i32, i32) {
    %c0_i32 = arith.constant 0 : i32
    %c0_i32_0 = arith.constant 0 : i32
    %c0_i32_1 = arith.constant 0 : i32
    return %c0_i32, %c0_i32_0 : i32, i32
  }
  func.func @transform_16(%arg0: i32) -> (i32, i32) {
    %c0_i32 = arith.constant 0 : i32
    %c0_i32_0 = arith.constant 0 : i32
    %c0_i32_1 = arith.constant 0 : i32
    return %c0_i32, %c0_i32_0 : i32, i32
  }
  func.func @transform_17(%arg0: i32) -> (i32, i32) {
    %c0_i32 = arith.constant 0 : i32
    %c0_i32_0 = arith.constant 0 : i32
    %c0_i32_1 = arith.constant 0 : i32
    return %c0_i32, %c0_i32_0 : i32, i32
  }
  func.func @transform_18(%arg0: i32) -> (i32, i32) {
    %c0_i32 = arith.constant 0 : i32
    %c0_i32_0 = arith.constant 0 : i32
    %c0_i32_1 = arith.constant 0 : i32
    return %c0_i32, %c0_i32_0 : i32, i32
  }
  func.func @transform_19(%arg0: i32) -> (i32, i32) {
    %c0_i32 = arith.constant 0 : i32
    %c0_i32_0 = arith.constant 0 : i32
    return %arg0, %c0_i32 : i32, i32
  }
}

</mosaic_0001>

<llo_original>
// kernel: tpu_custom_call.1
$region0: #{tpu_custom_call.1}
  #allocation0 [shape = 'u32[]', space=smem, size = 0x4, offset = 0x4, fixed_abs, tag = 'smem constant byte address 0x4 - core index']
  #allocation1 [shape = 'u32[144,128]{1,0:T(1,128)}', space=vmem, size = 0x12000, scoped, tag = 'internal scratch']
  %s0 = inlined_call_operand.vmem [shape: f32[32,32], index: 0, kind: input, shape index: {}]
  %s1 = inlined_call_operand.vmem [shape: f32[1,32], index: 1, kind: input, shape index: {}]
  %s2 = inlined_call_operand.vmem [shape: f32[1,32], index: 2, kind: input, shape index: {}]
  %s3 = inlined_call_operand.vmem [shape: bf16[32,32], index: 3, kind: input, shape index: {}]
  %s4 = inlined_call_operand.vmem [shape: f32[1,32], index: 4, kind: input, shape index: {}]
  %s5 = inlined_call_operand.vmem [shape: bf16[32,32], index: 5, kind: input, shape index: {}]
  %s6 = inlined_call_operand.vmem [shape: f32[1,32], index: 6, kind: input, shape index: {}]
  %s7 = inlined_call_operand.vmem [shape: bf16[32,32], index: 7, kind: input, shape index: {}]
  %s8 = inlined_call_operand.vmem [shape: f32[1,32], index: 8, kind: input, shape index: {}]
  %s9 = inlined_call_operand.vmem [shape: bf16[32,8], index: 9, kind: input, shape index: {}]
  %s10 = inlined_call_operand.vmem [shape: bf16[32,16], index: 10, kind: input, shape index: {}]
  %s11 = inlined_call_operand.vmem [shape: bf16[32,16], index: 11, kind: input, shape index: {}]
  %s12 = inlined_call_operand.vmem [shape: bf16[8,32], index: 12, kind: input, shape index: {}]
  %s13 = inlined_call_operand.vmem [shape: f32[1,32], index: 13, kind: input, shape index: {}]
  %s14 = inlined_call_operand.vmem [shape: f32[1,512], index: 14, kind: input, shape index: {}]
  %s15 = inlined_call_operand.vmem [shape: f32[1,32], index: 15, kind: input, shape index: {}]
  %s16 = inlined_call_operand.vmem [shape: bf16[32,512], index: 16, kind: input, shape index: {}]
  %s17 = inlined_call_operand.vmem [shape: bf16[16,512], index: 17, kind: input, shape index: {}]
  %s18 = inlined_call_operand.vmem [shape: bf16[512,32], index: 18, kind: input, shape index: {}]
  %s19 = inlined_call_operand.hbm [shape: f32[32,32], index: 19, kind: output, shape index: {}]
  %s20 = sld [smem:[#allocation0]]
  $region86: #{tpu_custom_call.1} parent=0
    _
  %s22 = ssub.s32 1, %s20
  %s23 = scalar_select 0, %s22, %s20
  $region1: #{tpu_custom_call.1} parent=0
    #allocation2 [shape = 'u8[16384]{0}', space=vmem, size = 0x4000, scoped, tag = 'output window, operand 0, single buffered']
    #allocation3 [shape = 's32[1]{0}', space=sflag, size = 0x4, scoped, tag = 'scoped memory for tpu_custom_call.1']
    %24 = vsyncpa [#allocation3], 0
    // Predicated region
    $region2: #{tpu_custom_call.1} parent=1 // pred_check
      _
    $region3: #{tpu_custom_call.1} parent=1 // pred_check_branch
      %26 = sbr.rel (0) target = $region5
    $region4: #{tpu_custom_call.1} parent=1 // pred_region
      _
    $region5: #{tpu_custom_call.1} parent=1 // pred_fallthru
      _
    // Predicated region
    $region6: #{tpu_custom_call.1} parent=1 // pred_check
      _
    $region7: #{tpu_custom_call.1} parent=1 // pred_check_branch
      %28 = sbr.rel (0) target = $region9
    $region8: #{tpu_custom_call.1} parent=1 // pred_region
      _
    $region9: #{tpu_custom_call.1} parent=1 // pred_fallthru
      _
    // Predicated region
    $region10: #{tpu_custom_call.1} parent=1 // pred_check
      _
    $region11: #{tpu_custom_call.1} parent=1 // pred_check_branch
      %30 = sbr.rel (0) target = $region13
    $region12: #{tpu_custom_call.1} parent=1 // pred_region
      _
    $region13: #{tpu_custom_call.1} parent=1 // pred_fallthru
      _
    // Predicated region
    $region14: #{tpu_custom_call.1} parent=1 // pred_check
      _
    $region15: #{tpu_custom_call.1} parent=1 // pred_check_branch
      %32 = sbr.rel (0) target = $region17
    $region16: #{tpu_custom_call.1} parent=1 // pred_region
      _
    $region17: #{tpu_custom_call.1} parent=1 // pred_fallthru
      _
    // Predicated region
    $region18: #{tpu_custom_call.1} parent=1 // pred_check
      _
    $region19: #{tpu_custom_call.1} parent=1 // pred_check_branch
      %34 = sbr.rel (0) target = $region21
    $region20: #{tpu_custom_call.1} parent=1 // pred_region
      _
    $region21: #{tpu_custom_call.1} parent=1 // pred_fallthru
      _
    // Predicated region
    $region22: #{tpu_custom_call.1} parent=1 // pred_check
      _
    $region23: #{tpu_custom_call.1} parent=1 // pred_check_branch
      %36 = sbr.rel (0) target = $region25
    $region24: #{tpu_custom_call.1} parent=1 // pred_region
      _
    $region25: #{tpu_custom_call.1} parent=1 // pred_fallthru
      _
    // Predicated region
    $region26: #{tpu_custom_call.1} parent=1 // pred_check
      _
    $region27: #{tpu_custom_call.1} parent=1 // pred_check_branch
      %38 = sbr.rel (0) target = $region29
    $region28: #{tpu_custom_call.1} parent=1 // pred_region
      _
    $region29: #{tpu_custom_call.1} parent=1 // pred_fallthru
      _
    // Predicated region
    $region30: #{tpu_custom_call.1} parent=1 // pred_check
      _
    $region31: #{tpu_custom_call.1} parent=1 // pred_check_branch
      %40 = sbr.rel (0) target = $region33
    $region32: #{tpu_custom_call.1} parent=1 // pred_region
      _
    $region33: #{tpu_custom_call.1} parent=1 // pred_fallthru
      _
    // Predicated region
    $region34: #{tpu_custom_call.1} parent=1 // pred_check
      _
    $region35: #{tpu_custom_call.1} parent=1 // pred_check_branch
      %42 = sbr.rel (0) target = $region37
    $region36: #{tpu_custom_call.1} parent=1 // pred_region
      _
    $region37: #{tpu_custom_call.1} parent=1 // pred_fallthru
      _
    // Predicated region
    $region38: #{tpu_custom_call.1} parent=1 // pred_check
      _
    $region39: #{tpu_custom_call.1} parent=1 // pred_check_branch
      %44 = sbr.rel (0) target = $region41
    $region40: #{tpu_custom_call.1} parent=1 // pred_region
      _
    $region41: #{tpu_custom_call.1} parent=1 // pred_fallthru
      _
    // Predicated region
    $region42: #{tpu_custom_call.1} parent=1 // pred_check
      _
    $region43: #{tpu_custom_call.1} parent=1 // pred_check_branch
      %46 = sbr.rel (0) target = $region45
    $region44: #{tpu_custom_call.1} parent=1 // pred_region
      _
    $region45: #{tpu_custom_call.1} parent=1 // pred_fallthru
      _
    // Predicated region
    $region46: #{tpu_custom_call.1} parent=1 // pred_check
      _
    $region47: #{tpu_custom_call.1} parent=1 // pred_check_branch
      %48 = sbr.rel (0) target = $region49
    $region48: #{tpu_custom_call.1} parent=1 // pred_region
      _
    $region49: #{tpu_custom_call.1} parent=1 // pred_fallthru
      _
    // Predicated region
    $region50: #{tpu_custom_call.1} parent=1 // pred_check
      _
    $region51: #{tpu_custom_call.1} parent=1 // pred_check_branch
      %50 = sbr.rel (0) target = $region53
    $region52: #{tpu_custom_call.1} parent=1 // pred_region
      _
    $region53: #{tpu_custom_call.1} parent=1 // pred_fallthru
      _
    // Predicated region
    $region54: #{tpu_custom_call.1} parent=1 // pred_check
      _
    $region55: #{tpu_custom_call.1} parent=1 // pred_check_branch
      %52 = sbr.rel (0) target = $region57
    $region56: #{tpu_custom_call.1} parent=1 // pred_region
      _
    $region57: #{tpu_custom_call.1} parent=1 // pred_fallthru
      _
    // Predicated region
    $region58: #{tpu_custom_call.1} parent=1 // pred_check
      _
    $region59: #{tpu_custom_call.1} parent=1 // pred_check_branch
      %54 = sbr.rel (0) target = $region61
    $region60: #{tpu_custom_call.1} parent=1 // pred_region
      _
    $region61: #{tpu_custom_call.1} parent=1 // pred_fallthru
      _
    // Predicated region
    $region62: #{tpu_custom_call.1} parent=1 // pred_check
      _
    $region63: #{tpu_custom_call.1} parent=1 // pred_check_branch
      %56 = sbr.rel (0) target = $region65
    $region64: #{tpu_custom_call.1} parent=1 // pred_region
      _
    $region65: #{tpu_custom_call.1} parent=1 // pred_fallthru
      _
    // Predicated region
    $region66: #{tpu_custom_call.1} parent=1 // pred_check
      _
    $region67: #{tpu_custom_call.1} parent=1 // pred_check_branch
      %58 = sbr.rel (0) target = $region69
    $region68: #{tpu_custom_call.1} parent=1 // pred_region
      _
    $region69: #{tpu_custom_call.1} parent=1 // pred_fallthru
      _
    // Predicated region
    $region70: #{tpu_custom_call.1} parent=1 // pred_check
      _
    $region71: #{tpu_custom_call.1} parent=1 // pred_check_branch
      %60 = sbr.rel (0) target = $region73
    $region72: #{tpu_custom_call.1} parent=1 // pred_region
      _
    $region73: #{tpu_custom_call.1} parent=1 // pred_fallthru
      _
    // Predicated region
    $region74: #{tpu_custom_call.1} parent=1 // pred_check
      _
    $region75: #{tpu_custom_call.1} parent=1 // pred_check_branch
      %62 = sbr.rel (0) target = $region77
    $region76: #{tpu_custom_call.1} parent=1 // pred_region
      _
    $region77: #{tpu_custom_call.1} parent=1 // pred_fallthru
      _
    %v64 = vld [vmem:[%s0] sm:$0xff]
    %v65 = vld [vmem:[%s0 + $0x8] sm:$0xff]
    %v66 = vld [vmem:[%s0 + $0x10] sm:$0xff]
    %v67 = vld [vmem:[%s0 + $0x18] sm:$0xff]
    %vm68 = vcmask 261120
    %v69 = vsel %vm68, %v64, 0.0
    %70 = vadd.xlane.f32.xlu0 %v69
    %v71 = vpop.xlane.xlu0 %70
    %v72 = vsel %vm68, %v65, 0.0
    %73 = vadd.xlane.f32.xlu0 %v72
    %v74 = vpop.xlane.xlu0 %73
    %v75 = vsel %vm68, %v66, 0.0
    %76 = vadd.xlane.f32.xlu0 %v75
    %v77 = vpop.xlane.xlu0 %76
    %v78 = vsel %vm68, %v67, 0.0
    %79 = vadd.xlane.f32.xlu0 %v78
    %v80 = vpop.xlane.xlu0 %79
    %v81 = vrcp.pop 32.0
    %v82 = vmul.f32 %v71, %v81
    %v83 = vmul.f32 %v74, %v81
    %v84 = vmul.f32 %v77, %v81
    %v85 = vmul.f32 %v80, %v81
    %v86 = vsub.f32 %v64, %v82
    %v87 = vsub.f32 %v65, %v83
    %v88 = vsub.f32 %v66, %v84
    %v89 = vsub.f32 %v67, %v85
    %v90 = vmul.f32 %v86, %v86
    %v91 = vmul.f32 %v87, %v87
    %v92 = vmul.f32 %v88, %v88
    %v93 = vmul.f32 %v89, %v89
    %v94 = vsel %vm68, %v90, 0.0
    %95 = vadd.xlane.f32.xlu0 %v94
    %v96 = vpop.xlane.xlu0 %95
    %v97 = vsel %vm68, %v91, 0.0
    %98 = vadd.xlane.f32.xlu0 %v97
    %v99 = vpop.xlane.xlu0 %98
    %v100 = vsel %vm68, %v92, 0.0
    %101 = vadd.xlane.f32.xlu0 %v100
    %v102 = vpop.xlane.xlu0 %101
    %v103 = vsel %vm68, %v93, 0.0
    %104 = vadd.xlane.f32.xlu0 %v103
    %v105 = vpop.xlane.xlu0 %104
    %v106 = vmul.f32 %v96, %v81
    %v107 = vmul.f32 %v99, %v81
    %v108 = vmul.f32 %v102, %v81
    %v109 = vmul.f32 %v105, %v81
    %v110 = vadd.f32 %v106, 1e-05
    %v111 = vadd.f32 %v107, 1e-05
    %v112 = vadd.f32 %v108, 1e-05
    %v113 = vadd.f32 %v109, 1e-05
    %v114 = vrsqrt.pop %v110
    %v115 = vrsqrt.pop %v111
    %v116 = vrsqrt.pop %v112
    %v117 = vrsqrt.pop %v113
    %v118 = vmul.f32 %v86, %v114
    %v119 = vmul.f32 %v87, %v115
    %v120 = vmul.f32 %v88, %v116
    %v121 = vmul.f32 %v89, %v117
    %v122 = vld [vmem:[%s1] sm:$0x1]
    %v124 = vlaneseq
    %v125 = vshrl.u32 %v124, 7
    %v126 = vsub.s32 0, %v125
    %v127 = vrot.slane %v122, %v126
    %v129 = vmul.f32 %v118, %v127
    %v130 = vmul.f32 %v119, %v127
    %v131 = vmul.f32 %v120, %v127
    %v132 = vmul.f32 %v121, %v127
    %v133 = vld [vmem:[%s2] sm:$0x1]
    %v135 = vlaneseq
    %v136 = vshrl.u32 %v135, 7
    %v137 = vsub.s32 0, %v136
    %v138 = vrot.slane %v133, %v137
    %v140 = vadd.f32 %v129, %v138
    %v141 = vadd.f32 %v130, %v138
    %v142 = vadd.f32 %v131, %v138
    %v143 = vadd.f32 %v132, %v138
    %v144 = vpack.c.bf16 %v141, %v140
    %v145 = vpack.c.bf16 %v143, %v142
    %v146 = vld [vmem:[%s3] sm:$0xf]
    %v147 = vld [vmem:[%s3 + $0x4] sm:$0xf]
    %v148 = vld [vmem:[%s3 + $0x8] sm:$0xf]
    %v149 = vld [vmem:[%s3 + $0xc] sm:$0xf]
    %v150 = vld [vmem:[%s4] sm:$0x1]
    %v152 = vlaneseq
    %v153 = vshrl.u32 %v152, 7
    %v154 = vsub.s32 0, %v153
    %v155 = vrot.slane %v150, %v154
    %v161 = vunpack.c.l.b16 %v146
    %v162 = vunpack.c.l.b16 %v147
    %v163 = vunpack.c.l.b16 %v148
    %v164 = vunpack.c.l.b16 %v149
    %v165 = vpack.c.b16 %v162, %v161
    %v166 = vpack.c.b16 %v164, %v163
    %v170 = vsel %vm68, %v144, 0
    %v173 = vsel %vm68, %v145, 0
    %175 = vmatprep.subr.bf16.mxu0 0
    %176 = vmatpush1.bf16.msra.mxu0 %v165
    %177 = vmatprep.subr.bf16.mxu0 0
    %178 = vmatpush1.bf16.msra.mxu0 %v166
    %179 = vmatprep.subr.bf16.mxu0 0
    %180 = vmatpush1.bf16.msra.mxu0 0
    %181 = vmatprep.subr.bf16.mxu0 0
    %182 = vmatpush1.bf16.msra.mxu0 0
    %183 = vmatprep.subr.bf16.mxu0 0
    %184 = vmatpush1.bf16.msra.mxu0 0
    %185 = vmatprep.subr.bf16.mxu0 0
    %186 = vmatpush1.bf16.msra.mxu0 0
    %187 = vmatprep.subr.bf16.mxu0 0
    %188 = vmatpush1.bf16.msra.mxu0 0
    %189 = vmatprep.subr.bf16.mxu0 0
    %190 = vmatpush1.bf16.msra.mxu0 0
    %191 = vmatprep.subr.bf16.mxu0 0
    %192 = vmatpush1.bf16.msra.mxu0 0
    %193 = vmatprep.subr.bf16.mxu0 0
    %194 = vmatpush1.bf16.msra.mxu0 0
    %195 = vmatprep.subr.bf16.mxu0 0
    %196 = vmatpush1.bf16.msra.mxu0 0
    %197 = vmatprep.subr.bf16.mxu0 0
    %198 = vmatpush1.bf16.msra.mxu0 0
    %199 = vmatprep.subr.bf16.mxu0 0
    %200 = vmatpush1.bf16.msra.mxu0 0
    %201 = vmatprep.subr.bf16.mxu0 0
    %202 = vmatpush1.bf16.msra.mxu0 0
    %203 = vmatprep.subr.bf16.mxu0 0
    %204 = vmatpush1.bf16.msra.mxu0 0
    %205 = vmatprep.subr.bf16.mxu0 0
    %206 = vmatpush1.bf16.msra.mxu0 0
    %207 = vmatprep.mubr.bf16.mxu0 0
    %208 = vmatmul.mubr.bf16.gmra.mrb[0].mxu0 %v170
    %v209 = vpop.f32.mrb[0].mxu0
    %v210 = vadd.f32 %v155, %v209
    %v211 = vpop.f32.mrb[0].mxu0
    %v212 = vpop.f32.mrb[0].mxu0
    %v213 = vadd.f32 %v155, %v212
    %v214 = vpop.f32.mrb[0].mxu0
    %215 = vmatprep.mubr.bf16.mxu0 0
    %216 = vmatmul.mubr.bf16.gmra.mrb[0].mxu0 %v173
    %v217 = vpop.f32.mrb[0].mxu0
    %v218 = vadd.f32 %v155, %v217
    %v219 = vpop.f32.mrb[0].mxu0
    %v220 = vpop.f32.mrb[0].mxu0
    %v221 = vadd.f32 %v155, %v220
    %v222 = vpop.f32.mrb[0].mxu0
    %223 = vdwg.mxu0
    %v224 = vsub.f32 0.0, %v210
    %v225 = vsub.f32 0.0, %v213
    %v226 = vsub.f32 0.0, %v218
    %v227 = vsub.f32 0.0, %v221
    %v228 = vmul.f32 %v224, 1.442695
    %v229 = vpow.pop %v228
    %v230 = vmul.f32 %v225, 1.442695
    %v231 = vpow.pop %v230
    %v232 = vmul.f32 %v226, 1.442695
    %v233 = vpow.pop %v232
    %v234 = vmul.f32 %v227, 1.442695
    %v235 = vpow.pop %v234
    %v236 = vadd.f32 %v229, 1.0
    %v237 = vadd.f32 %v231, 1.0
    %v238 = vadd.f32 %v233, 1.0
    %v239 = vadd.f32 %v235, 1.0
    %v240 = vrcp.pop %v236
    %v241 = vrcp.pop %v237
    %v242 = vrcp.pop %v238
    %v243 = vrcp.pop %v239
    %v244 = vmul.f32 %v210, %v240
    %v245 = vmul.f32 %v213, %v241
    %v246 = vmul.f32 %v218, %v242
    %v247 = vmul.f32 %v221, %v243
    %v248 = vpack.c.bf16 %v213, %v210
    %v249 = vpack.c.bf16 %v221, %v218
    %v250 = vld [vmem:[%s14] sm:$0xf]
    %v251 = vmul.f32 %v250, 1.442695
    %v252 = vpow.pop %v251
    %v253 = vsub.f32 0.0, %v252
    %v254 = vlaneseq
    %v255 = vshrl.u32 %v254, 7
    %v256 = vadd.s32 %v255, 8
    %v257 = vadd.s32 %v255, 16
    %v258 = vadd.s32 %v255, 24
    %vm259 = vcmp.lt.s32.totalorder %v255, 0
    %v260 = vsub.s32 0, %v255
    %v261 = vsel %vm259, %v260, %v255
    %v262 = vshrl.u32 %v261, 4
    %v263 = vand.u32 %v261, 15
    %v264 = vsub.s32 0, %v263
    %v265 = vsel %vm259, %v264, %v263
    %vm266 = vcmp.lt.s32.totalorder %v256, 0
    %v267 = vsub.s32 0, %v256
    %v268 = vsel %vm266, %v267, %v256
    %v269 = vshrl.u32 %v268, 4
    %v270 = vand.u32 %v268, 15
    %v271 = vsub.s32 0, %v270
    %v272 = vsel %vm266, %v271, %v270
    %vm273 = vcmp.lt.s32.totalorder %v257, 0
    %v274 = vsub.s32 0, %v257
    %v275 = vsel %vm273, %v274, %v257
    %v276 = vshrl.u32 %v275, 4
    %v277 = vand.u32 %v275, 15
    %v278 = vsub.s32 0, %v277
    %v279 = vsel %vm273, %v278, %v277
    %vm280 = vcmp.lt.s32.totalorder %v258, 0
    %v281 = vsub.s32 0, %v258
    %v282 = vsel %vm280, %v281, %v258
    %v283 = vshrl.u32 %v282, 4
    %v284 = vand.u32 %v282, 15
    %v285 = vsub.s32 0, %v284
    %v286 = vsel %vm280, %v285, %v284
    %vm287 = vcmp.ne.s32.totalorder %v265, 0
    %vm288 = vcmp.ne.s32.totalorder %v272, 0
    %vm289 = vcmp.ne.s32.totalorder %v279, 0
    %vm290 = vcmp.ne.s32.totalorder %v286, 0
    %vm291 = vcmp.lt.s32.totalorder %v265, 0
    %vm292 = vcmp.lt.s32.totalorder %v272, 0
    %vm293 = vcmp.lt.s32.totalorder %v279, 0
    %vm294 = vcmp.lt.s32.totalorder %v286, 0
    %vm295 = vmand %vm291, %vm287
    %vm296 = vmand %vm292, %vm288
    %vm297 = vmand %vm293, %vm289
    %vm298 = vmand %vm294, %vm290
    %v299 = vadd.s32 %v265, 16
    %v300 = vadd.s32 %v272, 16
    %v301 = vadd.s32 %v279, 16
    %v302 = vadd.s32 %v286, 16
    %v303 = vsel %vm295, %v299, %v265
    %v304 = vsel %vm296, %v300, %v272
    %v305 = vsel %vm297, %v301, %v279
    %v306 = vsel %vm298, %v302, %v286
    %vm307 = vcmp.ge.s32.totalorder %v303, 1
    %vm308 = vcmp.ge.s32.totalorder %v304, 1
    %vm309 = vcmp.ge.s32.totalorder %v305, 1
    %vm310 = vcmp.ge.s32.totalorder %v306, 1
    %v311 = vsel %vm307, 1, 0
    %v312 = vsel %vm308, 1, 0
    %v313 = vsel %vm309, 1, 0
    %v314 = vsel %vm310, 1, 0
    %v315 = vcvt.s32.f32 %v311
    %v316 = vcvt.s32.f32 %v312
    %v317 = vcvt.s32.f32 %v313
    %v318 = vcvt.s32.f32 %v314
    %vm319 = vcmp.ge.s32.totalorder %v303, 2
    %vm320 = vcmp.ge.s32.totalorder %v304, 2
    %vm321 = vcmp.ge.s32.totalorder %v305, 2
    %vm322 = vcmp.ge.s32.totalorder %v306, 2
    %v323 = vsel %vm319, 1, 0
    %v324 = vsel %vm320, 1, 0
    %v325 = vsel %vm321, 1, 0
    %v326 = vsel %vm322, 1, 0
    %v327 = vcvt.s32.f32 %v323
    %v328 = vcvt.s32.f32 %v324
    %v329 = vcvt.s32.f32 %v325
    %v330 = vcvt.s32.f32 %v326
    %vm331 = vcmp.ge.s32.totalorder %v303, 4
    %vm332 = vcmp.ge.s32.totalorder %v304, 4
    %vm333 = vcmp.ge.s32.totalorder %v305, 4
    %vm334 = vcmp.ge.s32.totalorder %v306, 4
    %v335 = vsel %vm331, 1, 0
    %v336 = vsel %vm332, 1, 0
    %v337 = vsel %vm333, 1, 0
    %v338 = vsel %vm334, 1, 0
    %v339 = vcvt.s32.f32 %v335
    %v340 = vcvt.s32.f32 %v336
    %v341 = vcvt.s32.f32 %v337
    %v342 = vcvt.s32.f32 %v338
    %vm343 = vcmp.ge.s32.totalorder %v303, 8
    %vm344 = vcmp.ge.s32.totalorder %v304, 8
    %vm345 = vcmp.ge.s32.totalorder %v305, 8
    %vm346 = vcmp.ge.s32.totalorder %v306, 8
    %v347 = vsel %vm343, 1, 0
    %v348 = vsel %vm344, 1, 0
    %v349 = vsel %vm345, 1, 0
    %v350 = vsel %vm346, 1, 0
    %v351 = vcvt.s32.f32 %v347
    %v352 = vcvt.s32.f32 %v348
    %v353 = vcvt.s32.f32 %v349
    %v354 = vcvt.s32.f32 %v350
    %v355 = vld [vmem:[%s5] sm:$0xf]
    %v356 = vld [vmem:[%s5 + $0x4] sm:$0xf]
    %v357 = vld [vmem:[%s5 + $0x8] sm:$0xf]
    %v358 = vld [vmem:[%s5 + $0xc] sm:$0xf]
    %v359 = vld [vmem:[%s6] sm:$0x1]
    %v361 = vlaneseq
    %v362 = vshrl.u32 %v361, 7
    %v363 = vsub.s32 0, %v362
    %v364 = vrot.slane %v359, %v363
    %v370 = vunpack.c.l.b16 %v355
    %v371 = vunpack.c.l.b16 %v356
    %v372 = vunpack.c.l.b16 %v357
    %v373 = vunpack.c.l.b16 %v358
    %v374 = vpack.c.b16 %v371, %v370
    %v375 = vpack.c.b16 %v373, %v372
    %v379 = vsel %vm68, %v248, 0
    %v382 = vsel %vm68, %v249, 0
    %384 = vmatprep.subr.bf16.mxu0 0
    %385 = vmatpush1.bf16.msra.mxu0 %v374
    %386 = vmatprep.subr.bf16.mxu0 0
    %387 = vmatpush1.bf16.msra.mxu0 %v375
    %388 = vmatprep.subr.bf16.mxu0 0
    %389 = vmatpush1.bf16.msra.mxu0 0
    %390 = vmatprep.subr.bf16.mxu0 0
    %391 = vmatpush1.bf16.msra.mxu0 0
    %392 = vmatprep.subr.bf16.mxu0 0
    %393 = vmatpush1.bf16.msra.mxu0 0
    %394 = vmatprep.subr.bf16.mxu0 0
    %395 = vmatpush1.bf16.msra.mxu0 0
    %396 = vmatprep.subr.bf16.mxu0 0
    %397 = vmatpush1.bf16.msra.mxu0 0
    %398 = vmatprep.subr.bf16.mxu0 0
    %399 = vmatpush1.bf16.msra.mxu0 0
    %400 = vmatprep.subr.bf16.mxu0 0
    %401 = vmatpush1.bf16.msra.mxu0 0
    %402 = vmatprep.subr.bf16.mxu0 0
    %403 = vmatpush1.bf16.msra.mxu0 0
    %404 = vmatprep.subr.bf16.mxu0 0
    %405 = vmatpush1.bf16.msra.mxu0 0
    %406 = vmatprep.subr.bf16.mxu0 0
    %407 = vmatpush1.bf16.msra.mxu0 0
    %408 = vmatprep.subr.bf16.mxu0 0
    %409 = vmatpush1.bf16.msra.mxu0 0
    %410 = vmatprep.subr.bf16.mxu0 0
    %411 = vmatpush1.bf16.msra.mxu0 0
    %412 = vmatprep.subr.bf16.mxu0 0
    %413 = vmatpush1.bf16.msra.mxu0 0
    %414 = vmatprep.subr.bf16.mxu0 0
    %415 = vmatpush1.bf16.msra.mxu0 0
    %416 = vmatprep.mubr.bf16.mxu0 0
    %417 = vmatmul.mubr.bf16.gmra.mrb[0].mxu0 %v379
    %v418 = vpop.f32.mrb[0].mxu0
    %v419 = vadd.f32 %v364, %v418
    %v420 = vpop.f32.mrb[0].mxu0
    %v421 = vpop.f32.mrb[0].mxu0
    %v422 = vadd.f32 %v364, %v421
    %v423 = vpop.f32.mrb[0].mxu0
    %424 = vmatprep.mubr.bf16.mxu0 0
    %425 = vmatmul.mubr.bf16.gmra.mrb[0].mxu0 %v382
    %v426 = vpop.f32.mrb[0].mxu0
    %v427 = vadd.f32 %v364, %v426
    %v428 = vpop.f32.mrb[0].mxu0
    %v429 = vpop.f32.mrb[0].mxu0
    %v430 = vadd.f32 %v364, %v429
    %v431 = vpop.f32.mrb[0].mxu0
    %432 = vdwg.mxu0
    %v433 = vmin.f32 %v419, 20.0
    %v434 = vmin.f32 %v422, 20.0
    %v435 = vmin.f32 %v427, 20.0
    %v436 = vmin.f32 %v430, 20.0
    %vm437 = vcmp.gt.f32.partialorder %v419, 20.0
    %vm438 = vcmp.gt.f32.partialorder %v422, 20.0
    %vm439 = vcmp.gt.f32.partialorder %v427, 20.0
    %vm440 = vcmp.gt.f32.partialorder %v430, 20.0
    %v441 = vmul.f32 %v433, 1.442695
    %v442 = vpow.pop %v441
    %v443 = vmul.f32 %v434, 1.442695
    %v444 = vpow.pop %v443
    %v445 = vmul.f32 %v435, 1.442695
    %v446 = vpow.pop %v445
    %v447 = vmul.f32 %v436, 1.442695
    %v448 = vpow.pop %v447
    %v449 = vadd.f32 %v442, 1.0
    %v450 = vadd.f32 %v444, 1.0
    %v451 = vadd.f32 %v446, 1.0
    %v452 = vadd.f32 %v448, 1.0
    %v453 = vlog2.pop %v449
    %v454 = vmul.f32 %v453, 0.6931472
    %v455 = vlog2.pop %v450
    %v456 = vmul.f32 %v455, 0.6931472
    %v457 = vlog2.pop %v451
    %v458 = vmul.f32 %v457, 0.6931472
    %v459 = vlog2.pop %v452
    %v460 = vmul.f32 %v459, 0.6931472
    %v461 = vsel %vm437, %v419, %v454
    %v462 = vsel %vm438, %v422, %v456
    %v463 = vsel %vm439, %v427, %v458
    %v464 = vsel %vm440, %v430, %v460
    %v465 = vpack.c.bf16 %v462, %v461
    %v466 = vpack.c.bf16 %v464, %v463
    %v467 = vld [vmem:[%s9] sm:$0xf]
    %v468 = vld [vmem:[%s9 + $0x4] sm:$0xf]
    %v469 = vld [vmem:[%s9 + $0x8] sm:$0xf]
    %v470 = vld [vmem:[%s9 + $0xc] sm:$0xf]
    %v475 = vunpack.c.l.b16 %v467
    %v476 = vunpack.c.l.b16 %v468
    %v477 = vunpack.c.l.b16 %v469
    %v478 = vunpack.c.l.b16 %v470
    %v479 = vpack.c.b16 %v476, %v475
    %v480 = vpack.c.b16 %v478, %v477
    %v484 = vsel %vm68, %v465, 0
    %v487 = vsel %vm68, %v466, 0
    %489 = vmatprep.subr.bf16.mxu0 0
    %490 = vmatpush1.bf16.msra.mxu0 %v479
    %491 = vmatprep.subr.bf16.mxu0 0
    %492 = vmatpush1.bf16.msra.mxu0 %v480
    %493 = vmatprep.subr.bf16.mxu0 0
    %494 = vmatpush1.bf16.msra.mxu0 0
    %495 = vmatprep.subr.bf16.mxu0 0
    %496 = vmatpush1.bf16.msra.mxu0 0
    %497 = vmatprep.subr.bf16.mxu0 0
    %498 = vmatpush1.bf16.msra.mxu0 0
    %499 = vmatprep.subr.bf16.mxu0 0
    %500 = vmatpush1.bf16.msra.mxu0 0
    %501 = vmatprep.subr.bf16.mxu0 0
    %502 = vmatpush1.bf16.msra.mxu0 0
    %503 = vmatprep.subr.bf16.mxu0 0
    %504 = vmatpush1.bf16.msra.mxu0 0
    %505 = vmatprep.subr.bf16.mxu0 0
    %506 = vmatpush1.bf16.msra.mxu0 0
    %507 = vmatprep.subr.bf16.mxu0 0
    %508 = vmatpush1.bf16.msra.mxu0 0
    %509 = vmatprep.subr.bf16.mxu0 0
    %510 = vmatpush1.bf16.msra.mxu0 0
    %511 = vmatprep.subr.bf16.mxu0 0
    %512 = vmatpush1.bf16.msra.mxu0 0
    %513 = vmatprep.subr.bf16.mxu0 0
    %514 = vmatpush1.bf16.msra.mxu0 0
    %515 = vmatprep.subr.bf16.mxu0 0
    %516 = vmatpush1.bf16.msra.mxu0 0
    %517 = vmatprep.subr.bf16.mxu0 0
    %518 = vmatpush1.bf16.msra.mxu0 0
    %519 = vmatprep.subr.bf16.mxu0 0
    %520 = vmatpush1.bf16.msra.mxu0 0
    %521 = vmatprep.mubr.bf16.mxu0 0
    %522 = vmatmul.mubr.bf16.gmra.mrb[0].mxu0 %v484
    %v523 = vpop.f32.mrb[0].mxu0
    %v524 = vadd.f32 0.0, %v523
    %v525 = vpop.f32.mrb[0].mxu0
    %v526 = vpop.f32.mrb[0].mxu0
    %v527 = vadd.f32 0.0, %v526
    %v528 = vpop.f32.mrb[0].mxu0
    %529 = vmatprep.mubr.bf16.mxu0 0
    %530 = vmatmul.mubr.bf16.gmra.mrb[0].mxu0 %v487
    %v531 = vpop.f32.mrb[0].mxu0
    %v532 = vadd.f32 0.0, %v531
    %v533 = vpop.f32.mrb[0].mxu0
    %v534 = vpop.f32.mrb[0].mxu0
    %v535 = vadd.f32 0.0, %v534
    %v536 = vpop.f32.mrb[0].mxu0
    %537 = vdwg.mxu0
    %v538 = vld [vmem:[%s10] sm:$0xf]
    %v539 = vld [vmem:[%s10 + $0x4] sm:$0xf]
    %v540 = vld [vmem:[%s10 + $0x8] sm:$0xf]
    %v541 = vld [vmem:[%s10 + $0xc] sm:$0xf]
    %v546 = vunpack.c.l.b16 %v538
    %v547 = vunpack.c.l.b16 %v539
    %v548 = vunpack.c.l.b16 %v540
    %v549 = vunpack.c.l.b16 %v541
    %v550 = vpack.c.b16 %v547, %v546
    %v551 = vpack.c.b16 %v549, %v548
    %554 = vmatprep.subr.bf16.mxu0 0
    %555 = vmatpush1.bf16.msra.mxu0 %v550
    %556 = vmatprep.subr.bf16.mxu0 0
    %557 = vmatpush1.bf16.msra.mxu0 %v551
    %558 = vmatprep.subr.bf16.mxu0 0
    %559 = vmatpush1.bf16.msra.mxu0 0
    %560 = vmatprep.subr.bf16.mxu0 0
    %561 = vmatpush1.bf16.msra.mxu0 0
    %562 = vmatprep.subr.bf16.mxu0 0
    %563 = vmatpush1.bf16.msra.mxu0 0
    %564 = vmatprep.subr.bf16.mxu0 0
    %565 = vmatpush1.bf16.msra.mxu0 0
    %566 = vmatprep.subr.bf16.mxu0 0
    %567 = vmatpush1.bf16.msra.mxu0 0
    %568 = vmatprep.subr.bf16.mxu0 0
    %569 = vmatpush1.bf16.msra.mxu0 0
    %570 = vmatprep.subr.bf16.mxu0 0
    %571 = vmatpush1.bf16.msra.mxu0 0
    %572 = vmatprep.subr.bf16.mxu0 0
    %573 = vmatpush1.bf16.msra.mxu0 0
    %574 = vmatprep.subr.bf16.mxu0 0
    %575 = vmatpush1.bf16.msra.mxu0 0
    %576 = vmatprep.subr.bf16.mxu0 0
    %577 = vmatpush1.bf16.msra.mxu0 0
    %578 = vmatprep.subr.bf16.mxu0 0
    %579 = vmatpush1.bf16.msra.mxu0 0
    %580 = vmatprep.subr.bf16.mxu0 0
    %581 = vmatpush1.bf16.msra.mxu0 0
    %582 = vmatprep.subr.bf16.mxu0 0
    %583 = vmatpush1.bf16.msra.mxu0 0
    %584 = vmatprep.subr.bf16.mxu0 0
    %585 = vmatpush1.bf16.msra.mxu0 0
    %586 = vmatprep.mubr.bf16.mxu0 0
    %587 = vmatmul.mubr.bf16.gmra.mrb[0].mxu0 %v484
    %v588 = vpop.f32.mrb[0].mxu0
    %v589 = vadd.f32 0.0, %v588
    %v590 = vpop.f32.mrb[0].mxu0
    %v591 = vpop.f32.mrb[0].mxu0
    %v592 = vadd.f32 0.0, %v591
    %v593 = vpop.f32.mrb[0].mxu0
    %594 = vmatprep.mubr.bf16.mxu0 0
    %595 = vmatmul.mubr.bf16.gmra.mrb[0].mxu0 %v487
    %v596 = vpop.f32.mrb[0].mxu0
    %v597 = vadd.f32 0.0, %v596
    %v598 = vpop.f32.mrb[0].mxu0
    %v599 = vpop.f32.mrb[0].mxu0
    %v600 = vadd.f32 0.0, %v599
    %v601 = vpop.f32.mrb[0].mxu0
    %602 = vdwg.mxu0
    %v603 = vld [vmem:[%s11] sm:$0xf]
    %v604 = vld [vmem:[%s11 + $0x4] sm:$0xf]
    %v605 = vld [vmem:[%s11 + $0x8] sm:$0xf]
    %v606 = vld [vmem:[%s11 + $0xc] sm:$0xf]
    %v611 = vunpack.c.l.b16 %v603
    %v612 = vunpack.c.l.b16 %v604
    %v613 = vunpack.c.l.b16 %v605
    %v614 = vunpack.c.l.b16 %v606
    %v615 = vpack.c.b16 %v612, %v611
    %v616 = vpack.c.b16 %v614, %v613
    %619 = vmatprep.subr.bf16.mxu0 0
    %620 = vmatpush1.bf16.msra.mxu0 %v615
    %621 = vmatprep.subr.bf16.mxu0 0
    %622 = vmatpush1.bf16.msra.mxu0 %v616
    %623 = vmatprep.subr.bf16.mxu0 0
    %624 = vmatpush1.bf16.msra.mxu0 0
    %625 = vmatprep.subr.bf16.mxu0 0
    %626 = vmatpush1.bf16.msra.mxu0 0
    %627 = vmatprep.subr.bf16.mxu0 0
    %628 = vmatpush1.bf16.msra.mxu0 0
    %629 = vmatprep.subr.bf16.mxu0 0
    %630 = vmatpush1.bf16.msra.mxu0 0
    %631 = vmatprep.subr.bf16.mxu0 0
    %632 = vmatpush1.bf16.msra.mxu0 0
    %633 = vmatprep.subr.bf16.mxu0 0
    %634 = vmatpush1.bf16.msra.mxu0 0
    %635 = vmatprep.subr.bf16.mxu0 0
    %636 = vmatpush1.bf16.msra.mxu0 0
    %637 = vmatprep.subr.bf16.mxu0 0
    %638 = vmatpush1.bf16.msra.mxu0 0
    %639 = vmatprep.subr.bf16.mxu0 0
    %640 = vmatpush1.bf16.msra.mxu0 0
    %641 = vmatprep.subr.bf16.mxu0 0
    %642 = vmatpush1.bf16.msra.mxu0 0
    %643 = vmatprep.subr.bf16.mxu0 0
    %644 = vmatpush1.bf16.msra.mxu0 0
    %645 = vmatprep.subr.bf16.mxu0 0
    %646 = vmatpush1.bf16.msra.mxu0 0
    %647 = vmatprep.subr.bf16.mxu0 0
    %648 = vmatpush1.bf16.msra.mxu0 0
    %649 = vmatprep.subr.bf16.mxu0 0
    %650 = vmatpush1.bf16.msra.mxu0 0
    %651 = vmatprep.mubr.bf16.mxu0 0
    %652 = vmatmul.mubr.bf16.gmra.mrb[0].mxu0 %v484
    %v653 = vpop.f32.mrb[0].mxu0
    %v654 = vadd.f32 0.0, %v653
    %v655 = vpop.f32.mrb[0].mxu0
    %v656 = vpop.f32.mrb[0].mxu0
    %v657 = vadd.f32 0.0, %v656
    %v658 = vpop.f32.mrb[0].mxu0
    %659 = vmatprep.mubr.bf16.mxu0 0
    %660 = vmatmul.mubr.bf16.gmra.mrb[0].mxu0 %v487
    %v661 = vpop.f32.mrb[0].mxu0
    %v662 = vadd.f32 0.0, %v661
    %v663 = vpop.f32.mrb[0].mxu0
    %v664 = vpop.f32.mrb[0].mxu0
    %v665 = vadd.f32 0.0, %v664
    %v666 = vpop.f32.mrb[0].mxu0
    %667 = vdwg.mxu0
    %v668 = vpack.c.bf16 %v527, %v524
    %v669 = vpack.c.bf16 %v535, %v532
    %v670 = vld [vmem:[%s12] sm:$0xf]
    %v671 = vld [vmem:[%s13] sm:$0x1]
    %v673 = vlaneseq
    %v674 = vshrl.u32 %v673, 7
    %v675 = vsub.s32 0, %v674
    %v676 = vrot.slane %v671, %v675
    %vm678 = vcmask 64512
    %v680 = vsel %vm678, %v668, 0
    %v683 = vsel %vm678, %v669, 0
    %vm685 = vcmask 1043456
    %v687 = vsel %vm685, %v670, 0
    %689 = vmatprep.subr.bf16.mxu0 0
    %690 = vmatpush1.bf16.msra.mxu0 %v687
    %691 = vmatprep.subr.bf16.mxu0 0
    %692 = vmatpush1.bf16.msra.mxu0 0
    %693 = vmatprep.subr.bf16.mxu0 0
    %694 = vmatpush1.bf16.msra.mxu0 0
    %695 = vmatprep.subr.bf16.mxu0 0
    %696 = vmatpush1.bf16.msra.mxu0 0
    %697 = vmatprep.subr.bf16.mxu0 0
    %698 = vmatpush1.bf16.msra.mxu0 0
    %699 = vmatprep.subr.bf16.mxu0 0
    %700 = vmatpush1.bf16.msra.mxu0 0
    %701 = vmatprep.subr.bf16.mxu0 0
    %702 = vmatpush1.bf16.msra.mxu0 0
    %703 = vmatprep.subr.bf16.mxu0 0
    %704 = vmatpush1.bf16.msra.mxu0 0
    %705 = vmatprep.subr.bf16.mxu0 0
    %706 = vmatpush1.bf16.msra.mxu0 0
    %707 = vmatprep.subr.bf16.mxu0 0
    %708 = vmatpush1.bf16.msra.mxu0 0
    %709 = vmatprep.subr.bf16.mxu0 0
    %710 = vmatpush1.bf16.msra.mxu0 0
    %711 = vmatprep.subr.bf16.mxu0 0
    %712 = vmatpush1.bf16.msra.mxu0 0
    %713 = vmatprep.subr.bf16.mxu0 0
    %714 = vmatpush1.bf16.msra.mxu0 0
    %715 = vmatprep.subr.bf16.mxu0 0
    %716 = vmatpush1.bf16.msra.mxu0 0
    %717 = vmatprep.subr.bf16.mxu0 0
    %718 = vmatpush1.bf16.msra.mxu0 0
    %719 = vmatprep.subr.bf16.mxu0 0
    %720 = vmatpush1.bf16.msra.mxu0 0
    %721 = vmatprep.mubr.bf16.mxu0 0
    %722 = vmatmul.mubr.bf16.gmra.mrb[0].mxu0 %v680
    %v723 = vpop.f32.mrb[0].mxu0
    %v724 = vadd.f32 %v676, %v723
    %v725 = vpop.f32.mrb[0].mxu0
    %v726 = vpop.f32.mrb[0].mxu0
    %v727 = vadd.f32 %v676, %v726
    %v728 = vpop.f32.mrb[0].mxu0
    %729 = vmatprep.mubr.bf16.mxu0 0
    %730 = vmatmul.mubr.bf16.gmra.mrb[0].mxu0 %v683
    %v731 = vpop.f32.mrb[0].mxu0
    %v732 = vadd.f32 %v676, %v731
    %v733 = vpop.f32.mrb[0].mxu0
    %v734 = vpop.f32.mrb[0].mxu0
    %v735 = vadd.f32 %v676, %v734
    %v736 = vpop.f32.mrb[0].mxu0
    %737 = vdwg.mxu0
    %v738 = vmin.f32 %v724, 20.0
    %v739 = vmin.f32 %v727, 20.0
    %v740 = vmin.f32 %v732, 20.0
    %v741 = vmin.f32 %v735, 20.0
    %vm742 = vcmp.gt.f32.partialorder %v724, 20.0
    %vm743 = vcmp.gt.f32.partialorder %v727, 20.0
    %vm744 = vcmp.gt.f32.partialorder %v732, 20.0
    %vm745 = vcmp.gt.f32.partialorder %v735, 20.0
    %v746 = vmul.f32 %v738, 1.442695
    %v747 = vpow.pop %v746
    %v748 = vmul.f32 %v739, 1.442695
    %v749 = vpow.pop %v748
    %v750 = vmul.f32 %v740, 1.442695
    %v751 = vpow.pop %v750
    %v752 = vmul.f32 %v741, 1.442695
    %v753 = vpow.pop %v752
    %v754 = vadd.f32 %v747, 1.0
    %v755 = vadd.f32 %v749, 1.0
    %v756 = vadd.f32 %v751, 1.0
    %v757 = vadd.f32 %v753, 1.0
    %v758 = vlog2.pop %v754
    %v759 = vmul.f32 %v758, 0.6931472
    %v760 = vlog2.pop %v755
    %v761 = vmul.f32 %v760, 0.6931472
    %v762 = vlog2.pop %v756
    %v763 = vmul.f32 %v762, 0.6931472
    %v764 = vlog2.pop %v757
    %v765 = vmul.f32 %v764, 0.6931472
    %v766 = vsel %vm742, %v724, %v759
    %v767 = vsel %vm743, %v727, %v761
    %v768 = vsel %vm744, %v732, %v763
    %v769 = vsel %vm745, %v735, %v765
    %v770 = vpack.c.bf16 %v767, %v766
    %v771 = vpack.c.bf16 %v769, %v768
    %v772 = vld [vmem:[%s16] sm:$0xff]
    %v773 = vld [vmem:[%s16 + $0x8] sm:$0xff]
    %v774 = vld [vmem:[%s16 + $0x10] sm:$0xff]
    %v775 = vld [vmem:[%s16 + $0x18] sm:$0xff]
    %v776 = vld [vmem:[%s16 + $0x20] sm:$0xff]
    %v777 = vld [vmem:[%s16 + $0x28] sm:$0xff]
    %v778 = vld [vmem:[%s16 + $0x30] sm:$0xff]
    %v779 = vld [vmem:[%s16 + $0x38] sm:$0xff]
    %v788 = vunpack.c.l.b16 %v772
    %v789 = vunpack.c.h.b16 %v772
    %v790 = vunpack.c.l.b16 %v773
    %v791 = vunpack.c.h.b16 %v773
    %v792 = vunpack.c.l.b16 %v774
    %v793 = vunpack.c.h.b16 %v774
    %v794 = vunpack.c.l.b16 %v775
    %v795 = vunpack.c.h.b16 %v775
    %v796 = vunpack.c.l.b16 %v776
    %v797 = vunpack.c.h.b16 %v776
    %v798 = vunpack.c.l.b16 %v777
    %v799 = vunpack.c.h.b16 %v777
    %v800 = vunpack.c.l.b16 %v778
    %v801 = vunpack.c.h.b16 %v778
    %v802 = vunpack.c.l.b16 %v779
    %v803 = vunpack.c.h.b16 %v779
    %v804 = vpack.c.b16 %v792, %v788
    %v805 = vpack.c.b16 %v793, %v789
    %v806 = vpack.c.b16 %v794, %v790
    %v807 = vpack.c.b16 %v795, %v791
    %v808 = vpack.c.b16 %v800, %v796
    %v809 = vpack.c.b16 %v801, %v797
    %v810 = vpack.c.b16 %v802, %v798
    %v811 = vpack.c.b16 %v803, %v799
    %v821 = vsel %vm68, %v770, 0
    %v824 = vsel %vm68, %v771, 0
    %826 = vmatprep.subr.bf16.mxu0 %v805
    %827 = vmatpush1.bf16.msra.mxu0 %v804
    %828 = vmatprep.subr.bf16.mxu0 %v809
    %829 = vmatpush1.bf16.msra.mxu0 %v808
    %830 = vmatprep.subr.bf16.mxu0 0
    %831 = vmatpush1.bf16.msra.mxu0 0
    %832 = vmatprep.subr.bf16.mxu0 0
    %833 = vmatpush1.bf16.msra.mxu0 0
    %834 = vmatprep.subr.bf16.mxu0 0
    %835 = vmatpush1.bf16.msra.mxu0 0
    %836 = vmatprep.subr.bf16.mxu0 0
    %837 = vmatpush1.bf16.msra.mxu0 0
    %838 = vmatprep.subr.bf16.mxu0 0
    %839 = vmatpush1.bf16.msra.mxu0 0
    %840 = vmatprep.subr.bf16.mxu0 0
    %841 = vmatpush1.bf16.msra.mxu0 0
    %842 = vmatprep.subr.bf16.mxu0 0
    %843 = vmatpush1.bf16.msra.mxu0 0
    %844 = vmatprep.subr.bf16.mxu0 0
    %845 = vmatpush1.bf16.msra.mxu0 0
    %846 = vmatprep.subr.bf16.mxu0 0
    %847 = vmatpush1.bf16.msra.mxu0 0
    %848 = vmatprep.subr.bf16.mxu0 0
    %849 = vmatpush1.bf16.msra.mxu0 0
    %850 = vmatprep.subr.bf16.mxu0 0
    %851 = vmatpush1.bf16.msra.mxu0 0
    %852 = vmatprep.subr.bf16.mxu0 0
    %853 = vmatpush1.bf16.msra.mxu0 0
    %854 = vmatprep.subr.bf16.mxu0 0
    %855 = vmatpush1.bf16.msra.mxu0 0
    %856 = vmatprep.subr.bf16.mxu0 0
    %857 = vmatpush1.bf16.msra.mxu0 0
    %858 = vmatprep.mubr.bf16.mxu0 0
    %859 = vmatmul.mubr.bf16.gmra.mrb[0].mxu0 %v821
    %v860 = vpop.f32.mrb[0].mxu0
    %v861 = vadd.f32 0.0, %v860
    %v862 = vpop.f32.mrb[0].mxu0
    %v863 = vadd.f32 0.0, %v862
    %v864 = vpop.f32.mrb[0].mxu0
    %v865 = vadd.f32 0.0, %v864
    %v866 = vpop.f32.mrb[0].mxu0
    %v867 = vadd.f32 0.0, %v866
    %868 = vmatprep.mubr.bf16.mxu0 0
    %869 = vmatmul.mubr.bf16.gmra.mrb[0].mxu0 %v824
    %v870 = vpop.f32.mrb[0].mxu0
    %v871 = vadd.f32 0.0, %v870
    %v872 = vpop.f32.mrb[0].mxu0
    %v873 = vadd.f32 0.0, %v872
    %v874 = vpop.f32.mrb[0].mxu0
    %v875 = vadd.f32 0.0, %v874
    %v876 = vpop.f32.mrb[0].mxu0
    %v877 = vadd.f32 0.0, %v876
    %878 = vdwg.mxu0
    %879 = vmatprep.subr.bf16.mxu0 %v807
    %880 = vmatpush1.bf16.msra.mxu0 %v806
    %881 = vmatprep.subr.bf16.mxu0 %v811
    %882 = vmatpush1.bf16.msra.mxu0 %v810
    %883 = vmatprep.subr.bf16.mxu0 0
    %884 = vmatpush1.bf16.msra.mxu0 0
    %885 = vmatprep.subr.bf16.mxu0 0
    %886 = vmatpush1.bf16.msra.mxu0 0
    %887 = vmatprep.subr.bf16.mxu0 0
    %888 = vmatpush1.bf16.msra.mxu0 0
    %889 = vmatprep.subr.bf16.mxu0 0
    %890 = vmatpush1.bf16.msra.mxu0 0
    %891 = vmatprep.subr.bf16.mxu0 0
    %892 = vmatpush1.bf16.msra.mxu0 0
    %893 = vmatprep.subr.bf16.mxu0 0
    %894 = vmatpush1.bf16.msra.mxu0 0
    %895 = vmatprep.subr.bf16.mxu0 0
    %896 = vmatpush1.bf16.msra.mxu0 0
    %897 = vmatprep.subr.bf16.mxu0 0
    %898 = vmatpush1.bf16.msra.mxu0 0
    %899 = vmatprep.subr.bf16.mxu0 0
    %900 = vmatpush1.bf16.msra.mxu0 0
    %901 = vmatprep.subr.bf16.mxu0 0
    %902 = vmatpush1.bf16.msra.mxu0 0
    %903 = vmatprep.subr.bf16.mxu0 0
    %904 = vmatpush1.bf16.msra.mxu0 0
    %905 = vmatprep.subr.bf16.mxu0 0
    %906 = vmatpush1.bf16.msra.mxu0 0
    %907 = vmatprep.subr.bf16.mxu0 0
    %908 = vmatpush1.bf16.msra.mxu0 0
    %909 = vmatprep.subr.bf16.mxu0 0
    %910 = vmatpush1.bf16.msra.mxu0 0
    %911 = vmatprep.mubr.bf16.mxu0 0
    %912 = vmatmul.mubr.bf16.gmra.mrb[0].mxu0 %v821
    %v913 = vpop.f32.mrb[0].mxu0
    %v914 = vadd.f32 0.0, %v913
    %v915 = vpop.f32.mrb[0].mxu0
    %v916 = vadd.f32 0.0, %v915
    %v917 = vpop.f32.mrb[0].mxu0
    %v918 = vadd.f32 0.0, %v917
    %v919 = vpop.f32.mrb[0].mxu0
    %v920 = vadd.f32 0.0, %v919
    %921 = vmatprep.mubr.bf16.mxu0 0
    %922 = vmatmul.mubr.bf16.gmra.mrb[0].mxu0 %v824
    %v923 = vpop.f32.mrb[0].mxu0
    %v924 = vadd.f32 0.0, %v923
    %v925 = vpop.f32.mrb[0].mxu0
    %v926 = vadd.f32 0.0, %v925
    %v927 = vpop.f32.mrb[0].mxu0
    %v928 = vadd.f32 0.0, %v927
    %v929 = vpop.f32.mrb[0].mxu0
    %v930 = vadd.f32 0.0, %v929
    %931 = vdwg.mxu0
    %v932 = vmul.f32 %v766, %v461
    %v933 = vmul.f32 %v767, %v462
    %v934 = vmul.f32 %v768, %v463
    %v935 = vmul.f32 %v769, %v464
    %v936 = vpack.c.bf16 %v933, %v932
    %v937 = vpack.c.bf16 %v935, %v934
    %v939 = vsel %vm68, %v936, 0
    %v942 = vsel %vm68, %v937, 0
    %944 = vmatprep.subr.bf16.mxu0 %v805
    %945 = vmatpush1.bf16.msra.mxu0 %v804
    %946 = vmatprep.subr.bf16.mxu0 %v809
    %947 = vmatpush1.bf16.msra.mxu0 %v808
    %948 = vmatprep.subr.bf16.mxu0 0
    %949 = vmatpush1.bf16.msra.mxu0 0
    %950 = vmatprep.subr.bf16.mxu0 0
    %951 = vmatpush1.bf16.msra.mxu0 0
    %952 = vmatprep.subr.bf16.mxu0 0
    %953 = vmatpush1.bf16.msra.mxu0 0
    %954 = vmatprep.subr.bf16.mxu0 0
    %955 = vmatpush1.bf16.msra.mxu0 0
    %956 = vmatprep.subr.bf16.mxu0 0
    %957 = vmatpush1.bf16.msra.mxu0 0
    %958 = vmatprep.subr.bf16.mxu0 0
    %959 = vmatpush1.bf16.msra.mxu0 0
    %960 = vmatprep.subr.bf16.mxu0 0
    %961 = vmatpush1.bf16.msra.mxu0 0
    %962 = vmatprep.subr.bf16.mxu0 0
    %963 = vmatpush1.bf16.msra.mxu0 0
    %964 = vmatprep.subr.bf16.mxu0 0
    %965 = vmatpush1.bf16.msra.mxu0 0
    %966 = vmatprep.subr.bf16.mxu0 0
    %967 = vmatpush1.bf16.msra.mxu0 0
    %968 = vmatprep.subr.bf16.mxu0 0
    %969 = vmatpush1.bf16.msra.mxu0 0
    %970 = vmatprep.subr.bf16.mxu0 0
    %971 = vmatpush1.bf16.msra.mxu0 0
    %972 = vmatprep.subr.bf16.mxu0 0
    %973 = vmatpush1.bf16.msra.mxu0 0
    %974 = vmatprep.subr.bf16.mxu0 0
    %975 = vmatpush1.bf16.msra.mxu0 0
    %976 = vmatprep.mubr.bf16.mxu0 0
    %977 = vmatmul.mubr.bf16.gmra.mrb[0].mxu0 %v939
    %v978 = vpop.f32.mrb[0].mxu0
    %v979 = vadd.f32 0.0, %v978
    %v980 = vpop.f32.mrb[0].mxu0
    %v981 = vadd.f32 0.0, %v980
    %v982 = vpop.f32.mrb[0].mxu0
    %v983 = vadd.f32 0.0, %v982
    %v984 = vpop.f32.mrb[0].mxu0
    %v985 = vadd.f32 0.0, %v984
    %986 = vmatprep.mubr.bf16.mxu0 0
    %987 = vmatmul.mubr.bf16.gmra.mrb[0].mxu0 %v942
    %v988 = vpop.f32.mrb[0].mxu0
    %v989 = vadd.f32 0.0, %v988
    %v990 = vpop.f32.mrb[0].mxu0
    %v991 = vadd.f32 0.0, %v990
    %v992 = vpop.f32.mrb[0].mxu0
    %v993 = vadd.f32 0.0, %v992
    %v994 = vpop.f32.mrb[0].mxu0
    %v995 = vadd.f32 0.0, %v994
    %996 = vdwg.mxu0
    %997 = vmatprep.subr.bf16.mxu0 %v807
    %998 = vmatpush1.bf16.msra.mxu0 %v806
    %999 = vmatprep.subr.bf16.mxu0 %v811
    %1000 = vmatpush1.bf16.msra.mxu0 %v810
    %1001 = vmatprep.subr.bf16.mxu0 0
    %1002 = vmatpush1.bf16.msra.mxu0 0
    %1003 = vmatprep.subr.bf16.mxu0 0
    %1004 = vmatpush1.bf16.msra.mxu0 0
    %1005 = vmatprep.subr.bf16.mxu0 0
    %1006 = vmatpush1.bf16.msra.mxu0 0
    %1007 = vmatprep.subr.bf16.mxu0 0
    %1008 = vmatpush1.bf16.msra.mxu0 0
    %1009 = vmatprep.subr.bf16.mxu0 0
    %1010 = vmatpush1.bf16.msra.mxu0 0
    %1011 = vmatprep.subr.bf16.mxu0 0
    %1012 = vmatpush1.bf16.msra.mxu0 0
    %1013 = vmatprep.subr.bf16.mxu0 0
    %1014 = vmatpush1.bf16.msra.mxu0 0
    %1015 = vmatprep.subr.bf16.mxu0 0
    %1016 = vmatpush1.bf16.msra.mxu0 0
    %1017 = vmatprep.subr.bf16.mxu0 0
    %1018 = vmatpush1.bf16.msra.mxu0 0
    %1019 = vmatprep.subr.bf16.mxu0 0
    %1020 = vmatpush1.bf16.msra.mxu0 0
    %1021 = vmatprep.subr.bf16.mxu0 0
    %1022 = vmatpush1.bf16.msra.mxu0 0
    %1023 = vmatprep.subr.bf16.mxu0 0
    %1024 = vmatpush1.bf16.msra.mxu0 0
    %1025 = vmatprep.subr.bf16.mxu0 0
    %1026 = vmatpush1.bf16.msra.mxu0 0
    %1027 = vmatprep.subr.bf16.mxu0 0
    %1028 = vmatpush1.bf16.msra.mxu0 0
    %1029 = vmatprep.mubr.bf16.mxu0 0
    %1030 = vmatmul.mubr.bf16.gmra.mrb[0].mxu0 %v939
    %v1031 = vpop.f32.mrb[0].mxu0
    %v1032 = vadd.f32 0.0, %v1031
    %v1033 = vpop.f32.mrb[0].mxu0
    %v1034 = vadd.f32 0.0, %v1033
    %v1035 = vpop.f32.mrb[0].mxu0
    %v1036 = vadd.f32 0.0, %v1035
    %v1037 = vpop.f32.mrb[0].mxu0
    %v1038 = vadd.f32 0.0, %v1037
    %1039 = vmatprep.mubr.bf16.mxu0 0
    %1040 = vmatmul.mubr.bf16.gmra.mrb[0].mxu0 %v942
    %v1041 = vpop.f32.mrb[0].mxu0
    %v1042 = vadd.f32 0.0, %v1041
    %v1043 = vpop.f32.mrb[0].mxu0
    %v1044 = vadd.f32 0.0, %v1043
    %v1045 = vpop.f32.mrb[0].mxu0
    %v1046 = vadd.f32 0.0, %v1045
    %v1047 = vpop.f32.mrb[0].mxu0
    %v1048 = vadd.f32 0.0, %v1047
    %1049 = vdwg.mxu0
    %v1050 = vpack.c.bf16 %v592, %v589
    %v1051 = vpack.c.bf16 %v600, %v597
    %v1052 = vld [vmem:[%s17] sm:$0xff]
    %v1053 = vld [vmem:[%s17 + $0x8] sm:$0xff]
    %v1054 = vld [vmem:[%s17 + $0x10] sm:$0xff]
    %v1055 = vld [vmem:[%s17 + $0x18] sm:$0xff]
    %v1060 = vunpack.c.l.b16 %v1052
    %v1061 = vunpack.c.h.b16 %v1052
    %v1062 = vunpack.c.l.b16 %v1053
    %v1063 = vunpack.c.h.b16 %v1053
    %v1064 = vunpack.c.l.b16 %v1054
    %v1065 = vunpack.c.h.b16 %v1054
    %v1066 = vunpack.c.l.b16 %v1055
    %v1067 = vunpack.c.h.b16 %v1055
    %v1068 = vpack.c.b16 %v1064, %v1060
    %v1069 = vpack.c.b16 %v1065, %v1061
    %v1070 = vpack.c.b16 %v1066, %v1062
    %v1071 = vpack.c.b16 %v1067, %v1063
    %vm1076 = vcmask 130048
    %v1078 = vsel %vm1076, %v1050, 0
    %v1081 = vsel %vm1076, %v1051, 0
    %1083 = vmatprep.subr.bf16.mxu0 %v1069
    %1084 = vmatpush1.bf16.msra.mxu0 %v1068
    %1085 = vmatprep.subr.bf16.mxu0 0
    %1086 = vmatpush1.bf16.msra.mxu0 0
    %1087 = vmatprep.subr.bf16.mxu0 0
    %1088 = vmatpush1.bf16.msra.mxu0 0
    %1089 = vmatprep.subr.bf16.mxu0 0
    %1090 = vmatpush1.bf16.msra.mxu0 0
    %1091 = vmatprep.subr.bf16.mxu0 0
    %1092 = vmatpush1.bf16.msra.mxu0 0
    %1093 = vmatprep.subr.bf16.mxu0 0
    %1094 = vmatpush1.bf16.msra.mxu0 0
    %1095 = vmatprep.subr.bf16.mxu0 0
    %1096 = vmatpush1.bf16.msra.mxu0 0
    %1097 = vmatprep.subr.bf16.mxu0 0
    %1098 = vmatpush1.bf16.msra.mxu0 0
    %1099 = vmatprep.subr.bf16.mxu0 0
    %1100 = vmatpush1.bf16.msra.mxu0 0
    %1101 = vmatprep.subr.bf16.mxu0 0
    %1102 = vmatpush1.bf16.msra.mxu0 0
    %1103 = vmatprep.subr.bf16.mxu0 0
    %1104 = vmatpush1.bf16.msra.mxu0 0
    %1105 = vmatprep.subr.bf16.mxu0 0
    %1106 = vmatpush1.bf16.msra.mxu0 0
    %1107 = vmatprep.subr.bf16.mxu0 0
    %1108 = vmatpush1.bf16.msra.mxu0 0
    %1109 = vmatprep.subr.bf16.mxu0 0
    %1110 = vmatpush1.bf16.msra.mxu0 0
    %1111 = vmatprep.subr.bf16.mxu0 0
    %1112 = vmatpush1.bf16.msra.mxu0 0
    %1113 = vmatprep.subr.bf16.mxu0 0
    %1114 = vmatpush1.bf16.msra.mxu0 0
    %1115 = vmatprep.mubr.bf16.mxu0 0
    %1116 = vmatmul.mubr.bf16.gmra.mrb[0].mxu0 %v1078
    %v1117 = vpop.f32.mrb[0].mxu0
    %v1118 = vadd.f32 0.0, %v1117
    %v1119 = vpop.f32.mrb[0].mxu0
    %v1120 = vadd.f32 0.0, %v1119
    %v1121 = vpop.f32.mrb[0].mxu0
    %v1122 = vadd.f32 0.0, %v1121
    %v1123 = vpop.f32.mrb[0].mxu0
    %v1124 = vadd.f32 0.0, %v1123
    %1125 = vmatprep.mubr.bf16.mxu0 0
    %1126 = vmatmul.mubr.bf16.gmra.mrb[0].mxu0 %v1081
    %v1127 = vpop.f32.mrb[0].mxu0
    %v1128 = vadd.f32 0.0, %v1127
    %v1129 = vpop.f32.mrb[0].mxu0
    %v1130 = vadd.f32 0.0, %v1129
    %v1131 = vpop.f32.mrb[0].mxu0
    %v1132 = vadd.f32 0.0, %v1131
    %v1133 = vpop.f32.mrb[0].mxu0
    %v1134 = vadd.f32 0.0, %v1133
    %1135 = vdwg.mxu0
    %1136 = vmatprep.subr.bf16.mxu0 %v1071
    %1137 = vmatpush1.bf16.msra.mxu0 %v1070
    %1138 = vmatprep.subr.bf16.mxu0 0
    %1139 = vmatpush1.bf16.msra.mxu0 0
    %1140 = vmatprep.subr.bf16.mxu0 0
    %1141 = vmatpush1.bf16.msra.mxu0 0
    %1142 = vmatprep.subr.bf16.mxu0 0
    %1143 = vmatpush1.bf16.msra.mxu0 0
    %1144 = vmatprep.subr.bf16.mxu0 0
    %1145 = vmatpush1.bf16.msra.mxu0 0
    %1146 = vmatprep.subr.bf16.mxu0 0
    %1147 = vmatpush1.bf16.msra.mxu0 0
    %1148 = vmatprep.subr.bf16.mxu0 0
    %1149 = vmatpush1.bf16.msra.mxu0 0
    %1150 = vmatprep.subr.bf16.mxu0 0
    %1151 = vmatpush1.bf16.msra.mxu0 0
    %1152 = vmatprep.subr.bf16.mxu0 0
    %1153 = vmatpush1.bf16.msra.mxu0 0
    %1154 = vmatprep.subr.bf16.mxu0 0
    %1155 = vmatpush1.bf16.msra.mxu0 0
    %1156 = vmatprep.subr.bf16.mxu0 0
    %1157 = vmatpush1.bf16.msra.mxu0 0
    %1158 = vmatprep.subr.bf16.mxu0 0
    %1159 = vmatpush1.bf16.msra.mxu0 0
    %1160 = vmatprep.subr.bf16.mxu0 0
    %1161 = vmatpush1.bf16.msra.mxu0 0
    %1162 = vmatprep.subr.bf16.mxu0 0
    %1163 = vmatpush1.bf16.msra.mxu0 0
    %1164 = vmatprep.subr.bf16.mxu0 0
    %1165 = vmatpush1.bf16.msra.mxu0 0
    %1166 = vmatprep.subr.bf16.mxu0 0
    %1167 = vmatpush1.bf16.msra.mxu0 0
    %1168 = vmatprep.mubr.bf16.mxu0 0
    %1169 = vmatmul.mubr.bf16.gmra.mrb[0].mxu0 %v1078
    %v1170 = vpop.f32.mrb[0].mxu0
    %v1171 = vadd.f32 0.0, %v1170
    %v1172 = vpop.f32.mrb[0].mxu0
    %v1173 = vadd.f32 0.0, %v1172
    %v1174 = vpop.f32.mrb[0].mxu0
    %v1175 = vadd.f32 0.0, %v1174
    %v1176 = vpop.f32.mrb[0].mxu0
    %v1177 = vadd.f32 0.0, %v1176
    %1178 = vmatprep.mubr.bf16.mxu0 0
    %1179 = vmatmul.mubr.bf16.gmra.mrb[0].mxu0 %v1081
    %v1180 = vpop.f32.mrb[0].mxu0
    %v1181 = vadd.f32 0.0, %v1180
    %v1182 = vpop.f32.mrb[0].mxu0
    %v1183 = vadd.f32 0.0, %v1182
    %v1184 = vpop.f32.mrb[0].mxu0
    %v1185 = vadd.f32 0.0, %v1184
    %v1186 = vpop.f32.mrb[0].mxu0
    %v1187 = vadd.f32 0.0, %v1186
    %1188 = vdwg.mxu0
    %v1189 = vpack.c.bf16 %v657, %v654
    %v1190 = vpack.c.bf16 %v665, %v662
    %v1192 = vsel %vm1076, %v1189, 0
    %v1195 = vsel %vm1076, %v1190, 0
    %1197 = vmatprep.subr.bf16.mxu0 %v1069
    %1198 = vmatpush1.bf16.msra.mxu0 %v1068
    %1199 = vmatprep.subr.bf16.mxu0 0
    %1200 = vmatpush1.bf16.msra.mxu0 0
    %1201 = vmatprep.subr.bf16.mxu0 0
    %1202 = vmatpush1.bf16.msra.mxu0 0
    %1203 = vmatprep.subr.bf16.mxu0 0
    %1204 = vmatpush1.bf16.msra.mxu0 0
    %1205 = vmatprep.subr.bf16.mxu0 0
    %1206 = vmatpush1.bf16.msra.mxu0 0
    %1207 = vmatprep.subr.bf16.mxu0 0
    %1208 = vmatpush1.bf16.msra.mxu0 0
    %1209 = vmatprep.subr.bf16.mxu0 0
    %1210 = vmatpush1.bf16.msra.mxu0 0
    %1211 = vmatprep.subr.bf16.mxu0 0
    %1212 = vmatpush1.bf16.msra.mxu0 0
    %1213 = vmatprep.subr.bf16.mxu0 0
    %1214 = vmatpush1.bf16.msra.mxu0 0
    %1215 = vmatprep.subr.bf16.mxu0 0
    %1216 = vmatpush1.bf16.msra.mxu0 0
    %1217 = vmatprep.subr.bf16.mxu0 0
    %1218 = vmatpush1.bf16.msra.mxu0 0
    %1219 = vmatprep.subr.bf16.mxu0 0
    %1220 = vmatpush1.bf16.msra.mxu0 0
    %1221 = vmatprep.subr.bf16.mxu0 0
    %1222 = vmatpush1.bf16.msra.mxu0 0
    %1223 = vmatprep.subr.bf16.mxu0 0
    %1224 = vmatpush1.bf16.msra.mxu0 0
    %1225 = vmatprep.subr.bf16.mxu0 0
    %1226 = vmatpush1.bf16.msra.mxu0 0
    %1227 = vmatprep.subr.bf16.mxu0 0
    %1228 = vmatpush1.bf16.msra.mxu0 0
    %1229 = vmatprep.mubr.bf16.mxu0 0
    %1230 = vmatmul.mubr.bf16.gmra.mrb[0].mxu0 %v1192
    %v1231 = vpop.f32.mrb[0].mxu0
    %v1232 = vadd.f32 0.0, %v1231
    %v1233 = vpop.f32.mrb[0].mxu0
    %v1234 = vadd.f32 0.0, %v1233
    %v1235 = vpop.f32.mrb[0].mxu0
    %v1236 = vadd.f32 0.0, %v1235
    %v1237 = vpop.f32.mrb[0].mxu0
    %v1238 = vadd.f32 0.0, %v1237
    %1239 = vmatprep.mubr.bf16.mxu0 0
    %1240 = vmatmul.mubr.bf16.gmra.mrb[0].mxu0 %v1195
    %v1241 = vpop.f32.mrb[0].mxu0
    %v1242 = vadd.f32 0.0, %v1241
    %v1243 = vpop.f32.mrb[0].mxu0
    %v1244 = vadd.f32 0.0, %v1243
    %v1245 = vpop.f32.mrb[0].mxu0
    %v1246 = vadd.f32 0.0, %v1245
    %v1247 = vpop.f32.mrb[0].mxu0
    %v1248 = vadd.f32 0.0, %v1247
    %1249 = vdwg.mxu0
    %1250 = vmatprep.subr.bf16.mxu0 %v1071
    %1251 = vmatpush1.bf16.msra.mxu0 %v1070
    %1252 = vmatprep.subr.bf16.mxu0 0
    %1253 = vmatpush1.bf16.msra.mxu0 0
    %1254 = vmatprep.subr.bf16.mxu0 0
    %1255 = vmatpush1.bf16.msra.mxu0 0
    %1256 = vmatprep.subr.bf16.mxu0 0
    %1257 = vmatpush1.bf16.msra.mxu0 0
    %1258 = vmatprep.subr.bf16.mxu0 0
    %1259 = vmatpush1.bf16.msra.mxu0 0
    %1260 = vmatprep.subr.bf16.mxu0 0
    %1261 = vmatpush1.bf16.msra.mxu0 0
    %1262 = vmatprep.subr.bf16.mxu0 0
    %1263 = vmatpush1.bf16.msra.mxu0 0
    %1264 = vmatprep.subr.bf16.mxu0 0
    %1265 = vmatpush1.bf16.msra.mxu0 0
    %1266 = vmatprep.subr.bf16.mxu0 0
    %1267 = vmatpush1.bf16.msra.mxu0 0
    %1268 = vmatprep.subr.bf16.mxu0 0
    %1269 = vmatpush1.bf16.msra.mxu0 0
    %1270 = vmatprep.subr.bf16.mxu0 0
    %1271 = vmatpush1.bf16.msra.mxu0 0
    %1272 = vmatprep.subr.bf16.mxu0 0
    %1273 = vmatpush1.bf16.msra.mxu0 0
    %1274 = vmatprep.subr.bf16.mxu0 0
    %1275 = vmatpush1.bf16.msra.mxu0 0
    %1276 = vmatprep.subr.bf16.mxu0 0
    %1277 = vmatpush1.bf16.msra.mxu0 0
    %1278 = vmatprep.subr.bf16.mxu0 0
    %1279 = vmatpush1.bf16.msra.mxu0 0
    %1280 = vmatprep.subr.bf16.mxu0 0
    %1281 = vmatpush1.bf16.msra.mxu0 0
    %1282 = vmatprep.mubr.bf16.mxu0 0
    %1283 = vmatmul.mubr.bf16.gmra.mrb[0].mxu0 %v1192
    %v1284 = vpop.f32.mrb[0].mxu0
    %v1285 = vadd.f32 0.0, %v1284
    %v1286 = vpop.f32.mrb[0].mxu0
    %v1287 = vadd.f32 0.0, %v1286
    %v1288 = vpop.f32.mrb[0].mxu0
    %v1289 = vadd.f32 0.0, %v1288
    %v1290 = vpop.f32.mrb[0].mxu0
    %v1291 = vadd.f32 0.0, %v1290
    %1292 = vmatprep.mubr.bf16.mxu0 0
    %1293 = vmatmul.mubr.bf16.gmra.mrb[0].mxu0 %v1195
    %v1294 = vpop.f32.mrb[0].mxu0
    %v1295 = vadd.f32 0.0, %v1294
    %v1296 = vpop.f32.mrb[0].mxu0
    %v1297 = vadd.f32 0.0, %v1296
    %v1298 = vpop.f32.mrb[0].mxu0
    %v1299 = vadd.f32 0.0, %v1298
    %v1300 = vpop.f32.mrb[0].mxu0
    %v1301 = vadd.f32 0.0, %v1300
    %1302 = vdwg.mxu0
    %v1304 = vlaneseq
    %v1305 = vshrl.u32 %v1304, 7
    %v1306 = vsub.s32 0, %v1305
    %v1307 = vrot.slane %v253, %v1306
    %v1308 = vlaneseq
    %v1309 = vshrl.u32 %v1308, 7
    %v1310 = vsub.s32 1, %v1309
    %v1311 = vrot.slane %v253, %v1310
    %v1312 = vlaneseq
    %v1313 = vshrl.u32 %v1312, 7
    %v1314 = vsub.s32 2, %v1313
    %v1315 = vrot.slane %v253, %v1314
    %v1316 = vlaneseq
    %v1317 = vshrl.u32 %v1316, 7
    %v1318 = vsub.s32 3, %v1317
    %v1319 = vrot.slane %v253, %v1318
    %v1324 = vmul.f32 %v861, %v1307
    %v1325 = vmul.f32 %v863, %v1311
    %v1326 = vmul.f32 %v914, %v1315
    %v1327 = vmul.f32 %v916, %v1319
    %v1328 = vmul.f32 %v865, %v1307
    %v1329 = vmul.f32 %v867, %v1311
    %v1330 = vmul.f32 %v918, %v1315
    %v1331 = vmul.f32 %v920, %v1319
    %v1332 = vmul.f32 %v871, %v1307
    %v1333 = vmul.f32 %v873, %v1311
    %v1334 = vmul.f32 %v924, %v1315
    %v1335 = vmul.f32 %v926, %v1319
    %v1336 = vmul.f32 %v875, %v1307
    %v1337 = vmul.f32 %v877, %v1311
    %v1338 = vmul.f32 %v928, %v1315
    %v1339 = vmul.f32 %v930, %v1319
    %v1340 = vmul.f32 %v1324, 1.442695
    %v1341 = vpow.pop %v1340
    %v1342 = vmul.f32 %v1325, 1.442695
    %v1343 = vpow.pop %v1342
    %v1344 = vmul.f32 %v1326, 1.442695
    %v1345 = vpow.pop %v1344
    %v1346 = vmul.f32 %v1327, 1.442695
    %v1347 = vpow.pop %v1346
    %v1348 = vmul.f32 %v1328, 1.442695
    %v1349 = vpow.pop %v1348
    %v1350 = vmul.f32 %v1329, 1.442695
    %v1351 = vpow.pop %v1350
    %v1352 = vmul.f32 %v1330, 1.442695
    %v1353 = vpow.pop %v1352
    %v1354 = vmul.f32 %v1331, 1.442695
    %v1355 = vpow.pop %v1354
    %v1356 = vmul.f32 %v1332, 1.442695
    %v1357 = vpow.pop %v1356
    %v1358 = vmul.f32 %v1333, 1.442695
    %v1359 = vpow.pop %v1358
    %v1360 = vmul.f32 %v1334, 1.442695
    %v1361 = vpow.pop %v1360
    %v1362 = vmul.f32 %v1335, 1.442695
    %v1363 = vpow.pop %v1362
    %v1364 = vmul.f32 %v1336, 1.442695
    %v1365 = vpow.pop %v1364
    %v1366 = vmul.f32 %v1337, 1.442695
    %v1367 = vpow.pop %v1366
    %v1368 = vmul.f32 %v1338, 1.442695
    %v1369 = vpow.pop %v1368
    %v1370 = vmul.f32 %v1339, 1.442695
    %v1371 = vpow.pop %v1370
    %v1372 = vmul.f32 %v979, %v1118
    %v1373 = vmul.f32 %v981, %v1120
    %v1374 = vmul.f32 %v1032, %v1171
    %v1375 = vmul.f32 %v1034, %v1173
    %v1376 = vmul.f32 %v983, %v1122
    %v1377 = vmul.f32 %v985, %v1124
    %v1378 = vmul.f32 %v1036, %v1175
    %v1379 = vmul.f32 %v1038, %v1177
    %v1380 = vmul.f32 %v989, %v1128
    %v1381 = vmul.f32 %v991, %v1130
    %v1382 = vmul.f32 %v1042, %v1181
    %v1383 = vmul.f32 %v1044, %v1183
    %v1384 = vmul.f32 %v993, %v1132
    %v1385 = vmul.f32 %v995, %v1134
    %v1386 = vmul.f32 %v1046, %v1185
    %v1387 = vmul.f32 %v1048, %v1187
    %v1388 = vrot.slane %v1341, 7
    %v1389 = vrot.slane %v1343, 7
    %v1390 = vrot.slane %v1345, 7
    %v1391 = vrot.slane %v1347, 7
    %v1392 = vrot.slane %v1349, 7
    %v1393 = vrot.slane %v1351, 7
    %v1394 = vrot.slane %v1353, 7
    %v1395 = vrot.slane %v1355, 7
    %v1396 = vrot.slane %v1357, 7
    %v1397 = vrot.slane %v1359, 7
    %v1398 = vrot.slane %v1361, 7
    %v1399 = vrot.slane %v1363, 7
    %v1400 = vrot.slane %v1365, 7
    %v1401 = vrot.slane %v1367, 7
    %v1402 = vrot.slane %v1369, 7
    %v1403 = vrot.slane %v1371, 7
    %vm1404 = vcmp.lt.s32.totalorder %v255, 1
    %v1405 = vsel %vm1404, %v1396, %v1400
    %v1406 = vsel %vm1404, %v1397, %v1401
    %v1407 = vsel %vm1404, %v1398, %v1402
    %v1408 = vsel %vm1404, %v1399, %v1403
    %v1409 = vsel %vm1404, %v1392, %v1396
    %v1410 = vsel %vm1404, %v1393, %v1397
    %v1411 = vsel %vm1404, %v1394, %v1398
    %v1412 = vsel %vm1404, %v1395, %v1399
    %v1413 = vsel %vm1404, %v1388, %v1392
    %v1414 = vsel %vm1404, %v1389, %v1393
    %v1415 = vsel %vm1404, %v1390, %v1394
    %v1416 = vsel %vm1404, %v1391, %v1395
    %v1417 = vsel %vm1404, %v1400, %v1388
    %v1418 = vsel %vm1404, %v1401, %v1389
    %v1419 = vsel %vm1404, %v1402, %v1390
    %v1420 = vsel %vm1404, %v1403, %v1391
    %v1421 = vmul.f32 %v1417, %v315
    %v1422 = vmul.f32 %v1418, %v315
    %v1423 = vmul.f32 %v1419, %v315
    %v1424 = vmul.f32 %v1420, %v315
    %v1425 = vmul.f32 %v1413, %v316
    %v1426 = vmul.f32 %v1414, %v316
    %v1427 = vmul.f32 %v1415, %v316
    %v1428 = vmul.f32 %v1416, %v316
    %v1429 = vmul.f32 %v1409, %v317
    %v1430 = vmul.f32 %v1410, %v317
    %v1431 = vmul.f32 %v1411, %v317
    %v1432 = vmul.f32 %v1412, %v317
    %v1433 = vmul.f32 %v1405, %v318
    %v1434 = vmul.f32 %v1406, %v318
    %v1435 = vmul.f32 %v1407, %v318
    %v1436 = vmul.f32 %v1408, %v318
    %v1437 = vsub.f32 1.0, %v315
    %v1438 = vsub.f32 1.0, %v316
    %v1439 = vsub.f32 1.0, %v317
    %v1440 = vsub.f32 1.0, %v318
    %v1441 = vadd.f32 %v1421, %v1437
    %v1442 = vadd.f32 %v1422, %v1437
    %v1443 = vadd.f32 %v1423, %v1437
    %v1444 = vadd.f32 %v1424, %v1437
    %v1445 = vadd.f32 %v1425, %v1438
    %v1446 = vadd.f32 %v1426, %v1438
    %v1447 = vadd.f32 %v1427, %v1438
    %v1448 = vadd.f32 %v1428, %v1438
    %v1449 = vadd.f32 %v1429, %v1439
    %v1450 = vadd.f32 %v1430, %v1439
    %v1451 = vadd.f32 %v1431, %v1439
    %v1452 = vadd.f32 %v1432, %v1439
    %v1453 = vadd.f32 %v1433, %v1440
    %v1454 = vadd.f32 %v1434, %v1440
    %v1455 = vadd.f32 %v1435, %v1440
    %v1456 = vadd.f32 %v1436, %v1440
    %v1457 = vrot.slane %v1372, 7
    %v1458 = vrot.slane %v1373, 7
    %v1459 = vrot.slane %v1374, 7
    %v1460 = vrot.slane %v1375, 7
    %v1461 = vrot.slane %v1376, 7
    %v1462 = vrot.slane %v1377, 7
    %v1463 = vrot.slane %v1378, 7
    %v1464 = vrot.slane %v1379, 7
    %v1465 = vrot.slane %v1380, 7
    %v1466 = vrot.slane %v1381, 7
    %v1467 = vrot.slane %v1382, 7
    %v1468 = vrot.slane %v1383, 7
    %v1469 = vrot.slane %v1384, 7
    %v1470 = vrot.slane %v1385, 7
    %v1471 = vrot.slane %v1386, 7
    %v1472 = vrot.slane %v1387, 7
    %v1473 = vsel %vm1404, %v1465, %v1469
    %v1474 = vsel %vm1404, %v1466, %v1470
    %v1475 = vsel %vm1404, %v1467, %v1471
    %v1476 = vsel %vm1404, %v1468, %v1472
    %v1477 = vsel %vm1404, %v1461, %v1465
    %v1478 = vsel %vm1404, %v1462, %v1466
    %v1479 = vsel %vm1404, %v1463, %v1467
    %v1480 = vsel %vm1404, %v1464, %v1468
    %v1481 = vsel %vm1404, %v1457, %v1461
    %v1482 = vsel %vm1404, %v1458, %v1462
    %v1483 = vsel %vm1404, %v1459, %v1463
    %v1484 = vsel %vm1404, %v1460, %v1464
    %v1485 = vsel %vm1404, %v1469, %v1457
    %v1486 = vsel %vm1404, %v1470, %v1458
    %v1487 = vsel %vm1404, %v1471, %v1459
    %v1488 = vsel %vm1404, %v1472, %v1460
    %v1489 = vmul.f32 %v1485, %v315
    %v1490 = vmul.f32 %v1486, %v315
    %v1491 = vmul.f32 %v1487, %v315
    %v1492 = vmul.f32 %v1488, %v315
    %v1493 = vmul.f32 %v1481, %v316
    %v1494 = vmul.f32 %v1482, %v316
    %v1495 = vmul.f32 %v1483, %v316
    %v1496 = vmul.f32 %v1484, %v316
    %v1497 = vmul.f32 %v1477, %v317
    %v1498 = vmul.f32 %v1478, %v317
    %v1499 = vmul.f32 %v1479, %v317
    %v1500 = vmul.f32 %v1480, %v317
    %v1501 = vmul.f32 %v1473, %v318
    %v1502 = vmul.f32 %v1474, %v318
    %v1503 = vmul.f32 %v1475, %v318
    %v1504 = vmul.f32 %v1476, %v318
    %v1505 = vmul.f32 %v1341, %v1489
    %v1506 = vmul.f32 %v1343, %v1490
    %v1507 = vmul.f32 %v1345, %v1491
    %v1508 = vmul.f32 %v1347, %v1492
    %v1509 = vmul.f32 %v1349, %v1493
    %v1510 = vmul.f32 %v1351, %v1494
    %v1511 = vmul.f32 %v1353, %v1495
    %v1512 = vmul.f32 %v1355, %v1496
    %v1513 = vmul.f32 %v1357, %v1497
    %v1514 = vmul.f32 %v1359, %v1498
    %v1515 = vmul.f32 %v1361, %v1499
    %v1516 = vmul.f32 %v1363, %v1500
    %v1517 = vmul.f32 %v1365, %v1501
    %v1518 = vmul.f32 %v1367, %v1502
    %v1519 = vmul.f32 %v1369, %v1503
    %v1520 = vmul.f32 %v1371, %v1504
    %v1521 = vadd.f32 %v1372, %v1505
    %v1522 = vadd.f32 %v1373, %v1506
    %v1523 = vadd.f32 %v1374, %v1507
    %v1524 = vadd.f32 %v1375, %v1508
    %v1525 = vadd.f32 %v1376, %v1509
    %v1526 = vadd.f32 %v1377, %v1510
    %v1527 = vadd.f32 %v1378, %v1511
    %v1528 = vadd.f32 %v1379, %v1512
    %v1529 = vadd.f32 %v1380, %v1513
    %v1530 = vadd.f32 %v1381, %v1514
    %v1531 = vadd.f32 %v1382, %v1515
    %v1532 = vadd.f32 %v1383, %v1516
    %v1533 = vadd.f32 %v1384, %v1517
    %v1534 = vadd.f32 %v1385, %v1518
    %v1535 = vadd.f32 %v1386, %v1519
    %v1536 = vadd.f32 %v1387, %v1520
    %v1537 = vmul.f32 %v1341, %v1441
    %v1538 = vmul.f32 %v1343, %v1442
    %v1539 = vmul.f32 %v1345, %v1443
    %v1540 = vmul.f32 %v1347, %v1444
    %v1541 = vmul.f32 %v1349, %v1445
    %v1542 = vmul.f32 %v1351, %v1446
    %v1543 = vmul.f32 %v1353, %v1447
    %v1544 = vmul.f32 %v1355, %v1448
    %v1545 = vmul.f32 %v1357, %v1449
    %v1546 = vmul.f32 %v1359, %v1450
    %v1547 = vmul.f32 %v1361, %v1451
    %v1548 = vmul.f32 %v1363, %v1452
    %v1549 = vmul.f32 %v1365, %v1453
    %v1550 = vmul.f32 %v1367, %v1454
    %v1551 = vmul.f32 %v1369, %v1455
    %v1552 = vmul.f32 %v1371, %v1456
    %v1553 = vrot.slane %v1537, 6
    %v1554 = vrot.slane %v1538, 6
    %v1555 = vrot.slane %v1539, 6
    %v1556 = vrot.slane %v1540, 6
    %v1557 = vrot.slane %v1541, 6
    %v1558 = vrot.slane %v1542, 6
    %v1559 = vrot.slane %v1543, 6
    %v1560 = vrot.slane %v1544, 6
    %v1561 = vrot.slane %v1545, 6
    %v1562 = vrot.slane %v1546, 6
    %v1563 = vrot.slane %v1547, 6
    %v1564 = vrot.slane %v1548, 6
    %v1565 = vrot.slane %v1549, 6
    %v1566 = vrot.slane %v1550, 6
    %v1567 = vrot.slane %v1551, 6
    %v1568 = vrot.slane %v1552, 6
    %vm1569 = vcmp.lt.s32.totalorder %v255, 2
    %v1570 = vsel %vm1569, %v1561, %v1565
    %v1571 = vsel %vm1569, %v1562, %v1566
    %v1572 = vsel %vm1569, %v1563, %v1567
    %v1573 = vsel %vm1569, %v1564, %v1568
    %v1574 = vsel %vm1569, %v1557, %v1561
    %v1575 = vsel %vm1569, %v1558, %v1562
    %v1576 = vsel %vm1569, %v1559, %v1563
    %v1577 = vsel %vm1569, %v1560, %v1564
    %v1578 = vsel %vm1569, %v1553, %v1557
    %v1579 = vsel %vm1569, %v1554, %v1558
    %v1580 = vsel %vm1569, %v1555, %v1559
    %v1581 = vsel %vm1569, %v1556, %v1560
    %v1582 = vsel %vm1569, %v1565, %v1553
    %v1583 = vsel %vm1569, %v1566, %v1554
    %v1584 = vsel %vm1569, %v1567, %v1555
    %v1585 = vsel %vm1569, %v1568, %v1556
    %v1586 = vmul.f32 %v1582, %v327
    %v1587 = vmul.f32 %v1583, %v327
    %v1588 = vmul.f32 %v1584, %v327
    %v1589 = vmul.f32 %v1585, %v327
    %v1590 = vmul.f32 %v1578, %v328
    %v1591 = vmul.f32 %v1579, %v328
    %v1592 = vmul.f32 %v1580, %v328
    %v1593 = vmul.f32 %v1581, %v328
    %v1594 = vmul.f32 %v1574, %v329
    %v1595 = vmul.f32 %v1575, %v329
    %v1596 = vmul.f32 %v1576, %v329
    %v1597 = vmul.f32 %v1577, %v329
    %v1598 = vmul.f32 %v1570, %v330
    %v1599 = vmul.f32 %v1571, %v330
    %v1600 = vmul.f32 %v1572, %v330
    %v1601 = vmul.f32 %v1573, %v330
    %v1602 = vsub.f32 1.0, %v327
    %v1603 = vsub.f32 1.0, %v328
    %v1604 = vsub.f32 1.0, %v329
    %v1605 = vsub.f32 1.0, %v330
    %v1606 = vadd.f32 %v1586, %v1602
    %v1607 = vadd.f32 %v1587, %v1602
    %v1608 = vadd.f32 %v1588, %v1602
    %v1609 = vadd.f32 %v1589, %v1602
    %v1610 = vadd.f32 %v1590, %v1603
    %v1611 = vadd.f32 %v1591, %v1603
    %v1612 = vadd.f32 %v1592, %v1603
    %v1613 = vadd.f32 %v1593, %v1603
    %v1614 = vadd.f32 %v1594, %v1604
    %v1615 = vadd.f32 %v1595, %v1604
    %v1616 = vadd.f32 %v1596, %v1604
    %v1617 = vadd.f32 %v1597, %v1604
    %v1618 = vadd.f32 %v1598, %v1605
    %v1619 = vadd.f32 %v1599, %v1605
    %v1620 = vadd.f32 %v1600, %v1605
    %v1621 = vadd.f32 %v1601, %v1605
    %v1622 = vrot.slane %v1521, 6
    %v1623 = vrot.slane %v1522, 6
    %v1624 = vrot.slane %v1523, 6
    %v1625 = vrot.slane %v1524, 6
    %v1626 = vrot.slane %v1525, 6
    %v1627 = vrot.slane %v1526, 6
    %v1628 = vrot.slane %v1527, 6
    %v1629 = vrot.slane %v1528, 6
    %v1630 = vrot.slane %v1529, 6
    %v1631 = vrot.slane %v1530, 6
    %v1632 = vrot.slane %v1531, 6
    %v1633 = vrot.slane %v1532, 6
    %v1634 = vrot.slane %v1533, 6
    %v1635 = vrot.slane %v1534, 6
    %v1636 = vrot.slane %v1535, 6
    %v1637 = vrot.slane %v1536, 6
    %v1638 = vsel %vm1569, %v1630, %v1634
    %v1639 = vsel %vm1569, %v1631, %v1635
    %v1640 = vsel %vm1569, %v1632, %v1636
    %v1641 = vsel %vm1569, %v1633, %v1637
    %v1642 = vsel %vm1569, %v1626, %v1630
    %v1643 = vsel %vm1569, %v1627, %v1631
    %v1644 = vsel %vm1569, %v1628, %v1632
    %v1645 = vsel %vm1569, %v1629, %v1633
    %v1646 = vsel %vm1569, %v1622, %v1626
    %v1647 = vsel %vm1569, %v1623, %v1627
    %v1648 = vsel %vm1569, %v1624, %v1628
    %v1649 = vsel %vm1569, %v1625, %v1629
    %v1650 = vsel %vm1569, %v1634, %v1622
    %v1651 = vsel %vm1569, %v1635, %v1623
    %v1652 = vsel %vm1569, %v1636, %v1624
    %v1653 = vsel %vm1569, %v1637, %v1625
    %v1654 = vmul.f32 %v1650, %v327
    %v1655 = vmul.f32 %v1651, %v327
    %v1656 = vmul.f32 %v1652, %v327
    %v1657 = vmul.f32 %v1653, %v327
    %v1658 = vmul.f32 %v1646, %v328
    %v1659 = vmul.f32 %v1647, %v328
    %v1660 = vmul.f32 %v1648, %v328
    %v1661 = vmul.f32 %v1649, %v328
    %v1662 = vmul.f32 %v1642, %v329
    %v1663 = vmul.f32 %v1643, %v329
    %v1664 = vmul.f32 %v1644, %v329
    %v1665 = vmul.f32 %v1645, %v329
    %v1666 = vmul.f32 %v1638, %v330
    %v1667 = vmul.f32 %v1639, %v330
    %v1668 = vmul.f32 %v1640, %v330
    %v1669 = vmul.f32 %v1641, %v330
    %v1670 = vmul.f32 %v1537, %v1654
    %v1671 = vmul.f32 %v1538, %v1655
    %v1672 = vmul.f32 %v1539, %v1656
    %v1673 = vmul.f32 %v1540, %v1657
    %v1674 = vmul.f32 %v1541, %v1658
    %v1675 = vmul.f32 %v1542, %v1659
    %v1676 = vmul.f32 %v1543, %v1660
    %v1677 = vmul.f32 %v1544, %v1661
    %v1678 = vmul.f32 %v1545, %v1662
    %v1679 = vmul.f32 %v1546, %v1663
    %v1680 = vmul.f32 %v1547, %v1664
    %v1681 = vmul.f32 %v1548, %v1665
    %v1682 = vmul.f32 %v1549, %v1666
    %v1683 = vmul.f32 %v1550, %v1667
    %v1684 = vmul.f32 %v1551, %v1668
    %v1685 = vmul.f32 %v1552, %v1669
    %v1686 = vadd.f32 %v1521, %v1670
    %v1687 = vadd.f32 %v1522, %v1671
    %v1688 = vadd.f32 %v1523, %v1672
    %v1689 = vadd.f32 %v1524, %v1673
    %v1690 = vadd.f32 %v1525, %v1674
    %v1691 = vadd.f32 %v1526, %v1675
    %v1692 = vadd.f32 %v1527, %v1676
    %v1693 = vadd.f32 %v1528, %v1677
    %v1694 = vadd.f32 %v1529, %v1678
    %v1695 = vadd.f32 %v1530, %v1679
    %v1696 = vadd.f32 %v1531, %v1680
    %v1697 = vadd.f32 %v1532, %v1681
    %v1698 = vadd.f32 %v1533, %v1682
    %v1699 = vadd.f32 %v1534, %v1683
    %v1700 = vadd.f32 %v1535, %v1684
    %v1701 = vadd.f32 %v1536, %v1685
    %v1702 = vmul.f32 %v1537, %v1606
    %v1703 = vmul.f32 %v1538, %v1607
    %v1704 = vmul.f32 %v1539, %v1608
    %v1705 = vmul.f32 %v1540, %v1609
    %v1706 = vmul.f32 %v1541, %v1610
    %v1707 = vmul.f32 %v1542, %v1611
    %v1708 = vmul.f32 %v1543, %v1612
    %v1709 = vmul.f32 %v1544, %v1613
    %v1710 = vmul.f32 %v1545, %v1614
    %v1711 = vmul.f32 %v1546, %v1615
    %v1712 = vmul.f32 %v1547, %v1616
    %v1713 = vmul.f32 %v1548, %v1617
    %v1714 = vmul.f32 %v1549, %v1618
    %v1715 = vmul.f32 %v1550, %v1619
    %v1716 = vmul.f32 %v1551, %v1620
    %v1717 = vmul.f32 %v1552, %v1621
    %v1718 = vrot.slane %v1702, 4
    %v1719 = vrot.slane %v1703, 4
    %v1720 = vrot.slane %v1704, 4
    %v1721 = vrot.slane %v1705, 4
    %v1722 = vrot.slane %v1706, 4
    %v1723 = vrot.slane %v1707, 4
    %v1724 = vrot.slane %v1708, 4
    %v1725 = vrot.slane %v1709, 4
    %v1726 = vrot.slane %v1710, 4
    %v1727 = vrot.slane %v1711, 4
    %v1728 = vrot.slane %v1712, 4
    %v1729 = vrot.slane %v1713, 4
    %v1730 = vrot.slane %v1714, 4
    %v1731 = vrot.slane %v1715, 4
    %v1732 = vrot.slane %v1716, 4
    %v1733 = vrot.slane %v1717, 4
    %vm1734 = vcmp.lt.s32.totalorder %v255, 4
    %v1735 = vsel %vm1734, %v1726, %v1730
    %v1736 = vsel %vm1734, %v1727, %v1731
    %v1737 = vsel %vm1734, %v1728, %v1732
    %v1738 = vsel %vm1734, %v1729, %v1733
    %v1739 = vsel %vm1734, %v1722, %v1726
    %v1740 = vsel %vm1734, %v1723, %v1727
    %v1741 = vsel %vm1734, %v1724, %v1728
    %v1742 = vsel %vm1734, %v1725, %v1729
    %v1743 = vsel %vm1734, %v1718, %v1722
    %v1744 = vsel %vm1734, %v1719, %v1723
    %v1745 = vsel %vm1734, %v1720, %v1724
    %v1746 = vsel %vm1734, %v1721, %v1725
    %v1747 = vsel %vm1734, %v1730, %v1718
    %v1748 = vsel %vm1734, %v1731, %v1719
    %v1749 = vsel %vm1734, %v1732, %v1720
    %v1750 = vsel %vm1734, %v1733, %v1721
    %v1751 = vmul.f32 %v1747, %v339
    %v1752 = vmul.f32 %v1748, %v339
    %v1753 = vmul.f32 %v1749, %v339
    %v1754 = vmul.f32 %v1750, %v339
    %v1755 = vmul.f32 %v1743, %v340
    %v1756 = vmul.f32 %v1744, %v340
    %v1757 = vmul.f32 %v1745, %v340
    %v1758 = vmul.f32 %v1746, %v340
    %v1759 = vmul.f32 %v1739, %v341
    %v1760 = vmul.f32 %v1740, %v341
    %v1761 = vmul.f32 %v1741, %v341
    %v1762 = vmul.f32 %v1742, %v341
    %v1763 = vmul.f32 %v1735, %v342
    %v1764 = vmul.f32 %v1736, %v342
    %v1765 = vmul.f32 %v1737, %v342
    %v1766 = vmul.f32 %v1738, %v342
    %v1767 = vsub.f32 1.0, %v339
    %v1768 = vsub.f32 1.0, %v340
    %v1769 = vsub.f32 1.0, %v341
    %v1770 = vsub.f32 1.0, %v342
    %v1771 = vadd.f32 %v1751, %v1767
    %v1772 = vadd.f32 %v1752, %v1767
    %v1773 = vadd.f32 %v1753, %v1767
    %v1774 = vadd.f32 %v1754, %v1767
    %v1775 = vadd.f32 %v1755, %v1768
    %v1776 = vadd.f32 %v1756, %v1768
    %v1777 = vadd.f32 %v1757, %v1768
    %v1778 = vadd.f32 %v1758, %v1768
    %v1779 = vadd.f32 %v1759, %v1769
    %v1780 = vadd.f32 %v1760, %v1769
    %v1781 = vadd.f32 %v1761, %v1769
    %v1782 = vadd.f32 %v1762, %v1769
    %v1783 = vadd.f32 %v1763, %v1770
    %v1784 = vadd.f32 %v1764, %v1770
    %v1785 = vadd.f32 %v1765, %v1770
    %v1786 = vadd.f32 %v1766, %v1770
    %v1787 = vrot.slane %v1686, 4
    %v1788 = vrot.slane %v1687, 4
    %v1789 = vrot.slane %v1688, 4
    %v1790 = vrot.slane %v1689, 4
    %v1791 = vrot.slane %v1690, 4
    %v1792 = vrot.slane %v1691, 4
    %v1793 = vrot.slane %v1692, 4
    %v1794 = vrot.slane %v1693, 4
    %v1795 = vrot.slane %v1694, 4
    %v1796 = vrot.slane %v1695, 4
    %v1797 = vrot.slane %v1696, 4
    %v1798 = vrot.slane %v1697, 4
    %v1799 = vrot.slane %v1698, 4
    %v1800 = vrot.slane %v1699, 4
    %v1801 = vrot.slane %v1700, 4
    %v1802 = vrot.slane %v1701, 4
    %v1803 = vsel %vm1734, %v1795, %v1799
    %v1804 = vsel %vm1734, %v1796, %v1800
    %v1805 = vsel %vm1734, %v1797, %v1801
    %v1806 = vsel %vm1734, %v1798, %v1802
    %v1807 = vsel %vm1734, %v1791, %v1795
    %v1808 = vsel %vm1734, %v1792, %v1796
    %v1809 = vsel %vm1734, %v1793, %v1797
    %v1810 = vsel %vm1734, %v1794, %v1798
    %v1811 = vsel %vm1734, %v1787, %v1791
    %v1812 = vsel %vm1734, %v1788, %v1792
    %v1813 = vsel %vm1734, %v1789, %v1793
    %v1814 = vsel %vm1734, %v1790, %v1794
    %v1815 = vsel %vm1734, %v1799, %v1787
    %v1816 = vsel %vm1734, %v1800, %v1788
    %v1817 = vsel %vm1734, %v1801, %v1789
    %v1818 = vsel %vm1734, %v1802, %v1790
    %v1819 = vmul.f32 %v1815, %v339
    %v1820 = vmul.f32 %v1816, %v339
    %v1821 = vmul.f32 %v1817, %v339
    %v1822 = vmul.f32 %v1818, %v339
    %v1823 = vmul.f32 %v1811, %v340
    %v1824 = vmul.f32 %v1812, %v340
    %v1825 = vmul.f32 %v1813, %v340
    %v1826 = vmul.f32 %v1814, %v340
    %v1827 = vmul.f32 %v1807, %v341
    %v1828 = vmul.f32 %v1808, %v341
    %v1829 = vmul.f32 %v1809, %v341
    %v1830 = vmul.f32 %v1810, %v341
    %v1831 = vmul.f32 %v1803, %v342
    %v1832 = vmul.f32 %v1804, %v342
    %v1833 = vmul.f32 %v1805, %v342
    %v1834 = vmul.f32 %v1806, %v342
    %v1835 = vmul.f32 %v1702, %v1819
    %v1836 = vmul.f32 %v1703, %v1820
    %v1837 = vmul.f32 %v1704, %v1821
    %v1838 = vmul.f32 %v1705, %v1822
    %v1839 = vmul.f32 %v1706, %v1823
    %v1840 = vmul.f32 %v1707, %v1824
    %v1841 = vmul.f32 %v1708, %v1825
    %v1842 = vmul.f32 %v1709, %v1826
    %v1843 = vmul.f32 %v1710, %v1827
    %v1844 = vmul.f32 %v1711, %v1828
    %v1845 = vmul.f32 %v1712, %v1829
    %v1846 = vmul.f32 %v1713, %v1830
    %v1847 = vmul.f32 %v1714, %v1831
    %v1848 = vmul.f32 %v1715, %v1832
    %v1849 = vmul.f32 %v1716, %v1833
    %v1850 = vmul.f32 %v1717, %v1834
    %v1851 = vadd.f32 %v1686, %v1835
    %v1852 = vadd.f32 %v1687, %v1836
    %v1853 = vadd.f32 %v1688, %v1837
    %v1854 = vadd.f32 %v1689, %v1838
    %v1855 = vadd.f32 %v1690, %v1839
    %v1856 = vadd.f32 %v1691, %v1840
    %v1857 = vadd.f32 %v1692, %v1841
    %v1858 = vadd.f32 %v1693, %v1842
    %v1859 = vadd.f32 %v1694, %v1843
    %v1860 = vadd.f32 %v1695, %v1844
    %v1861 = vadd.f32 %v1696, %v1845
    %v1862 = vadd.f32 %v1697, %v1846
    %v1863 = vadd.f32 %v1698, %v1847
    %v1864 = vadd.f32 %v1699, %v1848
    %v1865 = vadd.f32 %v1700, %v1849
    %v1866 = vadd.f32 %v1701, %v1850
    %v1867 = vmul.f32 %v1702, %v1771
    %v1868 = vmul.f32 %v1703, %v1772
    %v1869 = vmul.f32 %v1704, %v1773
    %v1870 = vmul.f32 %v1705, %v1774
    %v1871 = vmul.f32 %v1706, %v1775
    %v1872 = vmul.f32 %v1707, %v1776
    %v1873 = vmul.f32 %v1708, %v1777
    %v1874 = vmul.f32 %v1709, %v1778
    %v1875 = vmul.f32 %v1710, %v1779
    %v1876 = vmul.f32 %v1711, %v1780
    %v1877 = vmul.f32 %v1712, %v1781
    %v1878 = vmul.f32 %v1713, %v1782
    %v1879 = vmul.f32 %v1714, %v1783
    %v1880 = vmul.f32 %v1715, %v1784
    %v1881 = vmul.f32 %v1716, %v1785
    %v1882 = vmul.f32 %v1717, %v1786
    %v1883 = vmul.f32 %v1863, %v351
    %v1884 = vmul.f32 %v1864, %v351
    %v1885 = vmul.f32 %v1865, %v351
    %v1886 = vmul.f32 %v1866, %v351
    %v1887 = vmul.f32 %v1851, %v352
    %v1888 = vmul.f32 %v1852, %v352
    %v1889 = vmul.f32 %v1853, %v352
    %v1890 = vmul.f32 %v1854, %v352
    %v1891 = vmul.f32 %v1855, %v353
    %v1892 = vmul.f32 %v1856, %v353
    %v1893 = vmul.f32 %v1857, %v353
    %v1894 = vmul.f32 %v1858, %v353
    %v1895 = vmul.f32 %v1859, %v354
    %v1896 = vmul.f32 %v1860, %v354
    %v1897 = vmul.f32 %v1861, %v354
    %v1898 = vmul.f32 %v1862, %v354
    %v1899 = vmul.f32 %v1867, %v1883
    %v1900 = vmul.f32 %v1868, %v1884
    %v1901 = vmul.f32 %v1869, %v1885
    %v1902 = vmul.f32 %v1870, %v1886
    %v1903 = vmul.f32 %v1871, %v1887
    %v1904 = vmul.f32 %v1872, %v1888
    %v1905 = vmul.f32 %v1873, %v1889
    %v1906 = vmul.f32 %v1874, %v1890
    %v1907 = vmul.f32 %v1875, %v1891
    %v1908 = vmul.f32 %v1876, %v1892
    %v1909 = vmul.f32 %v1877, %v1893
    %v1910 = vmul.f32 %v1878, %v1894
    %v1911 = vmul.f32 %v1879, %v1895
    %v1912 = vmul.f32 %v1880, %v1896
    %v1913 = vmul.f32 %v1881, %v1897
    %v1914 = vmul.f32 %v1882, %v1898
    %v1915 = vadd.f32 %v1851, %v1899
    %v1916 = vadd.f32 %v1852, %v1900
    %v1917 = vadd.f32 %v1853, %v1901
    %v1918 = vadd.f32 %v1854, %v1902
    %v1919 = vadd.f32 %v1855, %v1903
    %v1920 = vadd.f32 %v1856, %v1904
    %v1921 = vadd.f32 %v1857, %v1905
    %v1922 = vadd.f32 %v1858, %v1906
    %v1923 = vadd.f32 %v1859, %v1907
    %v1924 = vadd.f32 %v1860, %v1908
    %v1925 = vadd.f32 %v1861, %v1909
    %v1926 = vadd.f32 %v1862, %v1910
    %v1927 = vadd.f32 %v1863, %v1911
    %v1928 = vadd.f32 %v1864, %v1912
    %v1929 = vadd.f32 %v1865, %v1913
    %v1930 = vadd.f32 %v1866, %v1914
    %v1931 = vmul.f32 %v1915, %v1232
    %v1932 = vmul.f32 %v1916, %v1234
    %v1933 = vmul.f32 %v1917, %v1285
    %v1934 = vmul.f32 %v1918, %v1287
    %v1935 = vmul.f32 %v1919, %v1236
    %v1936 = vmul.f32 %v1920, %v1238
    %v1937 = vmul.f32 %v1921, %v1289
    %v1938 = vmul.f32 %v1922, %v1291
    %v1939 = vmul.f32 %v1923, %v1242
    %v1940 = vmul.f32 %v1924, %v1244
    %v1941 = vmul.f32 %v1925, %v1295
    %v1942 = vmul.f32 %v1926, %v1297
    %v1943 = vmul.f32 %v1927, %v1246
    %v1944 = vmul.f32 %v1928, %v1248
    %v1945 = vmul.f32 %v1929, %v1299
    %v1946 = vmul.f32 %v1930, %v1301
    %v1947 = vpack.c.bf16 %v1935, %v1931
    %v1948 = vpack.c.bf16 %v1936, %v1932
    %v1949 = vpack.c.bf16 %v1937, %v1933
    %v1950 = vpack.c.bf16 %v1938, %v1934
    %v1951 = vpack.c.bf16 %v1943, %v1939
    %v1952 = vpack.c.bf16 %v1944, %v1940
    %v1953 = vpack.c.bf16 %v1945, %v1941
    %v1954 = vpack.c.bf16 %v1946, %v1942
    %v1955 = vld [vmem:[%s18] sm:$0xf]
    %v1956 = vld [vmem:[%s18 + $0x4] sm:$0xf]
    %v1957 = vld [vmem:[%s18 + $0x8] sm:$0xf]
    %v1958 = vld [vmem:[%s18 + $0xc] sm:$0xf]
    %v1959 = vld [vmem:[%s18 + $0x10] sm:$0xf]
    %v1960 = vld [vmem:[%s18 + $0x14] sm:$0xf]
    %v1961 = vld [vmem:[%s18 + $0x18] sm:$0xf]
    %v1962 = vld [vmem:[%s18 + $0x1c] sm:$0xf]
    %v1963 = vld [vmem:[%s18 + $0x20] sm:$0xf]
    %v1964 = vld [vmem:[%s18 + $0x24] sm:$0xf]
    %v1965 = vld [vmem:[%s18 + $0x28] sm:$0xf]
    %v1966 = vld [vmem:[%s18 + $0x2c] sm:$0xf]
    %v1967 = vld [vmem:[%s18 + $0x30] sm:$0xf]
    %v1968 = vld [vmem:[%s18 + $0x34] sm:$0xf]
    %v1969 = vld [vmem:[%s18 + $0x38] sm:$0xf]
    %v1970 = vld [vmem:[%s18 + $0x3c] sm:$0xf]
    %v1971 = vld [vmem:[%s18 + $0x40] sm:$0xf]
    %v1972 = vld [vmem:[%s18 + $0x44] sm:$0xf]
    %v1973 = vld [vmem:[%s18 + $0x48] sm:$0xf]
    %v1974 = vld [vmem:[%s18 + $0x4c] sm:$0xf]
    %v1975 = vld [vmem:[%s18 + $0x50] sm:$0xf]
    %v1976 = vld [vmem:[%s18 + $0x54] sm:$0xf]
    %v1977 = vld [vmem:[%s18 + $0x58] sm:$0xf]
    %v1978 = vld [vmem:[%s18 + $0x5c] sm:$0xf]
    %v1979 = vld [vmem:[%s18 + $0x60] sm:$0xf]
    %v1980 = vld [vmem:[%s18 + $0x64] sm:$0xf]
    %v1981 = vld [vmem:[%s18 + $0x68] sm:$0xf]
    %v1982 = vld [vmem:[%s18 + $0x6c] sm:$0xf]
    %v1983 = vld [vmem:[%s18 + $0x70] sm:$0xf]
    %v1984 = vld [vmem:[%s18 + $0x74] sm:$0xf]
    %v1985 = vld [vmem:[%s18 + $0x78] sm:$0xf]
    %v1986 = vld [vmem:[%s18 + $0x7c] sm:$0xf]
    %v1987 = vld [vmem:[%s18 + $0x80] sm:$0xf]
    %v1988 = vld [vmem:[%s18 + $0x84] sm:$0xf]
    %v1989 = vld [vmem:[%s18 + $0x88] sm:$0xf]
    %v1990 = vld [vmem:[%s18 + $0x8c] sm:$0xf]
    %v1991 = vld [vmem:[%s18 + $0x90] sm:$0xf]
    %v1992 = vld [vmem:[%s18 + $0x94] sm:$0xf]
    %v1993 = vld [vmem:[%s18 + $0x98] sm:$0xf]
    %v1994 = vld [vmem:[%s18 + $0x9c] sm:$0xf]
    %v1995 = vld [vmem:[%s18 + $0xa0] sm:$0xf]
    %v1996 = vld [vmem:[%s18 + $0xa4] sm:$0xf]
    %v1997 = vld [vmem:[%s18 + $0xa8] sm:$0xf]
    %v1998 = vld [vmem:[%s18 + $0xac] sm:$0xf]
    %v1999 = vld [vmem:[%s18 + $0xb0] sm:$0xf]
    %v2000 = vld [vmem:[%s18 + $0xb4] sm:$0xf]
    %v2001 = vld [vmem:[%s18 + $0xb8] sm:$0xf]
    %v2002 = vld [vmem:[%s18 + $0xbc] sm:$0xf]
    %v2003 = vld [vmem:[%s18 + $0xc0] sm:$0xf]
    %v2004 = vld [vmem:[%s18 + $0xc4] sm:$0xf]
    %v2005 = vld [vmem:[%s18 + $0xc8] sm:$0xf]
    %v2006 = vld [vmem:[%s18 + $0xcc] sm:$0xf]
    %v2007 = vld [vmem:[%s18 + $0xd0] sm:$0xf]
    %v2008 = vld [vmem:[%s18 + $0xd4] sm:$0xf]
    %v2009 = vld [vmem:[%s18 + $0xd8] sm:$0xf]
    %v2010 = vld [vmem:[%s18 + $0xdc] sm:$0xf]
    %v2011 = vld [vmem:[%s18 + $0xe0] sm:$0xf]
    %v2012 = vld [vmem:[%s18 + $0xe4] sm:$0xf]
    %v2013 = vld [vmem:[%s18 + $0xe8] sm:$0xf]
    %v2014 = vld [vmem:[%s18 + $0xec] sm:$0xf]
    %v2015 = vld [vmem:[%s18 + $0xf0] sm:$0xf]
    %v2016 = vld [vmem:[%s18 + $0xf4] sm:$0xf]
    %v2017 = vld [vmem:[%s18 + $0xf8] sm:$0xf]
    %v2018 = vld [vmem:[%s18 + $0xfc] sm:$0xf]
    %v2019 = vld [vmem:[%s15] sm:$0x1]
    %v2021 = vlaneseq
    %v2022 = vshrl.u32 %v2021, 7
    %v2023 = vsub.s32 0, %v2022
    %v2024 = vrot.slane %v2019, %v2023
    %v2026 = vmul.f32 %v2024, %v461
    %v2027 = vmul.f32 %v2024, %v462
    %v2028 = vmul.f32 %v2024, %v463
    %v2029 = vmul.f32 %v2024, %v464
    %v2094 = vunpack.c.l.b16 %v1955
    %v2095 = vunpack.c.l.b16 %v1956
    %v2096 = vunpack.c.l.b16 %v1957
    %v2097 = vunpack.c.l.b16 %v1958
    %v2098 = vunpack.c.l.b16 %v1959
    %v2099 = vunpack.c.l.b16 %v1960
    %v2100 = vunpack.c.l.b16 %v1961
    %v2101 = vunpack.c.l.b16 %v1962
    %v2102 = vunpack.c.l.b16 %v1963
    %v2103 = vunpack.c.l.b16 %v1964
    %v2104 = vunpack.c.l.b16 %v1965
    %v2105 = vunpack.c.l.b16 %v1966
    %v2106 = vunpack.c.l.b16 %v1967
    %v2107 = vunpack.c.l.b16 %v1968
    %v2108 = vunpack.c.l.b16 %v1969
    %v2109 = vunpack.c.l.b16 %v1970
    %v2110 = vunpack.c.l.b16 %v1971
    %v2111 = vunpack.c.l.b16 %v1972
    %v2112 = vunpack.c.l.b16 %v1973
    %v2113 = vunpack.c.l.b16 %v1974
    %v2114 = vunpack.c.l.b16 %v1975
    %v2115 = vunpack.c.l.b16 %v1976
    %v2116 = vunpack.c.l.b16 %v1977
    %v2117 = vunpack.c.l.b16 %v1978
    %v2118 = vunpack.c.l.b16 %v1979
    %v2119 = vunpack.c.l.b16 %v1980
    %v2120 = vunpack.c.l.b16 %v1981
    %v2121 = vunpack.c.l.b16 %v1982
    %v2122 = vunpack.c.l.b16 %v1983
    %v2123 = vunpack.c.l.b16 %v1984
    %v2124 = vunpack.c.l.b16 %v1985
    %v2125 = vunpack.c.l.b16 %v1986
    %v2126 = vunpack.c.l.b16 %v1987
    %v2127 = vunpack.c.l.b16 %v1988
    %v2128 = vunpack.c.l.b16 %v1989
    %v2129 = vunpack.c.l.b16 %v1990
    %v2130 = vunpack.c.l.b16 %v1991
    %v2131 = vunpack.c.l.b16 %v1992
    %v2132 = vunpack.c.l.b16 %v1993
    %v2133 = vunpack.c.l.b16 %v1994
    %v2134 = vunpack.c.l.b16 %v1995
    %v2135 = vunpack.c.l.b16 %v1996
    %v2136 = vunpack.c.l.b16 %v1997
    %v2137 = vunpack.c.l.b16 %v1998
    %v2138 = vunpack.c.l.b16 %v1999
    %v2139 = vunpack.c.l.b16 %v2000
    %v2140 = vunpack.c.l.b16 %v2001
    %v2141 = vunpack.c.l.b16 %v2002
    %v2142 = vunpack.c.l.b16 %v2003
    %v2143 = vunpack.c.l.b16 %v2004
    %v2144 = vunpack.c.l.b16 %v2005
    %v2145 = vunpack.c.l.b16 %v2006
    %v2146 = vunpack.c.l.b16 %v2007
    %v2147 = vunpack.c.l.b16 %v2008
    %v2148 = vunpack.c.l.b16 %v2009
    %v2149 = vunpack.c.l.b16 %v2010
    %v2150 = vunpack.c.l.b16 %v2011
    %v2151 = vunpack.c.l.b16 %v2012
    %v2152 = vunpack.c.l.b16 %v2013
    %v2153 = vunpack.c.l.b16 %v2014
    %v2154 = vunpack.c.l.b16 %v2015
    %v2155 = vunpack.c.l.b16 %v2016
    %v2156 = vunpack.c.l.b16 %v2017
    %v2157 = vunpack.c.l.b16 %v2018
    %v2158 = vpack.c.b16 %v2095, %v2094
    %v2159 = vpack.c.b16 %v2097, %v2096
    %v2160 = vpack.c.b16 %v2099, %v2098
    %v2161 = vpack.c.b16 %v2101, %v2100
    %v2162 = vpack.c.b16 %v2103, %v2102
    %v2163 = vpack.c.b16 %v2105, %v2104
    %v2164 = vpack.c.b16 %v2107, %v2106
    %v2165 = vpack.c.b16 %v2109, %v2108
    %v2166 = vpack.c.b16 %v2111, %v2110
    %v2167 = vpack.c.b16 %v2113, %v2112
    %v2168 = vpack.c.b16 %v2115, %v2114
    %v2169 = vpack.c.b16 %v2117, %v2116
    %v2170 = vpack.c.b16 %v2119, %v2118
    %v2171 = vpack.c.b16 %v2121, %v2120
    %v2172 = vpack.c.b16 %v2123, %v2122
    %v2173 = vpack.c.b16 %v2125, %v2124
    %v2174 = vpack.c.b16 %v2127, %v2126
    %v2175 = vpack.c.b16 %v2129, %v2128
    %v2176 = vpack.c.b16 %v2131, %v2130
    %v2177 = vpack.c.b16 %v2133, %v2132
    %v2178 = vpack.c.b16 %v2135, %v2134
    %v2179 = vpack.c.b16 %v2137, %v2136
    %v2180 = vpack.c.b16 %v2139, %v2138
    %v2181 = vpack.c.b16 %v2141, %v2140
    %v2182 = vpack.c.b16 %v2143, %v2142
    %v2183 = vpack.c.b16 %v2145, %v2144
    %v2184 = vpack.c.b16 %v2147, %v2146
    %v2185 = vpack.c.b16 %v2149, %v2148
    %v2186 = vpack.c.b16 %v2151, %v2150
    %v2187 = vpack.c.b16 %v2153, %v2152
    %v2188 = vpack.c.b16 %v2155, %v2154
    %v2189 = vpack.c.b16 %v2157, %v2156
    %2222 = vmatprep.subr.bf16.mxu0 0
    %2223 = vmatpush1.bf16.msra.mxu0 %v2158
    %2224 = vmatprep.subr.bf16.mxu0 0
    %2225 = vmatpush1.bf16.msra.mxu0 %v2159
    %2226 = vmatprep.subr.bf16.mxu0 0
    %2227 = vmatpush1.bf16.msra.mxu0 %v2160
    %2228 = vmatprep.subr.bf16.mxu0 0
    %2229 = vmatpush1.bf16.msra.mxu0 %v2161
    %2230 = vmatprep.subr.bf16.mxu0 0
    %2231 = vmatpush1.bf16.msra.mxu0 %v2162
    %2232 = vmatprep.subr.bf16.mxu0 0
    %2233 = vmatpush1.bf16.msra.mxu0 %v2163
    %2234 = vmatprep.subr.bf16.mxu0 0
    %2235 = vmatpush1.bf16.msra.mxu0 %v2164
    %2236 = vmatprep.subr.bf16.mxu0 0
    %2237 = vmatpush1.bf16.msra.mxu0 %v2165
    %2238 = vmatprep.subr.bf16.mxu0 0
    %2239 = vmatpush1.bf16.msra.mxu0 %v2166
    %2240 = vmatprep.subr.bf16.mxu0 0
    %2241 = vmatpush1.bf16.msra.mxu0 %v2167
    %2242 = vmatprep.subr.bf16.mxu0 0
    %2243 = vmatpush1.bf16.msra.mxu0 %v2168
    %2244 = vmatprep.subr.bf16.mxu0 0
    %2245 = vmatpush1.bf16.msra.mxu0 %v2169
    %2246 = vmatprep.subr.bf16.mxu0 0
    %2247 = vmatpush1.bf16.msra.mxu0 %v2170
    %2248 = vmatprep.subr.bf16.mxu0 0
    %2249 = vmatpush1.bf16.msra.mxu0 %v2171
    %2250 = vmatprep.subr.bf16.mxu0 0
    %2251 = vmatpush1.bf16.msra.mxu0 %v2172
    %2252 = vmatprep.subr.bf16.mxu0 0
    %2253 = vmatpush1.bf16.msra.mxu0 %v2173
    %2254 = vmatprep.mubr.bf16.mxu0 %v1948
    %2255 = vmatmul.mubr.bf16.gmra.mrb[0].mxu0 %v1947
    %v2256 = vpop.f32.mrb[0].mxu0
    %v2257 = vadd.f32 %v2026, %v2256
    %v2258 = vpop.f32.mrb[0].mxu0
    %v2259 = vpop.f32.mrb[0].mxu0
    %v2260 = vadd.f32 %v2027, %v2259
    %v2261 = vpop.f32.mrb[0].mxu0
    %2262 = vmatprep.mubr.bf16.mxu0 %v1952
    %2263 = vmatmul.mubr.bf16.gmra.mrb[0].mxu0 %v1951
    %v2264 = vpop.f32.mrb[0].mxu0
    %v2265 = vadd.f32 %v2028, %v2264
    %v2266 = vpop.f32.mrb[0].mxu0
    %v2267 = vpop.f32.mrb[0].mxu0
    %v2268 = vadd.f32 %v2029, %v2267
    %v2269 = vpop.f32.mrb[0].mxu0
    %2270 = vdwg.mxu0
    %2271 = vmatprep.subr.bf16.mxu0 0
    %2272 = vmatpush1.bf16.msra.mxu0 %v2174
    %2273 = vmatprep.subr.bf16.mxu0 0
    %2274 = vmatpush1.bf16.msra.mxu0 %v2175
    %2275 = vmatprep.subr.bf16.mxu0 0
    %2276 = vmatpush1.bf16.msra.mxu0 %v2176
    %2277 = vmatprep.subr.bf16.mxu0 0
    %2278 = vmatpush1.bf16.msra.mxu0 %v2177
    %2279 = vmatprep.subr.bf16.mxu0 0
    %2280 = vmatpush1.bf16.msra.mxu0 %v2178
    %2281 = vmatprep.subr.bf16.mxu0 0
    %2282 = vmatpush1.bf16.msra.mxu0 %v2179
    %2283 = vmatprep.subr.bf16.mxu0 0
    %2284 = vmatpush1.bf16.msra.mxu0 %v2180
    %2285 = vmatprep.subr.bf16.mxu0 0
    %2286 = vmatpush1.bf16.msra.mxu0 %v2181
    %2287 = vmatprep.subr.bf16.mxu0 0
    %2288 = vmatpush1.bf16.msra.mxu0 %v2182
    %2289 = vmatprep.subr.bf16.mxu0 0
    %2290 = vmatpush1.bf16.msra.mxu0 %v2183
    %2291 = vmatprep.subr.bf16.mxu0 0
    %2292 = vmatpush1.bf16.msra.mxu0 %v2184
    %2293 = vmatprep.subr.bf16.mxu0 0
    %2294 = vmatpush1.bf16.msra.mxu0 %v2185
    %2295 = vmatprep.subr.bf16.mxu0 0
    %2296 = vmatpush1.bf16.msra.mxu0 %v2186
    %2297 = vmatprep.subr.bf16.mxu0 0
    %2298 = vmatpush1.bf16.msra.mxu0 %v2187
    %2299 = vmatprep.subr.bf16.mxu0 0
    %2300 = vmatpush1.bf16.msra.mxu0 %v2188
    %2301 = vmatprep.subr.bf16.mxu0 0
    %2302 = vmatpush1.bf16.msra.mxu0 %v2189
    %2303 = vmatprep.mubr.bf16.mxu0 %v1950
    %2304 = vmatmul.mubr.bf16.gmra.mrb[0].mxu0 %v1949
    %v2305 = vpop.f32.mrb[0].mxu0
    %v2306 = vadd.f32 %v2257, %v2305
    %v2307 = vpop.f32.mrb[0].mxu0
    %v2308 = vpop.f32.mrb[0].mxu0
    %v2309 = vadd.f32 %v2260, %v2308
    %v2310 = vpop.f32.mrb[0].mxu0
    %2311 = vmatprep.mubr.bf16.mxu0 %v1954
    %2312 = vmatmul.mubr.bf16.gmra.mrb[0].mxu0 %v1953
    %v2313 = vpop.f32.mrb[0].mxu0
    %v2314 = vadd.f32 %v2265, %v2313
    %v2315 = vpop.f32.mrb[0].mxu0
    %v2316 = vpop.f32.mrb[0].mxu0
    %v2317 = vadd.f32 %v2268, %v2316
    %v2318 = vpop.f32.mrb[0].mxu0
    %2319 = vdwg.mxu0
    %v2320 = vld [vmem:[%s7] sm:$0xf]
    %v2321 = vld [vmem:[%s7 + $0x4] sm:$0xf]
    %v2322 = vld [vmem:[%s7 + $0x8] sm:$0xf]
    %v2323 = vld [vmem:[%s7 + $0xc] sm:$0xf]
    %v2324 = vld [vmem:[%s8] sm:$0x1]
    %v2326 = vlaneseq
    %v2327 = vshrl.u32 %v2326, 7
    %v2328 = vsub.s32 0, %v2327
    %v2329 = vrot.slane %v2324, %v2328
    %v2335 = vunpack.c.l.b16 %v2320
    %v2336 = vunpack.c.l.b16 %v2321
    %v2337 = vunpack.c.l.b16 %v2322
    %v2338 = vunpack.c.l.b16 %v2323
    %v2339 = vpack.c.b16 %v2336, %v2335
    %v2340 = vpack.c.b16 %v2338, %v2337
    %2343 = vmatprep.subr.bf16.mxu0 0
    %2344 = vmatpush1.bf16.msra.mxu0 %v2339
    %2345 = vmatprep.subr.bf16.mxu0 0
    %2346 = vmatpush1.bf16.msra.mxu0 %v2340
    %2347 = vmatprep.subr.bf16.mxu0 0
    %2348 = vmatpush1.bf16.msra.mxu0 0
    %2349 = vmatprep.subr.bf16.mxu0 0
    %2350 = vmatpush1.bf16.msra.mxu0 0
    %2351 = vmatprep.subr.bf16.mxu0 0
    %2352 = vmatpush1.bf16.msra.mxu0 0
    %2353 = vmatprep.subr.bf16.mxu0 0
    %2354 = vmatpush1.bf16.msra.mxu0 0
    %2355 = vmatprep.subr.bf16.mxu0 0
    %2356 = vmatpush1.bf16.msra.mxu0 0
    %2357 = vmatprep.subr.bf16.mxu0 0
    %2358 = vmatpush1.bf16.msra.mxu0 0
    %2359 = vmatprep.subr.bf16.mxu0 0
    %2360 = vmatpush1.bf16.msra.mxu0 0
    %2361 = vmatprep.subr.bf16.mxu0 0
    %2362 = vmatpush1.bf16.msra.mxu0 0
    %2363 = vmatprep.subr.bf16.mxu0 0
    %2364 = vmatpush1.bf16.msra.mxu0 0
    %2365 = vmatprep.subr.bf16.mxu0 0
    %2366 = vmatpush1.bf16.msra.mxu0 0
    %2367 = vmatprep.subr.bf16.mxu0 0
    %2368 = vmatpush1.bf16.msra.mxu0 0
    %2369 = vmatprep.subr.bf16.mxu0 0
    %2370 = vmatpush1.bf16.msra.mxu0 0
    %2371 = vmatprep.subr.bf16.mxu0 0
    %2372 = vmatpush1.bf16.msra.mxu0 0
    %2373 = vmatprep.subr.bf16.mxu0 0
    %2374 = vmatpush1.bf16.msra.mxu0 0
    %2375 = vmatprep.mubr.bf16.mxu0 0
    %2376 = vmatmul.mubr.bf16.gmra.mrb[0].mxu0 %v379
    %v2377 = vpop.f32.mrb[0].mxu0
    %v2378 = vadd.f32 %v2329, %v2377
    %v2379 = vpop.f32.mrb[0].mxu0
    %v2380 = vpop.f32.mrb[0].mxu0
    %v2381 = vadd.f32 %v2329, %v2380
    %v2382 = vpop.f32.mrb[0].mxu0
    %2383 = vmatprep.mubr.bf16.mxu0 0
    %2384 = vmatmul.mubr.bf16.gmra.mrb[0].mxu0 %v382
    %v2385 = vpop.f32.mrb[0].mxu0
    %v2386 = vadd.f32 %v2329, %v2385
    %v2387 = vpop.f32.mrb[0].mxu0
    %v2388 = vpop.f32.mrb[0].mxu0
    %v2389 = vadd.f32 %v2329, %v2388
    %v2390 = vpop.f32.mrb[0].mxu0
    %2391 = vdwg.mxu0
    %v2392 = vmin.f32 %v2378, 20.0
    %v2393 = vmin.f32 %v2381, 20.0
    %v2394 = vmin.f32 %v2386, 20.0
    %v2395 = vmin.f32 %v2389, 20.0
    %vm2396 = vcmp.gt.f32.partialorder %v2378, 20.0
    %vm2397 = vcmp.gt.f32.partialorder %v2381, 20.0
    %vm2398 = vcmp.gt.f32.partialorder %v2386, 20.0
    %vm2399 = vcmp.gt.f32.partialorder %v2389, 20.0
    %v2400 = vmul.f32 %v2392, 1.442695
    %v2401 = vpow.pop %v2400
    %v2402 = vmul.f32 %v2393, 1.442695
    %v2403 = vpow.pop %v2402
    %v2404 = vmul.f32 %v2394, 1.442695
    %v2405 = vpow.pop %v2404
    %v2406 = vmul.f32 %v2395, 1.442695
    %v2407 = vpow.pop %v2406
    %v2408 = vadd.f32 %v2401, 1.0
    %v2409 = vadd.f32 %v2403, 1.0
    %v2410 = vadd.f32 %v2405, 1.0
    %v2411 = vadd.f32 %v2407, 1.0
    %v2412 = vlog2.pop %v2408
    %v2413 = vmul.f32 %v2412, 0.6931472
    %v2414 = vlog2.pop %v2409
    %v2415 = vmul.f32 %v2414, 0.6931472
    %v2416 = vlog2.pop %v2410
    %v2417 = vmul.f32 %v2416, 0.6931472
    %v2418 = vlog2.pop %v2411
    %v2419 = vmul.f32 %v2418, 0.6931472
    %v2420 = vsel %vm2396, %v2378, %v2413
    %v2421 = vsel %vm2397, %v2381, %v2415
    %v2422 = vsel %vm2398, %v2386, %v2417
    %v2423 = vsel %vm2399, %v2389, %v2419
    %v2424 = vpack.c.bf16 %v2421, %v2420
    %v2425 = vpack.c.bf16 %v2423, %v2422
    %v2427 = vsel %vm68, %v2424, 0
    %v2430 = vsel %vm68, %v2425, 0
    %2432 = vmatprep.subr.bf16.mxu0 0
    %2433 = vmatpush1.bf16.msra.mxu0 %v479
    %2434 = vmatprep.subr.bf16.mxu0 0
    %2435 = vmatpush1.bf16.msra.mxu0 %v480
    %2436 = vmatprep.subr.bf16.mxu0 0
    %2437 = vmatpush1.bf16.msra.mxu0 0
    %2438 = vmatprep.subr.bf16.mxu0 0
    %2439 = vmatpush1.bf16.msra.mxu0 0
    %2440 = vmatprep.subr.bf16.mxu0 0
    %2441 = vmatpush1.bf16.msra.mxu0 0
    %2442 = vmatprep.subr.bf16.mxu0 0
    %2443 = vmatpush1.bf16.msra.mxu0 0
    %2444 = vmatprep.subr.bf16.mxu0 0
    %2445 = vmatpush1.bf16.msra.mxu0 0
    %2446 = vmatprep.subr.bf16.mxu0 0
    %2447 = vmatpush1.bf16.msra.mxu0 0
    %2448 = vmatprep.subr.bf16.mxu0 0
    %2449 = vmatpush1.bf16.msra.mxu0 0
    %2450 = vmatprep.subr.bf16.mxu0 0
    %2451 = vmatpush1.bf16.msra.mxu0 0
    %2452 = vmatprep.subr.bf16.mxu0 0
    %2453 = vmatpush1.bf16.msra.mxu0 0
    %2454 = vmatprep.subr.bf16.mxu0 0
    %2455 = vmatpush1.bf16.msra.mxu0 0
    %2456 = vmatprep.subr.bf16.mxu0 0
    %2457 = vmatpush1.bf16.msra.mxu0 0
    %2458 = vmatprep.subr.bf16.mxu0 0
    %2459 = vmatpush1.bf16.msra.mxu0 0
    %2460 = vmatprep.subr.bf16.mxu0 0
    %2461 = vmatpush1.bf16.msra.mxu0 0
    %2462 = vmatprep.subr.bf16.mxu0 0
    %2463 = vmatpush1.bf16.msra.mxu0 0
    %2464 = vmatprep.mubr.bf16.mxu0 0
    %2465 = vmatmul.mubr.bf16.gmra.mrb[0].mxu0 %v2427
    %v2466 = vpop.f32.mrb[0].mxu0
    %v2467 = vadd.f32 0.0, %v2466
    %v2468 = vpop.f32.mrb[0].mxu0
    %v2469 = vpop.f32.mrb[0].mxu0
    %v2470 = vadd.f32 0.0, %v2469
    %v2471 = vpop.f32.mrb[0].mxu0
    %2472 = vmatprep.mubr.bf16.mxu0 0
    %2473 = vmatmul.mubr.bf16.gmra.mrb[0].mxu0 %v2430
    %v2474 = vpop.f32.mrb[0].mxu0
    %v2475 = vadd.f32 0.0, %v2474
    %v2476 = vpop.f32.mrb[0].mxu0
    %v2477 = vpop.f32.mrb[0].mxu0
    %v2478 = vadd.f32 0.0, %v2477
    %v2479 = vpop.f32.mrb[0].mxu0
    %2480 = vdwg.mxu0
    %2481 = vmatprep.subr.bf16.mxu0 0
    %2482 = vmatpush1.bf16.msra.mxu0 %v550
    %2483 = vmatprep.subr.bf16.mxu0 0
    %2484 = vmatpush1.bf16.msra.mxu0 %v551
    %2485 = vmatprep.subr.bf16.mxu0 0
    %2486 = vmatpush1.bf16.msra.mxu0 0
    %2487 = vmatprep.subr.bf16.mxu0 0
    %2488 = vmatpush1.bf16.msra.mxu0 0
    %2489 = vmatprep.subr.bf16.mxu0 0
    %2490 = vmatpush1.bf16.msra.mxu0 0
    %2491 = vmatprep.subr.bf16.mxu0 0
    %2492 = vmatpush1.bf16.msra.mxu0 0
    %2493 = vmatprep.subr.bf16.mxu0 0
    %2494 = vmatpush1.bf16.msra.mxu0 0
    %2495 = vmatprep.subr.bf16.mxu0 0
    %2496 = vmatpush1.bf16.msra.mxu0 0
    %2497 = vmatprep.subr.bf16.mxu0 0
    %2498 = vmatpush1.bf16.msra.mxu0 0
    %2499 = vmatprep.subr.bf16.mxu0 0
    %2500 = vmatpush1.bf16.msra.mxu0 0
    %2501 = vmatprep.subr.bf16.mxu0 0
    %2502 = vmatpush1.bf16.msra.mxu0 0
    %2503 = vmatprep.subr.bf16.mxu0 0
    %2504 = vmatpush1.bf16.msra.mxu0 0
    %2505 = vmatprep.subr.bf16.mxu0 0
    %2506 = vmatpush1.bf16.msra.mxu0 0
    %2507 = vmatprep.subr.bf16.mxu0 0
    %2508 = vmatpush1.bf16.msra.mxu0 0
    %2509 = vmatprep.subr.bf16.mxu0 0
    %2510 = vmatpush1.bf16.msra.mxu0 0
    %2511 = vmatprep.subr.bf16.mxu0 0
    %2512 = vmatpush1.bf16.msra.mxu0 0
    %2513 = vmatprep.mubr.bf16.mxu0 0
    %2514 = vmatmul.mubr.bf16.gmra.mrb[0].mxu0 %v2427
    %v2515 = vpop.f32.mrb[0].mxu0
    %v2516 = vadd.f32 0.0, %v2515
    %v2517 = vpop.f32.mrb[0].mxu0
    %v2518 = vpop.f32.mrb[0].mxu0
    %v2519 = vadd.f32 0.0, %v2518
    %v2520 = vpop.f32.mrb[0].mxu0
    %2521 = vmatprep.mubr.bf16.mxu0 0
    %2522 = vmatmul.mubr.bf16.gmra.mrb[0].mxu0 %v2430
    %v2523 = vpop.f32.mrb[0].mxu0
    %v2524 = vadd.f32 0.0, %v2523
    %v2525 = vpop.f32.mrb[0].mxu0
    %v2526 = vpop.f32.mrb[0].mxu0
    %v2527 = vadd.f32 0.0, %v2526
    %v2528 = vpop.f32.mrb[0].mxu0
    %2529 = vdwg.mxu0
    %2530 = vmatprep.subr.bf16.mxu0 0
    %2531 = vmatpush1.bf16.msra.mxu0 %v615
    %2532 = vmatprep.subr.bf16.mxu0 0
    %2533 = vmatpush1.bf16.msra.mxu0 %v616
    %2534 = vmatprep.subr.bf16.mxu0 0
    %2535 = vmatpush1.bf16.msra.mxu0 0
    %2536 = vmatprep.subr.bf16.mxu0 0
    %2537 = vmatpush1.bf16.msra.mxu0 0
    %2538 = vmatprep.subr.bf16.mxu0 0
    %2539 = vmatpush1.bf16.msra.mxu0 0
    %2540 = vmatprep.subr.bf16.mxu0 0
    %2541 = vmatpush1.bf16.msra.mxu0 0
    %2542 = vmatprep.subr.bf16.mxu0 0
    %2543 = vmatpush1.bf16.msra.mxu0 0
    %2544 = vmatprep.subr.bf16.mxu0 0
    %2545 = vmatpush1.bf16.msra.mxu0 0
    %2546 = vmatprep.subr.bf16.mxu0 0
    %2547 = vmatpush1.bf16.msra.mxu0 0
    %2548 = vmatprep.subr.bf16.mxu0 0
    %2549 = vmatpush1.bf16.msra.mxu0 0
    %2550 = vmatprep.subr.bf16.mxu0 0
    %2551 = vmatpush1.bf16.msra.mxu0 0
    %2552 = vmatprep.subr.bf16.mxu0 0
    %2553 = vmatpush1.bf16.msra.mxu0 0
    %2554 = vmatprep.subr.bf16.mxu0 0
    %2555 = vmatpush1.bf16.msra.mxu0 0
    %2556 = vmatprep.subr.bf16.mxu0 0
    %2557 = vmatpush1.bf16.msra.mxu0 0
    %2558 = vmatprep.subr.bf16.mxu0 0
    %2559 = vmatpush1.bf16.msra.mxu0 0
    %2560 = vmatprep.subr.bf16.mxu0 0
    %2561 = vmatpush1.bf16.msra.mxu0 0
    %2562 = vmatprep.mubr.bf16.mxu0 0
    %2563 = vmatmul.mubr.bf16.gmra.mrb[0].mxu0 %v2427
    %v2564 = vpop.f32.mrb[0].mxu0
    %v2565 = vadd.f32 0.0, %v2564
    %v2566 = vpop.f32.mrb[0].mxu0
    %v2567 = vpop.f32.mrb[0].mxu0
    %v2568 = vadd.f32 0.0, %v2567
    %v2569 = vpop.f32.mrb[0].mxu0
    %2570 = vmatprep.mubr.bf16.mxu0 0
    %2571 = vmatmul.mubr.bf16.gmra.mrb[0].mxu0 %v2430
    %v2572 = vpop.f32.mrb[0].mxu0
    %v2573 = vadd.f32 0.0, %v2572
    %v2574 = vpop.f32.mrb[0].mxu0
    %v2575 = vpop.f32.mrb[0].mxu0
    %v2576 = vadd.f32 0.0, %v2575
    %v2577 = vpop.f32.mrb[0].mxu0
    %2578 = vdwg.mxu0
    %v2579 = vpack.c.bf16 %v2470, %v2467
    %v2580 = vpack.c.bf16 %v2478, %v2475
    %v2582 = vsel %vm678, %v2579, 0
    %v2585 = vsel %vm678, %v2580, 0
    %2587 = vmatprep.subr.bf16.mxu0 0
    %2588 = vmatpush1.bf16.msra.mxu0 %v687
    %2589 = vmatprep.subr.bf16.mxu0 0
    %2590 = vmatpush1.bf16.msra.mxu0 0
    %2591 = vmatprep.subr.bf16.mxu0 0
    %2592 = vmatpush1.bf16.msra.mxu0 0
    %2593 = vmatprep.subr.bf16.mxu0 0
    %2594 = vmatpush1.bf16.msra.mxu0 0
    %2595 = vmatprep.subr.bf16.mxu0 0
    %2596 = vmatpush1.bf16.msra.mxu0 0
    %2597 = vmatprep.subr.bf16.mxu0 0
    %2598 = vmatpush1.bf16.msra.mxu0 0
    %2599 = vmatprep.subr.bf16.mxu0 0
    %2600 = vmatpush1.bf16.msra.mxu0 0
    %2601 = vmatprep.subr.bf16.mxu0 0
    %2602 = vmatpush1.bf16.msra.mxu0 0
    %2603 = vmatprep.subr.bf16.mxu0 0
    %2604 = vmatpush1.bf16.msra.mxu0 0
    %2605 = vmatprep.subr.bf16.mxu0 0
    %2606 = vmatpush1.bf16.msra.mxu0 0
    %2607 = vmatprep.subr.bf16.mxu0 0
    %2608 = vmatpush1.bf16.msra.mxu0 0
    %2609 = vmatprep.subr.bf16.mxu0 0
    %2610 = vmatpush1.bf16.msra.mxu0 0
    %2611 = vmatprep.subr.bf16.mxu0 0
    %2612 = vmatpush1.bf16.msra.mxu0 0
    %2613 = vmatprep.subr.bf16.mxu0 0
    %2614 = vmatpush1.bf16.msra.mxu0 0
    %2615 = vmatprep.subr.bf16.mxu0 0
    %2616 = vmatpush1.bf16.msra.mxu0 0
    %2617 = vmatprep.subr.bf16.mxu0 0
    %2618 = vmatpush1.bf16.msra.mxu0 0
    %2619 = vmatprep.mubr.bf16.mxu0 0
    %2620 = vmatmul.mubr.bf16.gmra.mrb[0].mxu0 %v2582
    %v2621 = vpop.f32.mrb[0].mxu0
    %v2622 = vadd.f32 %v676, %v2621
    %v2623 = vpop.f32.mrb[0].mxu0
    %v2624 = vpop.f32.mrb[0].mxu0
    %v2625 = vadd.f32 %v676, %v2624
    %v2626 = vpop.f32.mrb[0].mxu0
    %2627 = vmatprep.mubr.bf16.mxu0 0
    %2628 = vmatmul.mubr.bf16.gmra.mrb[0].mxu0 %v2585
    %v2629 = vpop.f32.mrb[0].mxu0
    %v2630 = vadd.f32 %v676, %v2629
    %v2631 = vpop.f32.mrb[0].mxu0
    %v2632 = vpop.f32.mrb[0].mxu0
    %v2633 = vadd.f32 %v676, %v2632
    %v2634 = vpop.f32.mrb[0].mxu0
    %2635 = vdwg.mxu0
    %v2636 = vmin.f32 %v2622, 20.0
    %v2637 = vmin.f32 %v2625, 20.0
    %v2638 = vmin.f32 %v2630, 20.0
    %v2639 = vmin.f32 %v2633, 20.0
    %vm2640 = vcmp.gt.f32.partialorder %v2622, 20.0
    %vm2641 = vcmp.gt.f32.partialorder %v2625, 20.0
    %vm2642 = vcmp.gt.f32.partialorder %v2630, 20.0
    %vm2643 = vcmp.gt.f32.partialorder %v2633, 20.0
    %v2644 = vmul.f32 %v2636, 1.442695
    %v2645 = vpow.pop %v2644
    %v2646 = vmul.f32 %v2637, 1.442695
    %v2647 = vpow.pop %v2646
    %v2648 = vmul.f32 %v2638, 1.442695
    %v2649 = vpow.pop %v2648
    %v2650 = vmul.f32 %v2639, 1.442695
    %v2651 = vpow.pop %v2650
    %v2652 = vadd.f32 %v2645, 1.0
    %v2653 = vadd.f32 %v2647, 1.0
    %v2654 = vadd.f32 %v2649, 1.0
    %v2655 = vadd.f32 %v2651, 1.0
    %v2656 = vlog2.pop %v2652
    %v2657 = vmul.f32 %v2656, 0.6931472
    %v2658 = vlog2.pop %v2653
    %v2659 = vmul.f32 %v2658, 0.6931472
    %v2660 = vlog2.pop %v2654
    %v2661 = vmul.f32 %v2660, 0.6931472
    %v2662 = vlog2.pop %v2655
    %v2663 = vmul.f32 %v2662, 0.6931472
    %v2664 = vsel %vm2640, %v2622, %v2657
    %v2665 = vsel %vm2641, %v2625, %v2659
    %v2666 = vsel %vm2642, %v2630, %v2661
    %v2667 = vsel %vm2643, %v2633, %v2663
    %v2668 = vpack.c.bf16 %v2665, %v2664
    %v2669 = vpack.c.bf16 %v2667, %v2666
    %v2671 = vsel %vm68, %v2668, 0
    %v2674 = vsel %vm68, %v2669, 0
    %2676 = vmatprep.subr.bf16.mxu0 %v805
    %2677 = vmatpush1.bf16.msra.mxu0 %v804
    %2678 = vmatprep.subr.bf16.mxu0 %v809
    %2679 = vmatpush1.bf16.msra.mxu0 %v808
    %2680 = vmatprep.subr.bf16.mxu0 0
    %2681 = vmatpush1.bf16.msra.mxu0 0
    %2682 = vmatprep.subr.bf16.mxu0 0
    %2683 = vmatpush1.bf16.msra.mxu0 0
    %2684 = vmatprep.subr.bf16.mxu0 0
    %2685 = vmatpush1.bf16.msra.mxu0 0
    %2686 = vmatprep.subr.bf16.mxu0 0
    %2687 = vmatpush1.bf16.msra.mxu0 0
    %2688 = vmatprep.subr.bf16.mxu0 0
    %2689 = vmatpush1.bf16.msra.mxu0 0
    %2690 = vmatprep.subr.bf16.mxu0 0
    %2691 = vmatpush1.bf16.msra.mxu0 0
    %2692 = vmatprep.subr.bf16.mxu0 0
    %2693 = vmatpush1.bf16.msra.mxu0 0
    %2694 = vmatprep.subr.bf16.mxu0 0
    %2695 = vmatpush1.bf16.msra.mxu0 0
    %2696 = vmatprep.subr.bf16.mxu0 0
    %2697 = vmatpush1.bf16.msra.mxu0 0
    %2698 = vmatprep.subr.bf16.mxu0 0
    %2699 = vmatpush1.bf16.msra.mxu0 0
    %2700 = vmatprep.subr.bf16.mxu0 0
    %2701 = vmatpush1.bf16.msra.mxu0 0
    %2702 = vmatprep.subr.bf16.mxu0 0
    %2703 = vmatpush1.bf16.msra.mxu0 0
    %2704 = vmatprep.subr.bf16.mxu0 0
    %2705 = vmatpush1.bf16.msra.mxu0 0
    %2706 = vmatprep.subr.bf16.mxu0 0
    %2707 = vmatpush1.bf16.msra.mxu0 0
    %2708 = vmatprep.mubr.bf16.mxu0 0
    %2709 = vmatmul.mubr.bf16.gmra.mrb[0].mxu0 %v2671
    %v2710 = vpop.f32.mrb[0].mxu0
    %v2711 = vadd.f32 0.0, %v2710
    %v2712 = vpop.f32.mrb[0].mxu0
    %v2713 = vadd.f32 0.0, %v2712
    %v2714 = vpop.f32.mrb[0].mxu0
    %v2715 = vadd.f32 0.0, %v2714
    %v2716 = vpop.f32.mrb[0].mxu0
    %v2717 = vadd.f32 0.0, %v2716
    %2718 = vmatprep.mubr.bf16.mxu0 0
    %2719 = vmatmul.mubr.bf16.gmra.mrb[0].mxu0 %v2674
    %v2720 = vpop.f32.mrb[0].mxu0
    %v2721 = vadd.f32 0.0, %v2720
    %v2722 = vpop.f32.mrb[0].mxu0
    %v2723 = vadd.f32 0.0, %v2722
    %v2724 = vpop.f32.mrb[0].mxu0
    %v2725 = vadd.f32 0.0, %v2724
    %v2726 = vpop.f32.mrb[0].mxu0
    %v2727 = vadd.f32 0.0, %v2726
    %2728 = vdwg.mxu0
    %2729 = vmatprep.subr.bf16.mxu0 %v807
    %2730 = vmatpush1.bf16.msra.mxu0 %v806
    %2731 = vmatprep.subr.bf16.mxu0 %v811
    %2732 = vmatpush1.bf16.msra.mxu0 %v810
    %2733 = vmatprep.subr.bf16.mxu0 0
    %2734 = vmatpush1.bf16.msra.mxu0 0
    %2735 = vmatprep.subr.bf16.mxu0 0
    %2736 = vmatpush1.bf16.msra.mxu0 0
    %2737 = vmatprep.subr.bf16.mxu0 0
    %2738 = vmatpush1.bf16.msra.mxu0 0
    %2739 = vmatprep.subr.bf16.mxu0 0
    %2740 = vmatpush1.bf16.msra.mxu0 0
    %2741 = vmatprep.subr.bf16.mxu0 0
    %2742 = vmatpush1.bf16.msra.mxu0 0
    %2743 = vmatprep.subr.bf16.mxu0 0
    %2744 = vmatpush1.bf16.msra.mxu0 0
    %2745 = vmatprep.subr.bf16.mxu0 0
    %2746 = vmatpush1.bf16.msra.mxu0 0
    %2747 = vmatprep.subr.bf16.mxu0 0
    %2748 = vmatpush1.bf16.msra.mxu0 0
    %2749 = vmatprep.subr.bf16.mxu0 0
    %2750 = vmatpush1.bf16.msra.mxu0 0
    %2751 = vmatprep.subr.bf16.mxu0 0
    %2752 = vmatpush1.bf16.msra.mxu0 0
    %2753 = vmatprep.subr.bf16.mxu0 0
    %2754 = vmatpush1.bf16.msra.mxu0 0
    %2755 = vmatprep.subr.bf16.mxu0 0
    %2756 = vmatpush1.bf16.msra.mxu0 0
    %2757 = vmatprep.subr.bf16.mxu0 0
    %2758 = vmatpush1.bf16.msra.mxu0 0
    %2759 = vmatprep.subr.bf16.mxu0 0
    %2760 = vmatpush1.bf16.msra.mxu0 0
    %2761 = vmatprep.mubr.bf16.mxu0 0
    %2762 = vmatmul.mubr.bf16.gmra.mrb[0].mxu0 %v2671
    %v2763 = vpop.f32.mrb[0].mxu0
    %v2764 = vadd.f32 0.0, %v2763
    %v2765 = vpop.f32.mrb[0].mxu0
    %v2766 = vadd.f32 0.0, %v2765
    %v2767 = vpop.f32.mrb[0].mxu0
    %v2768 = vadd.f32 0.0, %v2767
    %v2769 = vpop.f32.mrb[0].mxu0
    %v2770 = vadd.f32 0.0, %v2769
    %2771 = vmatprep.mubr.bf16.mxu0 0
    %2772 = vmatmul.mubr.bf16.gmra.mrb[0].mxu0 %v2674
    %v2773 = vpop.f32.mrb[0].mxu0
    %v2774 = vadd.f32 0.0, %v2773
    %v2775 = vpop.f32.mrb[0].mxu0
    %v2776 = vadd.f32 0.0, %v2775
    %v2777 = vpop.f32.mrb[0].mxu0
    %v2778 = vadd.f32 0.0, %v2777
    %v2779 = vpop.f32.mrb[0].mxu0
    %v2780 = vadd.f32 0.0, %v2779
    %2781 = vdwg.mxu0
    %v2782 = vmul.f32 %v2664, %v2420
    %v2783 = vmul.f32 %v2665, %v2421
    %v2784 = vmul.f32 %v2666, %v2422
    %v2785 = vmul.f32 %v2667, %v2423
    %v2786 = vpack.c.bf16 %v2783, %v2782
    %v2787 = vpack.c.bf16 %v2785, %v2784
    %v2789 = vsel %vm68, %v2786, 0
    %v2792 = vsel %vm68, %v2787, 0
    %2794 = vmatprep.subr.bf16.mxu0 %v805
    %2795 = vmatpush1.bf16.msra.mxu0 %v804
    %2796 = vmatprep.subr.bf16.mxu0 %v809
    %2797 = vmatpush1.bf16.msra.mxu0 %v808
    %2798 = vmatprep.subr.bf16.mxu0 0
    %2799 = vmatpush1.bf16.msra.mxu0 0
    %2800 = vmatprep.subr.bf16.mxu0 0
    %2801 = vmatpush1.bf16.msra.mxu0 0
    %2802 = vmatprep.subr.bf16.mxu0 0
    %2803 = vmatpush1.bf16.msra.mxu0 0
    %2804 = vmatprep.subr.bf16.mxu0 0
    %2805 = vmatpush1.bf16.msra.mxu0 0
    %2806 = vmatprep.subr.bf16.mxu0 0
    %2807 = vmatpush1.bf16.msra.mxu0 0
    %2808 = vmatprep.subr.bf16.mxu0 0
    %2809 = vmatpush1.bf16.msra.mxu0 0
    %2810 = vmatprep.subr.bf16.mxu0 0
    %2811 = vmatpush1.bf16.msra.mxu0 0
    %2812 = vmatprep.subr.bf16.mxu0 0
    %2813 = vmatpush1.bf16.msra.mxu0 0
    %2814 = vmatprep.subr.bf16.mxu0 0
    %2815 = vmatpush1.bf16.msra.mxu0 0
    %2816 = vmatprep.subr.bf16.mxu0 0
    %2817 = vmatpush1.bf16.msra.mxu0 0
    %2818 = vmatprep.subr.bf16.mxu0 0
    %2819 = vmatpush1.bf16.msra.mxu0 0
    %2820 = vmatprep.subr.bf16.mxu0 0
    %2821 = vmatpush1.bf16.msra.mxu0 0
    %2822 = vmatprep.subr.bf16.mxu0 0
    %2823 = vmatpush1.bf16.msra.mxu0 0
    %2824 = vmatprep.subr.bf16.mxu0 0
    %2825 = vmatpush1.bf16.msra.mxu0 0
    %2826 = vmatprep.mubr.bf16.mxu0 0
    %2827 = vmatmul.mubr.bf16.gmra.mrb[0].mxu0 %v2789
    %v2828 = vpop.f32.mrb[0].mxu0
    %v2829 = vadd.f32 0.0, %v2828
    %v2830 = vpop.f32.mrb[0].mxu0
    %v2831 = vadd.f32 0.0, %v2830
    %v2832 = vpop.f32.mrb[0].mxu0
    %v2833 = vadd.f32 0.0, %v2832
    %v2834 = vpop.f32.mrb[0].mxu0
    %v2835 = vadd.f32 0.0, %v2834
    %2836 = vmatprep.mubr.bf16.mxu0 0
    %2837 = vmatmul.mubr.bf16.gmra.mrb[0].mxu0 %v2792
    %v2838 = vpop.f32.mrb[0].mxu0
    %v2839 = vadd.f32 0.0, %v2838
    %v2840 = vpop.f32.mrb[0].mxu0
    %v2841 = vadd.f32 0.0, %v2840
    %v2842 = vpop.f32.mrb[0].mxu0
    %v2843 = vadd.f32 0.0, %v2842
    %v2844 = vpop.f32.mrb[0].mxu0
    %v2845 = vadd.f32 0.0, %v2844
    %2846 = vdwg.mxu0
    %2847 = vmatprep.subr.bf16.mxu0 %v807
    %2848 = vmatpush1.bf16.msra.mxu0 %v806
    %2849 = vmatprep.subr.bf16.mxu0 %v811
    %2850 = vmatpush1.bf16.msra.mxu0 %v810
    %2851 = vmatprep.subr.bf16.mxu0 0
    %2852 = vmatpush1.bf16.msra.mxu0 0
    %2853 = vmatprep.subr.bf16.mxu0 0
    %2854 = vmatpush1.bf16.msra.mxu0 0
    %2855 = vmatprep.subr.bf16.mxu0 0
    %2856 = vmatpush1.bf16.msra.mxu0 0
    %2857 = vmatprep.subr.bf16.mxu0 0
    %2858 = vmatpush1.bf16.msra.mxu0 0
    %2859 = vmatprep.subr.bf16.mxu0 0
    %2860 = vmatpush1.bf16.msra.mxu0 0
    %2861 = vmatprep.subr.bf16.mxu0 0
    %2862 = vmatpush1.bf16.msra.mxu0 0
    %2863 = vmatprep.subr.bf16.mxu0 0
    %2864 = vmatpush1.bf16.msra.mxu0 0
    %2865 = vmatprep.subr.bf16.mxu0 0
    %2866 = vmatpush1.bf16.msra.mxu0 0
    %2867 = vmatprep.subr.bf16.mxu0 0
    %2868 = vmatpush1.bf16.msra.mxu0 0
    %2869 = vmatprep.subr.bf16.mxu0 0
    %2870 = vmatpush1.bf16.msra.mxu0 0
    %2871 = vmatprep.subr.bf16.mxu0 0
    %2872 = vmatpush1.bf16.msra.mxu0 0
    %2873 = vmatprep.subr.bf16.mxu0 0
    %2874 = vmatpush1.bf16.msra.mxu0 0
    %2875 = vmatprep.subr.bf16.mxu0 0
    %2876 = vmatpush1.bf16.msra.mxu0 0
    %2877 = vmatprep.subr.bf16.mxu0 0
    %2878 = vmatpush1.bf16.msra.mxu0 0
    %2879 = vmatprep.mubr.bf16.mxu0 0
    %2880 = vmatmul.mubr.bf16.gmra.mrb[0].mxu0 %v2789
    %v2881 = vpop.f32.mrb[0].mxu0
    %v2882 = vadd.f32 0.0, %v2881
    %v2883 = vpop.f32.mrb[0].mxu0
    %v2884 = vadd.f32 0.0, %v2883
    %v2885 = vpop.f32.mrb[0].mxu0
    %v2886 = vadd.f32 0.0, %v2885
    %v2887 = vpop.f32.mrb[0].mxu0
    %v2888 = vadd.f32 0.0, %v2887
    %2889 = vmatprep.mubr.bf16.mxu0 0
    %2890 = vmatmul.mubr.bf16.gmra.mrb[0].mxu0 %v2792
    %v2891 = vpop.f32.mrb[0].mxu0
    %v2892 = vadd.f32 0.0, %v2891
    %v2893 = vpop.f32.mrb[0].mxu0
    %v2894 = vadd.f32 0.0, %v2893
    %v2895 = vpop.f32.mrb[0].mxu0
    %v2896 = vadd.f32 0.0, %v2895
    %v2897 = vpop.f32.mrb[0].mxu0
    %v2898 = vadd.f32 0.0, %v2897
    %2899 = vdwg.mxu0
    %v2900 = vpack.c.bf16 %v2519, %v2516
    %v2901 = vpack.c.bf16 %v2527, %v2524
    %v2903 = vsel %vm1076, %v2900, 0
    %v2906 = vsel %vm1076, %v2901, 0
    %2908 = vmatprep.subr.bf16.mxu0 %v1069
    %2909 = vmatpush1.bf16.msra.mxu0 %v1068
    %2910 = vmatprep.subr.bf16.mxu0 0
    %2911 = vmatpush1.bf16.msra.mxu0 0
    %2912 = vmatprep.subr.bf16.mxu0 0
    %2913 = vmatpush1.bf16.msra.mxu0 0
    %2914 = vmatprep.subr.bf16.mxu0 0
    %2915 = vmatpush1.bf16.msra.mxu0 0
    %2916 = vmatprep.subr.bf16.mxu0 0
    %2917 = vmatpush1.bf16.msra.mxu0 0
    %2918 = vmatprep.subr.bf16.mxu0 0
    %2919 = vmatpush1.bf16.msra.mxu0 0
    %2920 = vmatprep.subr.bf16.mxu0 0
    %2921 = vmatpush1.bf16.msra.mxu0 0
    %2922 = vmatprep.subr.bf16.mxu0 0
    %2923 = vmatpush1.bf16.msra.mxu0 0
    %2924 = vmatprep.subr.bf16.mxu0 0
    %2925 = vmatpush1.bf16.msra.mxu0 0
    %2926 = vmatprep.subr.bf16.mxu0 0
    %2927 = vmatpush1.bf16.msra.mxu0 0
    %2928 = vmatprep.subr.bf16.mxu0 0
    %2929 = vmatpush1.bf16.msra.mxu0 0
    %2930 = vmatprep.subr.bf16.mxu0 0
    %2931 = vmatpush1.bf16.msra.mxu0 0
    %2932 = vmatprep.subr.bf16.mxu0 0
    %2933 = vmatpush1.bf16.msra.mxu0 0
    %2934 = vmatprep.subr.bf16.mxu0 0
    %2935 = vmatpush1.bf16.msra.mxu0 0
    %2936 = vmatprep.subr.bf16.mxu0 0
    %2937 = vmatpush1.bf16.msra.mxu0 0
    %2938 = vmatprep.subr.bf16.mxu0 0
    %2939 = vmatpush1.bf16.msra.mxu0 0
    %2940 = vmatprep.mubr.bf16.mxu0 0
    %2941 = vmatmul.mubr.bf16.gmra.mrb[0].mxu0 %v2903
    %v2942 = vpop.f32.mrb[0].mxu0
    %v2943 = vadd.f32 0.0, %v2942
    %v2944 = vpop.f32.mrb[0].mxu0
    %v2945 = vadd.f32 0.0, %v2944
    %v2946 = vpop.f32.mrb[0].mxu0
    %v2947 = vadd.f32 0.0, %v2946
    %v2948 = vpop.f32.mrb[0].mxu0
    %v2949 = vadd.f32 0.0, %v2948
    %2950 = vmatprep.mubr.bf16.mxu0 0
    %2951 = vmatmul.mubr.bf16.gmra.mrb[0].mxu0 %v2906
    %v2952 = vpop.f32.mrb[0].mxu0
    %v2953 = vadd.f32 0.0, %v2952
    %v2954 = vpop.f32.mrb[0].mxu0
    %v2955 = vadd.f32 0.0, %v2954
    %v2956 = vpop.f32.mrb[0].mxu0
    %v2957 = vadd.f32 0.0, %v2956
    %v2958 = vpop.f32.mrb[0].mxu0
    %v2959 = vadd.f32 0.0, %v2958
    %2960 = vdwg.mxu0
    %2961 = vmatprep.subr.bf16.mxu0 %v1071
    %2962 = vmatpush1.bf16.msra.mxu0 %v1070
    %2963 = vmatprep.subr.bf16.mxu0 0
    %2964 = vmatpush1.bf16.msra.mxu0 0
    %2965 = vmatprep.subr.bf16.mxu0 0
    %2966 = vmatpush1.bf16.msra.mxu0 0
    %2967 = vmatprep.subr.bf16.mxu0 0
    %2968 = vmatpush1.bf16.msra.mxu0 0
    %2969 = vmatprep.subr.bf16.mxu0 0
    %2970 = vmatpush1.bf16.msra.mxu0 0
    %2971 = vmatprep.subr.bf16.mxu0 0
    %2972 = vmatpush1.bf16.msra.mxu0 0
    %2973 = vmatprep.subr.bf16.mxu0 0
    %2974 = vmatpush1.bf16.msra.mxu0 0
    %2975 = vmatprep.subr.bf16.mxu0 0
    %2976 = vmatpush1.bf16.msra.mxu0 0
    %2977 = vmatprep.subr.bf16.mxu0 0
    %2978 = vmatpush1.bf16.msra.mxu0 0
    %2979 = vmatprep.subr.bf16.mxu0 0
    %2980 = vmatpush1.bf16.msra.mxu0 0
    %2981 = vmatprep.subr.bf16.mxu0 0
    %2982 = vmatpush1.bf16.msra.mxu0 0
    %2983 = vmatprep.subr.bf16.mxu0 0
    %2984 = vmatpush1.bf16.msra.mxu0 0
    %2985 = vmatprep.subr.bf16.mxu0 0
    %2986 = vmatpush1.bf16.msra.mxu0 0
    %2987 = vmatprep.subr.bf16.mxu0 0
    %2988 = vmatpush1.bf16.msra.mxu0 0
    %2989 = vmatprep.subr.bf16.mxu0 0
    %2990 = vmatpush1.bf16.msra.mxu0 0
    %2991 = vmatprep.subr.bf16.mxu0 0
    %2992 = vmatpush1.bf16.msra.mxu0 0
    %2993 = vmatprep.mubr.bf16.mxu0 0
    %2994 = vmatmul.mubr.bf16.gmra.mrb[0].mxu0 %v2903
    %v2995 = vpop.f32.mrb[0].mxu0
    %v2996 = vadd.f32 0.0, %v2995
    %v2997 = vpop.f32.mrb[0].mxu0
    %v2998 = vadd.f32 0.0, %v2997
    %v2999 = vpop.f32.mrb[0].mxu0
    %v3000 = vadd.f32 0.0, %v2999
    %v3001 = vpop.f32.mrb[0].mxu0
    %v3002 = vadd.f32 0.0, %v3001
    %3003 = vmatprep.mubr.bf16.mxu0 0
    %3004 = vmatmul.mubr.bf16.gmra.mrb[0].mxu0 %v2906
    %v3005 = vpop.f32.mrb[0].mxu0
    %v3006 = vadd.f32 0.0, %v3005
    %v3007 = vpop.f32.mrb[0].mxu0
    %v3008 = vadd.f32 0.0, %v3007
    %v3009 = vpop.f32.mrb[0].mxu0
    %v3010 = vadd.f32 0.0, %v3009
    %v3011 = vpop.f32.mrb[0].mxu0
    %v3012 = vadd.f32 0.0, %v3011
    %3013 = vdwg.mxu0
    %v3014 = vpack.c.bf16 %v2568, %v2565
    %v3015 = vpack.c.bf16 %v2576, %v2573
    %v3017 = vsel %vm1076, %v3014, 0
    %v3020 = vsel %vm1076, %v3015, 0
    %3022 = vmatprep.subr.bf16.mxu0 %v1069
    %3023 = vmatpush1.bf16.msra.mxu0 %v1068
    %3024 = vmatprep.subr.bf16.mxu0 0
    %3025 = vmatpush1.bf16.msra.mxu0 0
    %3026 = vmatprep.subr.bf16.mxu0 0
    %3027 = vmatpush1.bf16.msra.mxu0 0
    %3028 = vmatprep.subr.bf16.mxu0 0
    %3029 = vmatpush1.bf16.msra.mxu0 0
    %3030 = vmatprep.subr.bf16.mxu0 0
    %3031 = vmatpush1.bf16.msra.mxu0 0
    %3032 = vmatprep.subr.bf16.mxu0 0
    %3033 = vmatpush1.bf16.msra.mxu0 0
    %3034 = vmatprep.subr.bf16.mxu0 0
    %3035 = vmatpush1.bf16.msra.mxu0 0
    %3036 = vmatprep.subr.bf16.mxu0 0
    %3037 = vmatpush1.bf16.msra.mxu0 0
    %3038 = vmatprep.subr.bf16.mxu0 0
    %3039 = vmatpush1.bf16.msra.mxu0 0
    %3040 = vmatprep.subr.bf16.mxu0 0
    %3041 = vmatpush1.bf16.msra.mxu0 0
    %3042 = vmatprep.subr.bf16.mxu0 0
    %3043 = vmatpush1.bf16.msra.mxu0 0
    %3044 = vmatprep.subr.bf16.mxu0 0
    %3045 = vmatpush1.bf16.msra.mxu0 0
    %3046 = vmatprep.subr.bf16.mxu0 0
    %3047 = vmatpush1.bf16.msra.mxu0 0
    %3048 = vmatprep.subr.bf16.mxu0 0
    %3049 = vmatpush1.bf16.msra.mxu0 0
    %3050 = vmatprep.subr.bf16.mxu0 0
    %3051 = vmatpush1.bf16.msra.mxu0 0
    %3052 = vmatprep.subr.bf16.mxu0 0
    %3053 = vmatpush1.bf16.msra.mxu0 0
    %3054 = vmatprep.mubr.bf16.mxu0 0
    %3055 = vmatmul.mubr.bf16.gmra.mrb[0].mxu0 %v3017
    %v3056 = vpop.f32.mrb[0].mxu0
    %v3057 = vadd.f32 0.0, %v3056
    %v3058 = vpop.f32.mrb[0].mxu0
    %v3059 = vadd.f32 0.0, %v3058
    %v3060 = vpop.f32.mrb[0].mxu0
    %v3061 = vadd.f32 0.0, %v3060
    %v3062 = vpop.f32.mrb[0].mxu0
    %v3063 = vadd.f32 0.0, %v3062
    %3064 = vmatprep.mubr.bf16.mxu0 0
    %3065 = vmatmul.mubr.bf16.gmra.mrb[0].mxu0 %v3020
    %v3066 = vpop.f32.mrb[0].mxu0
    %v3067 = vadd.f32 0.0, %v3066
    %v3068 = vpop.f32.mrb[0].mxu0
    %v3069 = vadd.f32 0.0, %v3068
    %v3070 = vpop.f32.mrb[0].mxu0
    %v3071 = vadd.f32 0.0, %v3070
    %v3072 = vpop.f32.mrb[0].mxu0
    %v3073 = vadd.f32 0.0, %v3072
    %3074 = vdwg.mxu0
    %3075 = vmatprep.subr.bf16.mxu0 %v1071
    %3076 = vmatpush1.bf16.msra.mxu0 %v1070
    %3077 = vmatprep.subr.bf16.mxu0 0
    %3078 = vmatpush1.bf16.msra.mxu0 0
    %3079 = vmatprep.subr.bf16.mxu0 0
    %3080 = vmatpush1.bf16.msra.mxu0 0
    %3081 = vmatprep.subr.bf16.mxu0 0
    %3082 = vmatpush1.bf16.msra.mxu0 0
    %3083 = vmatprep.subr.bf16.mxu0 0
    %3084 = vmatpush1.bf16.msra.mxu0 0
    %3085 = vmatprep.subr.bf16.mxu0 0
    %3086 = vmatpush1.bf16.msra.mxu0 0
    %3087 = vmatprep.subr.bf16.mxu0 0
    %3088 = vmatpush1.bf16.msra.mxu0 0
    %3089 = vmatprep.subr.bf16.mxu0 0
    %3090 = vmatpush1.bf16.msra.mxu0 0
    %3091 = vmatprep.subr.bf16.mxu0 0
    %3092 = vmatpush1.bf16.msra.mxu0 0
    %3093 = vmatprep.subr.bf16.mxu0 0
    %3094 = vmatpush1.bf16.msra.mxu0 0
    %3095 = vmatprep.subr.bf16.mxu0 0
    %3096 = vmatpush1.bf16.msra.mxu0 0
    %3097 = vmatprep.subr.bf16.mxu0 0
    %3098 = vmatpush1.bf16.msra.mxu0 0
    %3099 = vmatprep.subr.bf16.mxu0 0
    %3100 = vmatpush1.bf16.msra.mxu0 0
    %3101 = vmatprep.subr.bf16.mxu0 0
    %3102 = vmatpush1.bf16.msra.mxu0 0
    %3103 = vmatprep.subr.bf16.mxu0 0
    %3104 = vmatpush1.bf16.msra.mxu0 0
    %3105 = vmatprep.subr.bf16.mxu0 0
    %3106 = vmatpush1.bf16.msra.mxu0 0
    %3107 = vmatprep.mubr.bf16.mxu0 0
    %3108 = vmatmul.mubr.bf16.gmra.mrb[0].mxu0 %v3017
    %v3109 = vpop.f32.mrb[0].mxu0
    %v3110 = vadd.f32 0.0, %v3109
    %v3111 = vpop.f32.mrb[0].mxu0
    %v3112 = vadd.f32 0.0, %v3111
    %v3113 = vpop.f32.mrb[0].mxu0
    %v3114 = vadd.f32 0.0, %v3113
    %v3115 = vpop.f32.mrb[0].mxu0
    %v3116 = vadd.f32 0.0, %v3115
    %3117 = vmatprep.mubr.bf16.mxu0 0
    %3118 = vmatmul.mubr.bf16.gmra.mrb[0].mxu0 %v3020
    %v3119 = vpop.f32.mrb[0].mxu0
    %v3120 = vadd.f32 0.0, %v3119
    %v3121 = vpop.f32.mrb[0].mxu0
    %v3122 = vadd.f32 0.0, %v3121
    %v3123 = vpop.f32.mrb[0].mxu0
    %v3124 = vadd.f32 0.0, %v3123
    %v3125 = vpop.f32.mrb[0].mxu0
    %v3126 = vadd.f32 0.0, %v3125
    %3127 = vdwg.mxu0
    %v3128 = vmul.f32 %v2711, %v1307
    %v3129 = vmul.f32 %v2713, %v1311
    %v3130 = vmul.f32 %v2764, %v1315
    %v3131 = vmul.f32 %v2766, %v1319
    %v3132 = vmul.f32 %v2715, %v1307
    %v3133 = vmul.f32 %v2717, %v1311
    %v3134 = vmul.f32 %v2768, %v1315
    %v3135 = vmul.f32 %v2770, %v1319
    %v3136 = vmul.f32 %v2721, %v1307
    %v3137 = vmul.f32 %v2723, %v1311
    %v3138 = vmul.f32 %v2774, %v1315
    %v3139 = vmul.f32 %v2776, %v1319
    %v3140 = vmul.f32 %v2725, %v1307
    %v3141 = vmul.f32 %v2727, %v1311
    %v3142 = vmul.f32 %v2778, %v1315
    %v3143 = vmul.f32 %v2780, %v1319
    %v3144 = vmul.f32 %v3128, 1.442695
    %v3145 = vpow.pop %v3144
    %v3146 = vmul.f32 %v3129, 1.442695
    %v3147 = vpow.pop %v3146
    %v3148 = vmul.f32 %v3130, 1.442695
    %v3149 = vpow.pop %v3148
    %v3150 = vmul.f32 %v3131, 1.442695
    %v3151 = vpow.pop %v3150
    %v3152 = vmul.f32 %v3132, 1.442695
    %v3153 = vpow.pop %v3152
    %v3154 = vmul.f32 %v3133, 1.442695
    %v3155 = vpow.pop %v3154
    %v3156 = vmul.f32 %v3134, 1.442695
    %v3157 = vpow.pop %v3156
    %v3158 = vmul.f32 %v3135, 1.442695
    %v3159 = vpow.pop %v3158
    %v3160 = vmul.f32 %v3136, 1.442695
    %v3161 = vpow.pop %v3160
    %v3162 = vmul.f32 %v3137, 1.442695
    %v3163 = vpow.pop %v3162
    %v3164 = vmul.f32 %v3138, 1.442695
    %v3165 = vpow.pop %v3164
    %v3166 = vmul.f32 %v3139, 1.442695
    %v3167 = vpow.pop %v3166
    %v3168 = vmul.f32 %v3140, 1.442695
    %v3169 = vpow.pop %v3168
    %v3170 = vmul.f32 %v3141, 1.442695
    %v3171 = vpow.pop %v3170
    %v3172 = vmul.f32 %v3142, 1.442695
    %v3173 = vpow.pop %v3172
    %v3174 = vmul.f32 %v3143, 1.442695
    %v3175 = vpow.pop %v3174
    %v3176 = vmul.f32 %v2829, %v2943
    %v3177 = vmul.f32 %v2831, %v2945
    %v3178 = vmul.f32 %v2882, %v2996
    %v3179 = vmul.f32 %v2884, %v2998
    %v3180 = vmul.f32 %v2833, %v2947
    %v3181 = vmul.f32 %v2835, %v2949
    %v3182 = vmul.f32 %v2886, %v3000
    %v3183 = vmul.f32 %v2888, %v3002
    %v3184 = vmul.f32 %v2839, %v2953
    %v3185 = vmul.f32 %v2841, %v2955
    %v3186 = vmul.f32 %v2892, %v3006
    %v3187 = vmul.f32 %v2894, %v3008
    %v3188 = vmul.f32 %v2843, %v2957
    %v3189 = vmul.f32 %v2845, %v2959
    %v3190 = vmul.f32 %v2896, %v3010
    %v3191 = vmul.f32 %v2898, %v3012
    %v3192 = vrot.slane %v3145, 7
    %v3193 = vrot.slane %v3147, 7
    %v3194 = vrot.slane %v3149, 7
    %v3195 = vrot.slane %v3151, 7
    %v3196 = vrot.slane %v3153, 7
    %v3197 = vrot.slane %v3155, 7
    %v3198 = vrot.slane %v3157, 7
    %v3199 = vrot.slane %v3159, 7
    %v3200 = vrot.slane %v3161, 7
    %v3201 = vrot.slane %v3163, 7
    %v3202 = vrot.slane %v3165, 7
    %v3203 = vrot.slane %v3167, 7
    %v3204 = vrot.slane %v3169, 7
    %v3205 = vrot.slane %v3171, 7
    %v3206 = vrot.slane %v3173, 7
    %v3207 = vrot.slane %v3175, 7
    %v3208 = vsel %vm1404, %v3200, %v3204
    %v3209 = vsel %vm1404, %v3201, %v3205
    %v3210 = vsel %vm1404, %v3202, %v3206
    %v3211 = vsel %vm1404, %v3203, %v3207
    %v3212 = vsel %vm1404, %v3196, %v3200
    %v3213 = vsel %vm1404, %v3197, %v3201
    %v3214 = vsel %vm1404, %v3198, %v3202
    %v3215 = vsel %vm1404, %v3199, %v3203
    %v3216 = vsel %vm1404, %v3192, %v3196
    %v3217 = vsel %vm1404, %v3193, %v3197
    %v3218 = vsel %vm1404, %v3194, %v3198
    %v3219 = vsel %vm1404, %v3195, %v3199
    %v3220 = vsel %vm1404, %v3204, %v3192
    %v3221 = vsel %vm1404, %v3205, %v3193
    %v3222 = vsel %vm1404, %v3206, %v3194
    %v3223 = vsel %vm1404, %v3207, %v3195
    %v3224 = vmul.f32 %v3220, %v315
    %v3225 = vmul.f32 %v3221, %v315
    %v3226 = vmul.f32 %v3222, %v315
    %v3227 = vmul.f32 %v3223, %v315
    %v3228 = vmul.f32 %v3216, %v316
    %v3229 = vmul.f32 %v3217, %v316
    %v3230 = vmul.f32 %v3218, %v316
    %v3231 = vmul.f32 %v3219, %v316
    %v3232 = vmul.f32 %v3212, %v317
    %v3233 = vmul.f32 %v3213, %v317
    %v3234 = vmul.f32 %v3214, %v317
    %v3235 = vmul.f32 %v3215, %v317
    %v3236 = vmul.f32 %v3208, %v318
    %v3237 = vmul.f32 %v3209, %v318
    %v3238 = vmul.f32 %v3210, %v318
    %v3239 = vmul.f32 %v3211, %v318
    %v3240 = vadd.f32 %v3224, %v1437
    %v3241 = vadd.f32 %v3225, %v1437
    %v3242 = vadd.f32 %v3226, %v1437
    %v3243 = vadd.f32 %v3227, %v1437
    %v3244 = vadd.f32 %v3228, %v1438
    %v3245 = vadd.f32 %v3229, %v1438
    %v3246 = vadd.f32 %v3230, %v1438
    %v3247 = vadd.f32 %v3231, %v1438
    %v3248 = vadd.f32 %v3232, %v1439
    %v3249 = vadd.f32 %v3233, %v1439
    %v3250 = vadd.f32 %v3234, %v1439
    %v3251 = vadd.f32 %v3235, %v1439
    %v3252 = vadd.f32 %v3236, %v1440
    %v3253 = vadd.f32 %v3237, %v1440
    %v3254 = vadd.f32 %v3238, %v1440
    %v3255 = vadd.f32 %v3239, %v1440
    %v3256 = vrot.slane %v3176, 7
    %v3257 = vrot.slane %v3177, 7
    %v3258 = vrot.slane %v3178, 7
    %v3259 = vrot.slane %v3179, 7
    %v3260 = vrot.slane %v3180, 7
    %v3261 = vrot.slane %v3181, 7
    %v3262 = vrot.slane %v3182, 7
    %v3263 = vrot.slane %v3183, 7
    %v3264 = vrot.slane %v3184, 7
    %v3265 = vrot.slane %v3185, 7
    %v3266 = vrot.slane %v3186, 7
    %v3267 = vrot.slane %v3187, 7
    %v3268 = vrot.slane %v3188, 7
    %v3269 = vrot.slane %v3189, 7
    %v3270 = vrot.slane %v3190, 7
    %v3271 = vrot.slane %v3191, 7
    %v3272 = vsel %vm1404, %v3264, %v3268
    %v3273 = vsel %vm1404, %v3265, %v3269
    %v3274 = vsel %vm1404, %v3266, %v3270
    %v3275 = vsel %vm1404, %v3267, %v3271
    %v3276 = vsel %vm1404, %v3260, %v3264
    %v3277 = vsel %vm1404, %v3261, %v3265
    %v3278 = vsel %vm1404, %v3262, %v3266
    %v3279 = vsel %vm1404, %v3263, %v3267
    %v3280 = vsel %vm1404, %v3256, %v3260
    %v3281 = vsel %vm1404, %v3257, %v3261
    %v3282 = vsel %vm1404, %v3258, %v3262
    %v3283 = vsel %vm1404, %v3259, %v3263
    %v3284 = vsel %vm1404, %v3268, %v3256
    %v3285 = vsel %vm1404, %v3269, %v3257
    %v3286 = vsel %vm1404, %v3270, %v3258
    %v3287 = vsel %vm1404, %v3271, %v3259
    %v3288 = vmul.f32 %v3284, %v315
    %v3289 = vmul.f32 %v3285, %v315
    %v3290 = vmul.f32 %v3286, %v315
    %v3291 = vmul.f32 %v3287, %v315
    %v3292 = vmul.f32 %v3280, %v316
    %v3293 = vmul.f32 %v3281, %v316
    %v3294 = vmul.f32 %v3282, %v316
    %v3295 = vmul.f32 %v3283, %v316
    %v3296 = vmul.f32 %v3276, %v317
    %v3297 = vmul.f32 %v3277, %v317
    %v3298 = vmul.f32 %v3278, %v317
    %v3299 = vmul.f32 %v3279, %v317
    %v3300 = vmul.f32 %v3272, %v318
    %v3301 = vmul.f32 %v3273, %v318
    %v3302 = vmul.f32 %v3274, %v318
    %v3303 = vmul.f32 %v3275, %v318
    %v3304 = vmul.f32 %v3145, %v3288
    %v3305 = vmul.f32 %v3147, %v3289
    %v3306 = vmul.f32 %v3149, %v3290
    %v3307 = vmul.f32 %v3151, %v3291
    %v3308 = vmul.f32 %v3153, %v3292
    %v3309 = vmul.f32 %v3155, %v3293
    %v3310 = vmul.f32 %v3157, %v3294
    %v3311 = vmul.f32 %v3159, %v3295
    %v3312 = vmul.f32 %v3161, %v3296
    %v3313 = vmul.f32 %v3163, %v3297
    %v3314 = vmul.f32 %v3165, %v3298
    %v3315 = vmul.f32 %v3167, %v3299
    %v3316 = vmul.f32 %v3169, %v3300
    %v3317 = vmul.f32 %v3171, %v3301
    %v3318 = vmul.f32 %v3173, %v3302
    %v3319 = vmul.f32 %v3175, %v3303
    %v3320 = vadd.f32 %v3176, %v3304
    %v3321 = vadd.f32 %v3177, %v3305
    %v3322 = vadd.f32 %v3178, %v3306
    %v3323 = vadd.f32 %v3179, %v3307
    %v3324 = vadd.f32 %v3180, %v3308
    %v3325 = vadd.f32 %v3181, %v3309
    %v3326 = vadd.f32 %v3182, %v3310
    %v3327 = vadd.f32 %v3183, %v3311
    %v3328 = vadd.f32 %v3184, %v3312
    %v3329 = vadd.f32 %v3185, %v3313
    %v3330 = vadd.f32 %v3186, %v3314
    %v3331 = vadd.f32 %v3187, %v3315
    %v3332 = vadd.f32 %v3188, %v3316
    %v3333 = vadd.f32 %v3189, %v3317
    %v3334 = vadd.f32 %v3190, %v3318
    %v3335 = vadd.f32 %v3191, %v3319
    %v3336 = vmul.f32 %v3145, %v3240
    %v3337 = vmul.f32 %v3147, %v3241
    %v3338 = vmul.f32 %v3149, %v3242
    %v3339 = vmul.f32 %v3151, %v3243
    %v3340 = vmul.f32 %v3153, %v3244
    %v3341 = vmul.f32 %v3155, %v3245
    %v3342 = vmul.f32 %v3157, %v3246
    %v3343 = vmul.f32 %v3159, %v3247
    %v3344 = vmul.f32 %v3161, %v3248
    %v3345 = vmul.f32 %v3163, %v3249
    %v3346 = vmul.f32 %v3165, %v3250
    %v3347 = vmul.f32 %v3167, %v3251
    %v3348 = vmul.f32 %v3169, %v3252
    %v3349 = vmul.f32 %v3171, %v3253
    %v3350 = vmul.f32 %v3173, %v3254
    %v3351 = vmul.f32 %v3175, %v3255
    %v3352 = vrot.slane %v3336, 6
    %v3353 = vrot.slane %v3337, 6
    %v3354 = vrot.slane %v3338, 6
    %v3355 = vrot.slane %v3339, 6
    %v3356 = vrot.slane %v3340, 6
    %v3357 = vrot.slane %v3341, 6
    %v3358 = vrot.slane %v3342, 6
    %v3359 = vrot.slane %v3343, 6
    %v3360 = vrot.slane %v3344, 6
    %v3361 = vrot.slane %v3345, 6
    %v3362 = vrot.slane %v3346, 6
    %v3363 = vrot.slane %v3347, 6
    %v3364 = vrot.slane %v3348, 6
    %v3365 = vrot.slane %v3349, 6
    %v3366 = vrot.slane %v3350, 6
    %v3367 = vrot.slane %v3351, 6
    %v3368 = vsel %vm1569, %v3360, %v3364
    %v3369 = vsel %vm1569, %v3361, %v3365
    %v3370 = vsel %vm1569, %v3362, %v3366
    %v3371 = vsel %vm1569, %v3363, %v3367
    %v3372 = vsel %vm1569, %v3356, %v3360
    %v3373 = vsel %vm1569, %v3357, %v3361
    %v3374 = vsel %vm1569, %v3358, %v3362
    %v3375 = vsel %vm1569, %v3359, %v3363
    %v3376 = vsel %vm1569, %v3352, %v3356
    %v3377 = vsel %vm1569, %v3353, %v3357
    %v3378 = vsel %vm1569, %v3354, %v3358
    %v3379 = vsel %vm1569, %v3355, %v3359
    %v3380 = vsel %vm1569, %v3364, %v3352
    %v3381 = vsel %vm1569, %v3365, %v3353
    %v3382 = vsel %vm1569, %v3366, %v3354
    %v3383 = vsel %vm1569, %v3367, %v3355
    %v3384 = vmul.f32 %v3380, %v327
    %v3385 = vmul.f32 %v3381, %v327
    %v3386 = vmul.f32 %v3382, %v327
    %v3387 = vmul.f32 %v3383, %v327
    %v3388 = vmul.f32 %v3376, %v328
    %v3389 = vmul.f32 %v3377, %v328
    %v3390 = vmul.f32 %v3378, %v328
    %v3391 = vmul.f32 %v3379, %v328
    %v3392 = vmul.f32 %v3372, %v329
    %v3393 = vmul.f32 %v3373, %v329
    %v3394 = vmul.f32 %v3374, %v329
    %v3395 = vmul.f32 %v3375, %v329
    %v3396 = vmul.f32 %v3368, %v330
    %v3397 = vmul.f32 %v3369, %v330
    %v3398 = vmul.f32 %v3370, %v330
    %v3399 = vmul.f32 %v3371, %v330
    %v3400 = vadd.f32 %v3384, %v1602
    %v3401 = vadd.f32 %v3385, %v1602
    %v3402 = vadd.f32 %v3386, %v1602
    %v3403 = vadd.f32 %v3387, %v1602
    %v3404 = vadd.f32 %v3388, %v1603
    %v3405 = vadd.f32 %v3389, %v1603
    %v3406 = vadd.f32 %v3390, %v1603
    %v3407 = vadd.f32 %v3391, %v1603
    %v3408 = vadd.f32 %v3392, %v1604
    %v3409 = vadd.f32 %v3393, %v1604
    %v3410 = vadd.f32 %v3394, %v1604
    %v3411 = vadd.f32 %v3395, %v1604
    %v3412 = vadd.f32 %v3396, %v1605
    %v3413 = vadd.f32 %v3397, %v1605
    %v3414 = vadd.f32 %v3398, %v1605
    %v3415 = vadd.f32 %v3399, %v1605
    %v3416 = vrot.slane %v3320, 6
    %v3417 = vrot.slane %v3321, 6
    %v3418 = vrot.slane %v3322, 6
    %v3419 = vrot.slane %v3323, 6
    %v3420 = vrot.slane %v3324, 6
    %v3421 = vrot.slane %v3325, 6
    %v3422 = vrot.slane %v3326, 6
    %v3423 = vrot.slane %v3327, 6
    %v3424 = vrot.slane %v3328, 6
    %v3425 = vrot.slane %v3329, 6
    %v3426 = vrot.slane %v3330, 6
    %v3427 = vrot.slane %v3331, 6
    %v3428 = vrot.slane %v3332, 6
    %v3429 = vrot.slane %v3333, 6
    %v3430 = vrot.slane %v3334, 6
    %v3431 = vrot.slane %v3335, 6
    %v3432 = vsel %vm1569, %v3424, %v3428
    %v3433 = vsel %vm1569, %v3425, %v3429
    %v3434 = vsel %vm1569, %v3426, %v3430
    %v3435 = vsel %vm1569, %v3427, %v3431
    %v3436 = vsel %vm1569, %v3420, %v3424
    %v3437 = vsel %vm1569, %v3421, %v3425
    %v3438 = vsel %vm1569, %v3422, %v3426
    %v3439 = vsel %vm1569, %v3423, %v3427
    %v3440 = vsel %vm1569, %v3416, %v3420
    %v3441 = vsel %vm1569, %v3417, %v3421
    %v3442 = vsel %vm1569, %v3418, %v3422
    %v3443 = vsel %vm1569, %v3419, %v3423
    %v3444 = vsel %vm1569, %v3428, %v3416
    %v3445 = vsel %vm1569, %v3429, %v3417
    %v3446 = vsel %vm1569, %v3430, %v3418
    %v3447 = vsel %vm1569, %v3431, %v3419
    %v3448 = vmul.f32 %v3444, %v327
    %v3449 = vmul.f32 %v3445, %v327
    %v3450 = vmul.f32 %v3446, %v327
    %v3451 = vmul.f32 %v3447, %v327
    %v3452 = vmul.f32 %v3440, %v328
    %v3453 = vmul.f32 %v3441, %v328
    %v3454 = vmul.f32 %v3442, %v328
    %v3455 = vmul.f32 %v3443, %v328
    %v3456 = vmul.f32 %v3436, %v329
    %v3457 = vmul.f32 %v3437, %v329
    %v3458 = vmul.f32 %v3438, %v329
    %v3459 = vmul.f32 %v3439, %v329
    %v3460 = vmul.f32 %v3432, %v330
    %v3461 = vmul.f32 %v3433, %v330
    %v3462 = vmul.f32 %v3434, %v330
    %v3463 = vmul.f32 %v3435, %v330
    %v3464 = vmul.f32 %v3336, %v3448
    %v3465 = vmul.f32 %v3337, %v3449
    %v3466 = vmul.f32 %v3338, %v3450
    %v3467 = vmul.f32 %v3339, %v3451
    %v3468 = vmul.f32 %v3340, %v3452
    %v3469 = vmul.f32 %v3341, %v3453
    %v3470 = vmul.f32 %v3342, %v3454
    %v3471 = vmul.f32 %v3343, %v3455
    %v3472 = vmul.f32 %v3344, %v3456
    %v3473 = vmul.f32 %v3345, %v3457
    %v3474 = vmul.f32 %v3346, %v3458
    %v3475 = vmul.f32 %v3347, %v3459
    %v3476 = vmul.f32 %v3348, %v3460
    %v3477 = vmul.f32 %v3349, %v3461
    %v3478 = vmul.f32 %v3350, %v3462
    %v3479 = vmul.f32 %v3351, %v3463
    %v3480 = vadd.f32 %v3320, %v3464
    %v3481 = vadd.f32 %v3321, %v3465
    %v3482 = vadd.f32 %v3322, %v3466
    %v3483 = vadd.f32 %v3323, %v3467
    %v3484 = vadd.f32 %v3324, %v3468
    %v3485 = vadd.f32 %v3325, %v3469
    %v3486 = vadd.f32 %v3326, %v3470
    %v3487 = vadd.f32 %v3327, %v3471
    %v3488 = vadd.f32 %v3328, %v3472
    %v3489 = vadd.f32 %v3329, %v3473
    %v3490 = vadd.f32 %v3330, %v3474
    %v3491 = vadd.f32 %v3331, %v3475
    %v3492 = vadd.f32 %v3332, %v3476
    %v3493 = vadd.f32 %v3333, %v3477
    %v3494 = vadd.f32 %v3334, %v3478
    %v3495 = vadd.f32 %v3335, %v3479
    %v3496 = vmul.f32 %v3336, %v3400
    %v3497 = vmul.f32 %v3337, %v3401
    %v3498 = vmul.f32 %v3338, %v3402
    %v3499 = vmul.f32 %v3339, %v3403
    %v3500 = vmul.f32 %v3340, %v3404
    %v3501 = vmul.f32 %v3341, %v3405
    %v3502 = vmul.f32 %v3342, %v3406
    %v3503 = vmul.f32 %v3343, %v3407
    %v3504 = vmul.f32 %v3344, %v3408
    %v3505 = vmul.f32 %v3345, %v3409
    %v3506 = vmul.f32 %v3346, %v3410
    %v3507 = vmul.f32 %v3347, %v3411
    %v3508 = vmul.f32 %v3348, %v3412
    %v3509 = vmul.f32 %v3349, %v3413
    %v3510 = vmul.f32 %v3350, %v3414
    %v3511 = vmul.f32 %v3351, %v3415
    %v3512 = vrot.slane %v3496, 4
    %v3513 = vrot.slane %v3497, 4
    %v3514 = vrot.slane %v3498, 4
    %v3515 = vrot.slane %v3499, 4
    %v3516 = vrot.slane %v3500, 4
    %v3517 = vrot.slane %v3501, 4
    %v3518 = vrot.slane %v3502, 4
    %v3519 = vrot.slane %v3503, 4
    %v3520 = vrot.slane %v3504, 4
    %v3521 = vrot.slane %v3505, 4
    %v3522 = vrot.slane %v3506, 4
    %v3523 = vrot.slane %v3507, 4
    %v3524 = vrot.slane %v3508, 4
    %v3525 = vrot.slane %v3509, 4
    %v3526 = vrot.slane %v3510, 4
    %v3527 = vrot.slane %v3511, 4
    %v3528 = vsel %vm1734, %v3520, %v3524
    %v3529 = vsel %vm1734, %v3521, %v3525
    %v3530 = vsel %vm1734, %v3522, %v3526
    %v3531 = vsel %vm1734, %v3523, %v3527
    %v3532 = vsel %vm1734, %v3516, %v3520
    %v3533 = vsel %vm1734, %v3517, %v3521
    %v3534 = vsel %vm1734, %v3518, %v3522
    %v3535 = vsel %vm1734, %v3519, %v3523
    %v3536 = vsel %vm1734, %v3512, %v3516
    %v3537 = vsel %vm1734, %v3513, %v3517
    %v3538 = vsel %vm1734, %v3514, %v3518
    %v3539 = vsel %vm1734, %v3515, %v3519
    %v3540 = vsel %vm1734, %v3524, %v3512
    %v3541 = vsel %vm1734, %v3525, %v3513
    %v3542 = vsel %vm1734, %v3526, %v3514
    %v3543 = vsel %vm1734, %v3527, %v3515
    %v3544 = vmul.f32 %v3540, %v339
    %v3545 = vmul.f32 %v3541, %v339
    %v3546 = vmul.f32 %v3542, %v339
    %v3547 = vmul.f32 %v3543, %v339
    %v3548 = vmul.f32 %v3536, %v340
    %v3549 = vmul.f32 %v3537, %v340
    %v3550 = vmul.f32 %v3538, %v340
    %v3551 = vmul.f32 %v3539, %v340
    %v3552 = vmul.f32 %v3532, %v341
    %v3553 = vmul.f32 %v3533, %v341
    %v3554 = vmul.f32 %v3534, %v341
    %v3555 = vmul.f32 %v3535, %v341
    %v3556 = vmul.f32 %v3528, %v342
    %v3557 = vmul.f32 %v3529, %v342
    %v3558 = vmul.f32 %v3530, %v342
    %v3559 = vmul.f32 %v3531, %v342
    %v3560 = vadd.f32 %v3544, %v1767
    %v3561 = vadd.f32 %v3545, %v1767
    %v3562 = vadd.f32 %v3546, %v1767
    %v3563 = vadd.f32 %v3547, %v1767
    %v3564 = vadd.f32 %v3548, %v1768
    %v3565 = vadd.f32 %v3549, %v1768
    %v3566 = vadd.f32 %v3550, %v1768
    %v3567 = vadd.f32 %v3551, %v1768
    %v3568 = vadd.f32 %v3552, %v1769
    %v3569 = vadd.f32 %v3553, %v1769
    %v3570 = vadd.f32 %v3554, %v1769
    %v3571 = vadd.f32 %v3555, %v1769
    %v3572 = vadd.f32 %v3556, %v1770
    %v3573 = vadd.f32 %v3557, %v1770
    %v3574 = vadd.f32 %v3558, %v1770
    %v3575 = vadd.f32 %v3559, %v1770
    %v3576 = vrot.slane %v3480, 4
    %v3577 = vrot.slane %v3481, 4
    %v3578 = vrot.slane %v3482, 4
    %v3579 = vrot.slane %v3483, 4
    %v3580 = vrot.slane %v3484, 4
    %v3581 = vrot.slane %v3485, 4
    %v3582 = vrot.slane %v3486, 4
    %v3583 = vrot.slane %v3487, 4
    %v3584 = vrot.slane %v3488, 4
    %v3585 = vrot.slane %v3489, 4
    %v3586 = vrot.slane %v3490, 4
    %v3587 = vrot.slane %v3491, 4
    %v3588 = vrot.slane %v3492, 4
    %v3589 = vrot.slane %v3493, 4
    %v3590 = vrot.slane %v3494, 4
    %v3591 = vrot.slane %v3495, 4
    %v3592 = vsel %vm1734, %v3584, %v3588
    %v3593 = vsel %vm1734, %v3585, %v3589
    %v3594 = vsel %vm1734, %v3586, %v3590
    %v3595 = vsel %vm1734, %v3587, %v3591
    %v3596 = vsel %vm1734, %v3580, %v3584
    %v3597 = vsel %vm1734, %v3581, %v3585
    %v3598 = vsel %vm1734, %v3582, %v3586
    %v3599 = vsel %vm1734, %v3583, %v3587
    %v3600 = vsel %vm1734, %v3576, %v3580
    %v3601 = vsel %vm1734, %v3577, %v3581
    %v3602 = vsel %vm1734, %v3578, %v3582
    %v3603 = vsel %vm1734, %v3579, %v3583
    %v3604 = vsel %vm1734, %v3588, %v3576
    %v3605 = vsel %vm1734, %v3589, %v3577
    %v3606 = vsel %vm1734, %v3590, %v3578
    %v3607 = vsel %vm1734, %v3591, %v3579
    %v3608 = vmul.f32 %v3604, %v339
    %v3609 = vmul.f32 %v3605, %v339
    %v3610 = vmul.f32 %v3606, %v339
    %v3611 = vmul.f32 %v3607, %v339
    %v3612 = vmul.f32 %v3600, %v340
    %v3613 = vmul.f32 %v3601, %v340
    %v3614 = vmul.f32 %v3602, %v340
    %v3615 = vmul.f32 %v3603, %v340
    %v3616 = vmul.f32 %v3596, %v341
    %v3617 = vmul.f32 %v3597, %v341
    %v3618 = vmul.f32 %v3598, %v341
    %v3619 = vmul.f32 %v3599, %v341
    %v3620 = vmul.f32 %v3592, %v342
    %v3621 = vmul.f32 %v3593, %v342
    %v3622 = vmul.f32 %v3594, %v342
    %v3623 = vmul.f32 %v3595, %v342
    %v3624 = vmul.f32 %v3496, %v3608
    %v3625 = vmul.f32 %v3497, %v3609
    %v3626 = vmul.f32 %v3498, %v3610
    %v3627 = vmul.f32 %v3499, %v3611
    %v3628 = vmul.f32 %v3500, %v3612
    %v3629 = vmul.f32 %v3501, %v3613
    %v3630 = vmul.f32 %v3502, %v3614
    %v3631 = vmul.f32 %v3503, %v3615
    %v3632 = vmul.f32 %v3504, %v3616
    %v3633 = vmul.f32 %v3505, %v3617
    %v3634 = vmul.f32 %v3506, %v3618
    %v3635 = vmul.f32 %v3507, %v3619
    %v3636 = vmul.f32 %v3508, %v3620
    %v3637 = vmul.f32 %v3509, %v3621
    %v3638 = vmul.f32 %v3510, %v3622
    %v3639 = vmul.f32 %v3511, %v3623
    %v3640 = vadd.f32 %v3480, %v3624
    %v3641 = vadd.f32 %v3481, %v3625
    %v3642 = vadd.f32 %v3482, %v3626
    %v3643 = vadd.f32 %v3483, %v3627
    %v3644 = vadd.f32 %v3484, %v3628
    %v3645 = vadd.f32 %v3485, %v3629
    %v3646 = vadd.f32 %v3486, %v3630
    %v3647 = vadd.f32 %v3487, %v3631
    %v3648 = vadd.f32 %v3488, %v3632
    %v3649 = vadd.f32 %v3489, %v3633
    %v3650 = vadd.f32 %v3490, %v3634
    %v3651 = vadd.f32 %v3491, %v3635
    %v3652 = vadd.f32 %v3492, %v3636
    %v3653 = vadd.f32 %v3493, %v3637
    %v3654 = vadd.f32 %v3494, %v3638
    %v3655 = vadd.f32 %v3495, %v3639
    %v3656 = vmul.f32 %v3496, %v3560
    %v3657 = vmul.f32 %v3497, %v3561
    %v3658 = vmul.f32 %v3498, %v3562
    %v3659 = vmul.f32 %v3499, %v3563
    %v3660 = vmul.f32 %v3500, %v3564
    %v3661 = vmul.f32 %v3501, %v3565
    %v3662 = vmul.f32 %v3502, %v3566
    %v3663 = vmul.f32 %v3503, %v3567
    %v3664 = vmul.f32 %v3504, %v3568
    %v3665 = vmul.f32 %v3505, %v3569
    %v3666 = vmul.f32 %v3506, %v3570
    %v3667 = vmul.f32 %v3507, %v3571
    %v3668 = vmul.f32 %v3508, %v3572
    %v3669 = vmul.f32 %v3509, %v3573
    %v3670 = vmul.f32 %v3510, %v3574
    %v3671 = vmul.f32 %v3511, %v3575
    %v3672 = vmul.f32 %v3652, %v351
    %v3673 = vmul.f32 %v3653, %v351
    %v3674 = vmul.f32 %v3654, %v351
    %v3675 = vmul.f32 %v3655, %v351
    %v3676 = vmul.f32 %v3640, %v352
    %v3677 = vmul.f32 %v3641, %v352
    %v3678 = vmul.f32 %v3642, %v352
    %v3679 = vmul.f32 %v3643, %v352
    %v3680 = vmul.f32 %v3644, %v353
    %v3681 = vmul.f32 %v3645, %v353
    %v3682 = vmul.f32 %v3646, %v353
    %v3683 = vmul.f32 %v3647, %v353
    %v3684 = vmul.f32 %v3648, %v354
    %v3685 = vmul.f32 %v3649, %v354
    %v3686 = vmul.f32 %v3650, %v354
    %v3687 = vmul.f32 %v3651, %v354
    %v3688 = vmul.f32 %v3656, %v3672
    %v3689 = vmul.f32 %v3657, %v3673
    %v3690 = vmul.f32 %v3658, %v3674
    %v3691 = vmul.f32 %v3659, %v3675
    %v3692 = vmul.f32 %v3660, %v3676
    %v3693 = vmul.f32 %v3661, %v3677
    %v3694 = vmul.f32 %v3662, %v3678
    %v3695 = vmul.f32 %v3663, %v3679
    %v3696 = vmul.f32 %v3664, %v3680
    %v3697 = vmul.f32 %v3665, %v3681
    %v3698 = vmul.f32 %v3666, %v3682
    %v3699 = vmul.f32 %v3667, %v3683
    %v3700 = vmul.f32 %v3668, %v3684
    %v3701 = vmul.f32 %v3669, %v3685
    %v3702 = vmul.f32 %v3670, %v3686
    %v3703 = vmul.f32 %v3671, %v3687
    %v3704 = vadd.f32 %v3640, %v3688
    %v3705 = vadd.f32 %v3641, %v3689
    %v3706 = vadd.f32 %v3642, %v3690
    %v3707 = vadd.f32 %v3643, %v3691
    %v3708 = vadd.f32 %v3644, %v3692
    %v3709 = vadd.f32 %v3645, %v3693
    %v3710 = vadd.f32 %v3646, %v3694
    %v3711 = vadd.f32 %v3647, %v3695
    %v3712 = vadd.f32 %v3648, %v3696
    %v3713 = vadd.f32 %v3649, %v3697
    %v3714 = vadd.f32 %v3650, %v3698
    %v3715 = vadd.f32 %v3651, %v3699
    %v3716 = vadd.f32 %v3652, %v3700
    %v3717 = vadd.f32 %v3653, %v3701
    %v3718 = vadd.f32 %v3654, %v3702
    %v3719 = vadd.f32 %v3655, %v3703
    %v3720 = vmul.f32 %v3704, %v3057
    %v3721 = vmul.f32 %v3705, %v3059
    %v3722 = vmul.f32 %v3706, %v3110
    %v3723 = vmul.f32 %v3707, %v3112
    %v3724 = vmul.f32 %v3708, %v3061
    %v3725 = vmul.f32 %v3709, %v3063
    %v3726 = vmul.f32 %v3710, %v3114
    %v3727 = vmul.f32 %v3711, %v3116
    %v3728 = vmul.f32 %v3712, %v3067
    %v3729 = vmul.f32 %v3713, %v3069
    %v3730 = vmul.f32 %v3714, %v3120
    %v3731 = vmul.f32 %v3715, %v3122
    %v3732 = vmul.f32 %v3716, %v3071
    %v3733 = vmul.f32 %v3717, %v3073
    %v3734 = vmul.f32 %v3718, %v3124
    %v3735 = vmul.f32 %v3719, %v3126
    %v3736 = vpack.c.bf16 %v3724, %v3720
    %v3737 = vpack.c.bf16 %v3725, %v3721
    %v3738 = vpack.c.bf16 %v3726, %v3722
    %v3739 = vpack.c.bf16 %v3727, %v3723
    %v3740 = vpack.c.bf16 %v3732, %v3728
    %v3741 = vpack.c.bf16 %v3733, %v3729
    %v3742 = vpack.c.bf16 %v3734, %v3730
    %v3743 = vpack.c.bf16 %v3735, %v3731
    %v3744 = vmul.f32 %v2024, %v2420
    %v3745 = vmul.f32 %v2024, %v2421
    %v3746 = vmul.f32 %v2024, %v2422
    %v3747 = vmul.f32 %v2024, %v2423
    %3748 = vmatprep.subr.bf16.mxu0 0
    %3749 = vmatpush1.bf16.msra.mxu0 %v2158
    %3750 = vmatprep.subr.bf16.mxu0 0
    %3751 = vmatpush1.bf16.msra.mxu0 %v2159
    %3752 = vmatprep.subr.bf16.mxu0 0
    %3753 = vmatpush1.bf16.msra.mxu0 %v2160
    %3754 = vmatprep.subr.bf16.mxu0 0
    %3755 = vmatpush1.bf16.msra.mxu0 %v2161
    %3756 = vmatprep.subr.bf16.mxu0 0
    %3757 = vmatpush1.bf16.msra.mxu0 %v2162
    %3758 = vmatprep.subr.bf16.mxu0 0
    %3759 = vmatpush1.bf16.msra.mxu0 %v2163
    %3760 = vmatprep.subr.bf16.mxu0 0
    %3761 = vmatpush1.bf16.msra.mxu0 %v2164
    %3762 = vmatprep.subr.bf16.mxu0 0
    %3763 = vmatpush1.bf16.msra.mxu0 %v2165
    %3764 = vmatprep.subr.bf16.mxu0 0
    %3765 = vmatpush1.bf16.msra.mxu0 %v2166
    %3766 = vmatprep.subr.bf16.mxu0 0
    %3767 = vmatpush1.bf16.msra.mxu0 %v2167
    %3768 = vmatprep.subr.bf16.mxu0 0
    %3769 = vmatpush1.bf16.msra.mxu0 %v2168
    %3770 = vmatprep.subr.bf16.mxu0 0
    %3771 = vmatpush1.bf16.msra.mxu0 %v2169
    %3772 = vmatprep.subr.bf16.mxu0 0
    %3773 = vmatpush1.bf16.msra.mxu0 %v2170
    %3774 = vmatprep.subr.bf16.mxu0 0
    %3775 = vmatpush1.bf16.msra.mxu0 %v2171
    %3776 = vmatprep.subr.bf16.mxu0 0
    %3777 = vmatpush1.bf16.msra.mxu0 %v2172
    %3778 = vmatprep.subr.bf16.mxu0 0
    %3779 = vmatpush1.bf16.msra.mxu0 %v2173
    %3780 = vmatprep.mubr.bf16.mxu0 %v3737
    %3781 = vmatmul.mubr.bf16.gmra.mrb[0].mxu0 %v3736
    %v3782 = vpop.f32.mrb[0].mxu0
    %v3783 = vadd.f32 %v3744, %v3782
    %v3784 = vpop.f32.mrb[0].mxu0
    %v3785 = vpop.f32.mrb[0].mxu0
    %v3786 = vadd.f32 %v3745, %v3785
    %v3787 = vpop.f32.mrb[0].mxu0
    %3788 = vmatprep.mubr.bf16.mxu0 %v3741
    %3789 = vmatmul.mubr.bf16.gmra.mrb[0].mxu0 %v3740
    %v3790 = vpop.f32.mrb[0].mxu0
    %v3791 = vadd.f32 %v3746, %v3790
    %v3792 = vpop.f32.mrb[0].mxu0
    %v3793 = vpop.f32.mrb[0].mxu0
    %v3794 = vadd.f32 %v3747, %v3793
    %v3795 = vpop.f32.mrb[0].mxu0
    %3796 = vdwg.mxu0
    %3797 = vmatprep.subr.bf16.mxu0 0
    %3798 = vmatpush1.bf16.msra.mxu0 %v2174
    %3799 = vmatprep.subr.bf16.mxu0 0
    %3800 = vmatpush1.bf16.msra.mxu0 %v2175
    %3801 = vmatprep.subr.bf16.mxu0 0
    %3802 = vmatpush1.bf16.msra.mxu0 %v2176
    %3803 = vmatprep.subr.bf16.mxu0 0
    %3804 = vmatpush1.bf16.msra.mxu0 %v2177
    %3805 = vmatprep.subr.bf16.mxu0 0
    %3806 = vmatpush1.bf16.msra.mxu0 %v2178
    %3807 = vmatprep.subr.bf16.mxu0 0
    %3808 = vmatpush1.bf16.msra.mxu0 %v2179
    %3809 = vmatprep.subr.bf16.mxu0 0
    %3810 = vmatpush1.bf16.msra.mxu0 %v2180
    %3811 = vmatprep.subr.bf16.mxu0 0
    %3812 = vmatpush1.bf16.msra.mxu0 %v2181
    %3813 = vmatprep.subr.bf16.mxu0 0
    %3814 = vmatpush1.bf16.msra.mxu0 %v2182
    %3815 = vmatprep.subr.bf16.mxu0 0
    %3816 = vmatpush1.bf16.msra.mxu0 %v2183
    %3817 = vmatprep.subr.bf16.mxu0 0
    %3818 = vmatpush1.bf16.msra.mxu0 %v2184
    %3819 = vmatprep.subr.bf16.mxu0 0
    %3820 = vmatpush1.bf16.msra.mxu0 %v2185
    %3821 = vmatprep.subr.bf16.mxu0 0
    %3822 = vmatpush1.bf16.msra.mxu0 %v2186
    %3823 = vmatprep.subr.bf16.mxu0 0
    %3824 = vmatpush1.bf16.msra.mxu0 %v2187
    %3825 = vmatprep.subr.bf16.mxu0 0
    %3826 = vmatpush1.bf16.msra.mxu0 %v2188
    %3827 = vmatprep.subr.bf16.mxu0 0
    %3828 = vmatpush1.bf16.msra.mxu0 %v2189
    %3829 = vmatprep.mubr.bf16.mxu0 %v3739
    %3830 = vmatmul.mubr.bf16.gmra.mrb[0].mxu0 %v3738
    %v3831 = vpop.f32.mrb[0].mxu0
    %v3832 = vadd.f32 %v3783, %v3831
    %v3833 = vpop.f32.mrb[0].mxu0
    %v3834 = vpop.f32.mrb[0].mxu0
    %v3835 = vadd.f32 %v3786, %v3834
    %v3836 = vpop.f32.mrb[0].mxu0
    %3837 = vmatprep.mubr.bf16.mxu0 %v3743
    %3838 = vmatmul.mubr.bf16.gmra.mrb[0].mxu0 %v3742
    %v3839 = vpop.f32.mrb[0].mxu0
    %v3840 = vadd.f32 %v3791, %v3839
    %v3841 = vpop.f32.mrb[0].mxu0
    %v3842 = vpop.f32.mrb[0].mxu0
    %v3843 = vadd.f32 %v3794, %v3842
    %v3844 = vpop.f32.mrb[0].mxu0
    %3845 = vdwg.mxu0
    %v3846 = vadd.f32 %v2306, %v3832
    %v3847 = vadd.f32 %v2309, %v3835
    %v3848 = vadd.f32 %v2314, %v3840
    %v3849 = vadd.f32 %v2317, %v3843
    %v3850 = vmul.f32 %v3846, %v244
    %v3851 = vmul.f32 %v3847, %v245
    %v3852 = vmul.f32 %v3848, %v246
    %v3853 = vmul.f32 %v3849, %v247
    %v3854 = vadd.f32 %v3850, %v64
    %v3855 = vadd.f32 %v3851, %v65
    %v3856 = vadd.f32 %v3852, %v66
    %v3857 = vadd.f32 %v3853, %v67
    %3858 = vst.msk [vmem:[#allocation2] sm:$0xff] %vm68, %v3854
    %3859 = vst.msk [vmem:[#allocation2 + $0x8] sm:$0xff] %vm68, %v3855
    %3860 = vst.msk [vmem:[#allocation2 + $0x10] sm:$0xff] %vm68, %v3856
    %3861 = vst.msk [vmem:[#allocation2 + $0x18] sm:$0xff] %vm68, %v3857
    // Predicated region
    $region78: #{tpu_custom_call.1} parent=1 // pred_check
      _
    $region79: #{tpu_custom_call.1} parent=1 // pred_check_branch
      %3863 = sbr.rel (0) target = $region81
    $region80: #{tpu_custom_call.1} parent=1 // pred_region
      %s3865 = ssub.s32 512, 512
      %3866 = vsyncadd [#allocation3], %s3865
      %s3867 = sshll.u32 [#allocation2], 4
      %s3868 = int_to_ptr.vmem [resolvable:$true] %s3867
      %3873 = dma.vmem_to_hbm [thread:$0]  %s3868, 512, %s19, [#allocation3], 128, 128, 8
    $region81: #{tpu_custom_call.1} parent=1 // pred_fallthru
      _
    // Predicated region
    $region82: #{tpu_custom_call.1} parent=1 // pred_check
      _
    $region83: #{tpu_custom_call.1} parent=1 // pred_check_branch
      %3875 = sbr.rel (0) target = $region85
    $region84: #{tpu_custom_call.1} parent=1 // pred_region
      %3876 = dma.done [#allocation3], 512
    $region85: #{tpu_custom_call.1} parent=1 // pred_fallthru
      _
    %3877 = vsyncpa [#allocation3], 1

</llo_original>
